<compile_context>
chip_gen: v7x
topology: tpu7x:2x2x1
jax: 0.10.0
libtpu: 0.0.40
codegen_flags: <defaults>
</compile_context>

<pallas_src>
import functools

import jax
import jax.numpy as jnp
from jax.experimental import pallas as pl
from jax.experimental.pallas import tpu as pltpu

_LANE = 128


def _round_up(x, m):
    return (x + m - 1) // m * m


def _conv1x1_bn_silu_kernel(x_ref, w_ref, shift_ref, o_ref):
    # x_ref: (TH, W, Cin_p) bf16 ; w_ref: (Cin_p, Ch_p) bf16 (BN scale folded)
    # shift_ref: (1, Ch_p) f32   ; o_ref: (TH, W, Ch_p) bf16
    th, w, cin_p = x_ref.shape
    ch_p = w_ref.shape[1]
    x2 = x_ref[...].reshape(th * w, cin_p)
    acc = jnp.dot(x2, w_ref[...], preferred_element_type=jnp.float32)
    y = acc + shift_ref[...]
    y = y * jax.nn.sigmoid(y)                      # SiLU
    o_ref[...] = y.reshape(th, w, ch_p).astype(o_ref.dtype)


def _conv3x3_bn_silu_kernel(use_add, *refs):
    # z_ref:   (Hp+2, W+2, Ch_p) bf16  -- whole padded image, resident per batch n
    # wk_ref:  (9, Ch_p, Co_p)   bf16  -- per-tap weights, BN scale folded
    # shift_ref: (1, Co_p) f32
    # res_ref: (TH, W, Co_p) f32       -- only when use_add
    # o_ref:   (TH, W, Co_p) f32
    if use_add:
        z_ref, wk_ref, shift_ref, res_ref, o_ref = refs
    else:
        z_ref, wk_ref, shift_ref, o_ref = refs
        res_ref = None
    th, w, co_p = o_ref.shape
    ch_p = z_ref.shape[-1]
    h0 = pl.program_id(1) * th

    acc = jnp.zeros((th * w, co_p), jnp.float32)
    for kh in range(3):
        rows = z_ref[pl.ds(h0 + kh, th), :, :]     # (TH, W+2, Ch_p)
        for kw in range(3):
            win = rows[:, kw:kw + w, :]            # (TH, W, Ch_p)
            acc = acc + jnp.dot(win.reshape(th * w, ch_p),
                                wk_ref[kh * 3 + kw],
                                preferred_element_type=jnp.float32)

    y = acc + shift_ref[...]
    y = y * jax.nn.sigmoid(y)                      # SiLU
    y = y.reshape(th, w, co_p)
    if use_add:
        y = y + res_ref[...]
    o_ref[...] = y.astype(o_ref.dtype)


@functools.partial(jax.jit, static_argnames=("use_add", "eps"))
def bottleneck_forward(x_nchw,
                       w1, g1, b1, m1, v1,
                       w2, g2, b2, m2, v2,
                       use_add=True, eps=1e-3):
    n, cin, h, w = x_nchw.shape
    ch = w1.shape[0]     # hidden channels
    co = w2.shape[0]     # output channels

    cin_p = _round_up(cin, _LANE)
    ch_p = _round_up(ch, _LANE)
    co_p = _round_up(co, _LANE)

    # row tile: ~512 output pixels per grid step
    th = max(1, min(h, max(1, 512 // w)))
    hp = _round_up(h, th)
    n_h = hp // th
    m_rows = n * hp * w

    # ---- layout glue (single transpose in) ----
    x_nhwc = jnp.transpose(x_nchw, (0, 2, 3, 1)).astype(jnp.float32)      # (N,H,W,Cin)
    x_pad = jnp.pad(x_nhwc, ((0, 0), (0, hp - h), (0, 0), (0, cin_p - cin)))
    x_bf16 = x_pad.astype(jnp.bfloat16)

    # ---- fold BN (eval mode) into weights: y = conv(x, w*scale) + shift ----
    def fold(g, b, m_, v_):
        inv = g.astype(jnp.float32) / jnp.sqrt(v_.astype(jnp.float32) + eps)
        return inv, b.astype(jnp.float32) - m_.astype(jnp.float32) * inv

    s1, sh1 = fold(g1, b1, m1, v1)
    s2, sh2 = fold(g2, b2, m2, v2)

    # conv1 weight (Ch, Cin, 1, 1) -> (Cin_p, Ch_p) bf16, BN scale folded
    w1_2d = (w1[:, :, 0, 0].astype(jnp.float32) * s1[:, None]).T          # (Cin, Ch)
    w1_2d = jnp.pad(w1_2d, ((0, cin_p - cin), (0, ch_p - ch))).astype(jnp.bfloat16)
    shift1 = jnp.pad(sh1, (0, ch_p - ch)).reshape(1, ch_p)

    # conv2 weight (Co, Ch, 3, 3) -> (9, Ch_p, Co_p) bf16, BN scale folded
    w2_k = jnp.transpose(w2.astype(jnp.float32), (2, 3, 1, 0)).reshape(9, ch, co)
    w2_k = w2_k * s2[None, None, :]
    w2_k = jnp.pad(w2_k, ((0, 0), (0, ch_p - ch), (0, co_p - co))).astype(jnp.bfloat16)
    shift2 = jnp.pad(sh2, (0, co_p - co)).reshape(1, co_p)

    # ---- kernel 1: 1x1 conv + BN + SiLU (pure channel matmul) ----
    z = pl.pallas_call(
        _conv1x1_bn_silu_kernel,
        out_shape=jax.ShapeDtypeStruct((n, hp, w, ch_p), jnp.bfloat16),
        grid_spec=pltpu.PrefetchScalarGridSpec(
            num_scalar_prefetch=0,
            grid=(n, n_h),
            in_specs=[
                pl.BlockSpec((None, th, w, cin_p), lambda i, j: (i, j, 0, 0)),
                pl.BlockSpec((cin_p, ch_p), lambda i, j: (0, 0)),
                pl.BlockSpec((1, ch_p), lambda i, j: (0, 0)),
            ],
            out_specs=pl.BlockSpec((None, th, w, ch_p), lambda i, j: (i, j, 0, 0)),
        ),
        compiler_params=pltpu.CompilerParams(
            dimension_semantics=("parallel", "parallel")),
        cost_estimate=pl.CostEstimate(
            flops=2 * m_rows * cin_p * ch_p,
            transcendentals=m_rows * ch_p,
            bytes_accessed=2 * m_rows * cin_p + 2 * cin_p * ch_p
                           + 4 * ch_p + 2 * m_rows * ch_p),
    )(x_bf16, w1_2d, shift1)

    # spatial zero-pad for the 3x3 conv (also zeroes any padded garbage rows)
    z_pad = jnp.pad(z[:, :h], ((0, 0), (1, hp - h + 1), (1, 1), (0, 0)))

    in_specs = [
        pl.BlockSpec((None, hp + 2, w + 2, ch_p), lambda i, j: (i, 0, 0, 0)),
        pl.BlockSpec((9, ch_p, co_p), lambda i, j: (0, 0, 0)),
        pl.BlockSpec((1, co_p), lambda i, j: (0, 0)),
    ]
    operands = [z_pad, w2_k, shift2]
    if use_add:
        # residual (= original input, NHWC, channel/row zero-padded), f32
        res = jnp.pad(x_nhwc, ((0, 0), (0, hp - h), (0, 0), (0, co_p - cin)))
        in_specs.append(pl.BlockSpec((None, th, w, co_p), lambda i, j: (i, j, 0, 0)))
        operands.append(res)

    bytes2 = (2 * n * (hp + 2) * (w + 2) * ch_p + 2 * 9 * ch_p * co_p + 4 * co_p
              + 4 * m_rows * co_p + (4 * m_rows * co_p if use_add else 0))

    y = pl.pallas_call(
        functools.partial(_conv3x3_bn_silu_kernel, use_add),
        out_shape=jax.ShapeDtypeStruct((n, hp, w, co_p), jnp.float32),
        grid_spec=pltpu.PrefetchScalarGridSpec(
            num_scalar_prefetch=0,
            grid=(n, n_h),
            in_specs=in_specs,
            out_specs=pl.BlockSpec((None, th, w, co_p), lambda i, j: (i, j, 0, 0)),
        ),
        compiler_params=pltpu.CompilerParams(
            dimension_semantics=("parallel", "parallel")),
        cost_estimate=pl.CostEstimate(
            flops=2 * 9 * m_rows * ch_p * co_p,
            transcendentals=m_rows * co_p,
            bytes_accessed=bytes2),
    )(*operands)

    out = y[:, :h, :, :co]                         # drop row / channel padding
    return jnp.transpose(out, (0, 3, 1, 2))        # back to NCHW


def _reference_forward(x, w1, g1, b1, m1, v1, w2, g2, b2, m2, v2, use_add, eps=1e-3):
    def bn_silu(y, g, b, m_, v_):
        inv = 1.0 / jnp.sqrt(v_ + eps)
        y = ((y - m_[None, :, None, None]) * (g * inv)[None, :, None, None]
             + b[None, :, None, None])
        return y * jax.nn.sigmoid(y)

    y1 = jax.lax.conv_general_dilated(
        x, w1, (1, 1), ((0, 0), (0, 0)),
        dimension_numbers=("NCHW", "OIHW", "NCHW"))
    z = bn_silu(y1, g1, b1, m1, v1)
    y2 = jax.lax.conv_general_dilated(
        z, w2, (1, 1), ((1, 1), (1, 1)),
        dimension_numbers=("NCHW", "OIHW", "NCHW"))
    y = bn_silu(y2, g2, b2, m2, v2)
    if use_add:
        y = y + x
    return y


if __name__ == "__main__":
    key = jax.random.PRNGKey(0)
    keys = jax.random.split(key, 11)

    # Bottleneck(in=4, out=4, shortcut=True, expansion=0.5, depthwise=False)
    N, Cin, H, W = 2, 4, 16, 16
    Cout = 4
    expansion = 0.5
    Ch = int(Cout * expansion)          # hidden channels
    shortcut = True
    use_add = shortcut and (Cin == Cout)

    x = jax.random.normal(keys[0], (N, Cin, H, W), dtype=jnp.float32)
    w1 = jax.random.normal(keys[1], (Ch, Cin, 1, 1), dtype=jnp.float32) * 0.1
    g1 = 1.0 + 0.1 * jax.random.normal(keys[2], (Ch,), dtype=jnp.float32)
    b1 = 0.1 * jax.random.normal(keys[3], (Ch,), dtype=jnp.float32)
    m1 = 0.05 * jax.random.normal(keys[4], (Ch,), dtype=jnp.float32)
    v1 = jnp.abs(1.0 + 0.1 * jax.random.normal(keys[5], (Ch,), dtype=jnp.float32))
    w2 = jax.random.normal(keys[6], (Cout, Ch, 3, 3), dtype=jnp.float32) * 0.1
    g2 = 1.0 + 0.1 * jax.random.normal(keys[7], (Cout,), dtype=jnp.float32)
    b2 = 0.1 * jax.random.normal(keys[8], (Cout,), dtype=jnp.float32)
    m2 = 0.05 * jax.random.normal(keys[9], (Cout,), dtype=jnp.float32)
    v2 = jnp.abs(1.0 + 0.1 * jax.random.normal(keys[10], (Cout,), dtype=jnp.float32))

    out = bottleneck_forward(x, w1, g1, b1, m1, v1, w2, g2, b2, m2, v2,
                             use_add=use_add)
    jax.block_until_ready(out)

    ref = _reference_forward(x, w1, g1, b1, m1, v1, w2, g2, b2, m2, v2, use_add)
    assert out.shape == (N, Cout, H, W)
    max_err = float(jnp.max(jnp.abs(out - ref)))
    assert jnp.allclose(out, ref, atol=3e-2, rtol=3e-2), \
        "mismatch vs reference (max err %g)" % max_err
    print("KERNEL_OK")
</pallas_src>

<mosaic_0001>
module attributes {stable_mosaic.version = 11 : i64} {
  func.func @_conv1x1_bn_silu_kernel(%arg0: i32, %arg1: i32, %arg2: memref<1x16x16x128xbf16, #tpu.memory_space<vmem>>, %arg3: memref<128x128xbf16, #tpu.memory_space<vmem>>, %arg4: memref<1x128xf32, #tpu.memory_space<vmem>>, %arg5: memref<1x16x16x128xbf16, #tpu.memory_space<vmem>>) attributes {dimension_semantics = [#tpu.dimension_semantics<parallel>, #tpu.dimension_semantics<parallel>], iteration_bounds = array<i64: 2, 1>, scalar_prefetch = 0 : i64, scratch_operands = 0 : i64, tpu.core_type = #tpu.core_type<tc>, window_params = [{transform_indices = @transform_0, window_bounds = array<i64: 1, 16, 16, 128>}, {pipeline_mode = #tpu.pipeline_mode<synchronous>, transform_indices = @transform_1, window_bounds = array<i64: 128, 128>}, {pipeline_mode = #tpu.pipeline_mode<synchronous>, transform_indices = @transform_2, window_bounds = array<i64: 1, 128>}, {transform_indices = @transform_3, window_bounds = array<i64: 1, 16, 16, 128>}]} {
    %c0 = arith.constant 0 : index
    %c0_0 = arith.constant 0 : index
    %c0_1 = arith.constant 0 : index
    %c0_2 = arith.constant 0 : index
    %0 = vector.load %arg2[%c0, %c0_0, %c0_1, %c0_2] : memref<1x16x16x128xbf16, #tpu.memory_space<vmem>>, vector<1x16x16x128xbf16>
    %1 = vector.shape_cast %0 : vector<1x16x16x128xbf16> to vector<16x16x128xbf16>
    %2 = vector.shape_cast %1 : vector<16x16x128xbf16> to vector<256x128xbf16>
    %c0_3 = arith.constant 0 : index
    %c0_4 = arith.constant 0 : index
    %3 = vector.load %arg3[%c0_3, %c0_4] : memref<128x128xbf16, #tpu.memory_space<vmem>>, vector<128x128xbf16>
    %cst = arith.constant dense<0.000000e+00> : vector<256x128xf32>
    %4 = tpu.matmul %2, %3, %cst {dimension_numbers = #tpu.dot_dimension_numbers<[1], [0], [0], [1], [0, 0, 1, 1], [], []>} : vector<256x128xbf16>, vector<128x128xbf16>, vector<256x128xf32> -> vector<256x128xf32>
    %c0_5 = arith.constant 0 : index
    %c0_6 = arith.constant 0 : index
    %5 = vector.load %arg4[%c0_5, %c0_6] : memref<1x128xf32, #tpu.memory_space<vmem>>, vector<1x128xf32>
    %6 = vector.broadcast %5 : vector<1x128xf32> to vector<256x128xf32>
    %7 = arith.addf %4, %6 : vector<256x128xf32>
    %8 = arith.negf %7 : vector<256x128xf32>
    %9 = math.exp %8 : vector<256x128xf32>
    %cst_7 = arith.constant 1.000000e+00 : f32
    %10 = vector.broadcast %cst_7 : f32 to vector<256x128xf32>
    %11 = arith.addf %10, %9 : vector<256x128xf32>
    %12 = arith.divf %10, %11 : vector<256x128xf32>
    %13 = arith.mulf %7, %12 : vector<256x128xf32>
    %14 = vector.shape_cast %13 : vector<256x128xf32> to vector<16x16x128xf32>
    %15 = arith.truncf %14 : vector<16x16x128xf32> to vector<16x16x128xbf16>
    %c0_8 = arith.constant 0 : index
    %c0_9 = arith.constant 0 : index
    %c0_10 = arith.constant 0 : index
    %c0_11 = arith.constant 0 : index
    %16 = vector.load %arg5[%c0_8, %c0_9, %c0_10, %c0_11] : memref<1x16x16x128xbf16, #tpu.memory_space<vmem>>, vector<1x16x16x128xbf16>
    %17 = vector.shape_cast %16 : vector<1x16x16x128xbf16> to vector<16x16x128xbf16>
    %18 = vector.shape_cast %15 : vector<16x16x128xbf16> to vector<1x16x16x128xbf16>
    tpu.vector_store %arg5[%c0_8, %c0_9, %c0_10, %c0_11], %18 {strides = array<i32>} : memref<1x16x16x128xbf16, #tpu.memory_space<vmem>>, vector<1x16x16x128xbf16>,
    return
  }
  func.func @transform_0(%arg0: i32, %arg1: i32) -> (i32, i32, i32, i32) {
    %c0_i32 = arith.constant 0 : i32
    %c0_i32_0 = arith.constant 0 : i32
    %c0_i32_1 = arith.constant 0 : i32
    return %arg0, %arg1, %c0_i32, %c0_i32_0 : i32, i32, i32, i32
  }
  func.func @transform_1(%arg0: i32, %arg1: i32) -> (i32, i32) {
    %c0_i32 = arith.constant 0 : i32
    %c0_i32_0 = arith.constant 0 : i32
    %c0_i32_1 = arith.constant 0 : i32
    return %c0_i32, %c0_i32_0 : i32, i32
  }
  func.func @transform_2(%arg0: i32, %arg1: i32) -> (i32, i32) {
    %c0_i32 = arith.constant 0 : i32
    %c0_i32_0 = arith.constant 0 : i32
    %c0_i32_1 = arith.constant 0 : i32
    return %c0_i32, %c0_i32_0 : i32, i32
  }
  func.func @transform_3(%arg0: i32, %arg1: i32) -> (i32, i32, i32, i32) {
    %c0_i32 = arith.constant 0 : i32
    %c0_i32_0 = arith.constant 0 : i32
    %c0_i32_1 = arith.constant 0 : i32
    return %arg0, %arg1, %c0_i32, %c0_i32_0 : i32, i32, i32, i32
  }
}

module attributes {stable_mosaic.version = 11 : i64} {
  func.func @_conv3x3_bn_silu_kernel(%arg0: i32, %arg1: i32, %arg2: memref<1x18x18x128xbf16, #tpu.memory_space<vmem>>, %arg3: memref<9x128x128xbf16, #tpu.memory_space<vmem>>, %arg4: memref<1x128xf32, #tpu.memory_space<vmem>>, %arg5: memref<1x16x16x128xf32, #tpu.memory_space<vmem>>, %arg6: memref<1x16x16x128xf32, #tpu.memory_space<vmem>>) attributes {dimension_semantics = [#tpu.dimension_semantics<parallel>, #tpu.dimension_semantics<parallel>], iteration_bounds = array<i64: 2, 1>, scalar_prefetch = 0 : i64, scratch_operands = 0 : i64, tpu.core_type = #tpu.core_type<tc>, window_params = [{transform_indices = @transform_0, window_bounds = array<i64: 1, 18, 18, 128>}, {pipeline_mode = #tpu.pipeline_mode<synchronous>, transform_indices = @transform_1, window_bounds = array<i64: 9, 128, 128>}, {pipeline_mode = #tpu.pipeline_mode<synchronous>, transform_indices = @transform_2, window_bounds = array<i64: 1, 128>}, {transform_indices = @transform_3, window_bounds = array<i64: 1, 16, 16, 128>}, {transform_indices = @transform_4, window_bounds = array<i64: 1, 16, 16, 128>}]} {
    %c16_i32 = arith.constant 16 : i32
    %0 = arith.muli %arg1, %c16_i32 : i32
    %cst = arith.constant 0.000000e+00 : f32
    %1 = vector.broadcast %cst : f32 to vector<256x128xf32>
    %c0_i32 = arith.constant 0 : i32
    %2 = arith.addi %0, %c0_i32 : i32
    %c0 = arith.constant 0 : index
    %3 = arith.index_cast %2 : i32 to index
    %c0_0 = arith.constant 0 : index
    %c0_1 = arith.constant 0 : index
    %4 = vector.load %arg2[%c0, %3, %c0_0, %c0_1] : memref<1x18x18x128xbf16, #tpu.memory_space<vmem>>, vector<1x16x18x128xbf16>
    %5 = vector.shape_cast %4 : vector<1x16x18x128xbf16> to vector<16x18x128xbf16>
    %6 = vector.extract_strided_slice %5 {offsets = [0, 0, 0], sizes = [16, 16, 128], strides = [1, 1, 1]} : vector<16x18x128xbf16> to vector<16x16x128xbf16>
    %7 = vector.shape_cast %6 : vector<16x16x128xbf16> to vector<256x128xbf16>
    %c0_2 = arith.constant 0 : index
    %c0_3 = arith.constant 0 : index
    %c0_4 = arith.constant 0 : index
    %8 = vector.load %arg3[%c0_2, %c0_3, %c0_4] : memref<9x128x128xbf16, #tpu.memory_space<vmem>>, vector<1x128x128xbf16>
    %9 = vector.shape_cast %8 : vector<1x128x128xbf16> to vector<128x128xbf16>
    %cst_5 = arith.constant dense<0.000000e+00> : vector<256x128xf32>
    %10 = tpu.matmul %7, %9, %cst_5 {dimension_numbers = #tpu.dot_dimension_numbers<[1], [0], [0], [1], [0, 0, 1, 1], [], []>} : vector<256x128xbf16>, vector<128x128xbf16>, vector<256x128xf32> -> vector<256x128xf32>
    %11 = arith.addf %1, %10 : vector<256x128xf32>
    %12 = vector.extract_strided_slice %5 {offsets = [0, 1, 0], sizes = [16, 16, 128], strides = [1, 1, 1]} : vector<16x18x128xbf16> to vector<16x16x128xbf16>
    %13 = vector.shape_cast %12 : vector<16x16x128xbf16> to vector<256x128xbf16>
    %c1 = arith.constant 1 : index
    %c0_6 = arith.constant 0 : index
    %c0_7 = arith.constant 0 : index
    %14 = vector.load %arg3[%c1, %c0_6, %c0_7] : memref<9x128x128xbf16, #tpu.memory_space<vmem>>, vector<1x128x128xbf16>
    %15 = vector.shape_cast %14 : vector<1x128x128xbf16> to vector<128x128xbf16>
    %cst_8 = arith.constant dense<0.000000e+00> : vector<256x128xf32>
    %16 = tpu.matmul %13, %15, %cst_8 {dimension_numbers = #tpu.dot_dimension_numbers<[1], [0], [0], [1], [0, 0, 1, 1], [], []>} : vector<256x128xbf16>, vector<128x128xbf16>, vector<256x128xf32> -> vector<256x128xf32>
    %17 = arith.addf %11, %16 : vector<256x128xf32>
    %18 = vector.extract_strided_slice %5 {offsets = [0, 2, 0], sizes = [16, 16, 128], strides = [1, 1, 1]} : vector<16x18x128xbf16> to vector<16x16x128xbf16>
    %19 = vector.shape_cast %18 : vector<16x16x128xbf16> to vector<256x128xbf16>
    %c2 = arith.constant 2 : index
    %c0_9 = arith.constant 0 : index
    %c0_10 = arith.constant 0 : index
    %20 = vector.load %arg3[%c2, %c0_9, %c0_10] : memref<9x128x128xbf16, #tpu.memory_space<vmem>>, vector<1x128x128xbf16>
    %21 = vector.shape_cast %20 : vector<1x128x128xbf16> to vector<128x128xbf16>
    %cst_11 = arith.constant dense<0.000000e+00> : vector<256x128xf32>
    %22 = tpu.matmul %19, %21, %cst_11 {dimension_numbers = #tpu.dot_dimension_numbers<[1], [0], [0], [1], [0, 0, 1, 1], [], []>} : vector<256x128xbf16>, vector<128x128xbf16>, vector<256x128xf32> -> vector<256x128xf32>
    %23 = arith.addf %17, %22 : vector<256x128xf32>
    %c1_i32 = arith.constant 1 : i32
    %24 = arith.addi %0, %c1_i32 : i32
    %c0_12 = arith.constant 0 : index
    %25 = arith.index_cast %24 : i32 to index
    %c0_13 = arith.constant 0 : index
    %c0_14 = arith.constant 0 : index
    %26 = vector.load %arg2[%c0_12, %25, %c0_13, %c0_14] : memref<1x18x18x128xbf16, #tpu.memory_space<vmem>>, vector<1x16x18x128xbf16>
    %27 = vector.shape_cast %26 : vector<1x16x18x128xbf16> to vector<16x18x128xbf16>
    %28 = vector.extract_strided_slice %27 {offsets = [0, 0, 0], sizes = [16, 16, 128], strides = [1, 1, 1]} : vector<16x18x128xbf16> to vector<16x16x128xbf16>
    %29 = vector.shape_cast %28 : vector<16x16x128xbf16> to vector<256x128xbf16>
    %c3 = arith.constant 3 : index
    %c0_15 = arith.constant 0 : index
    %c0_16 = arith.constant 0 : index
    %30 = vector.load %arg3[%c3, %c0_15, %c0_16] : memref<9x128x128xbf16, #tpu.memory_space<vmem>>, vector<1x128x128xbf16>
    %31 = vector.shape_cast %30 : vector<1x128x128xbf16> to vector<128x128xbf16>
    %cst_17 = arith.constant dense<0.000000e+00> : vector<256x128xf32>
    %32 = tpu.matmul %29, %31, %cst_17 {dimension_numbers = #tpu.dot_dimension_numbers<[1], [0], [0], [1], [0, 0, 1, 1], [], []>} : vector<256x128xbf16>, vector<128x128xbf16>, vector<256x128xf32> -> vector<256x128xf32>
    %33 = arith.addf %23, %32 : vector<256x128xf32>
    %34 = vector.extract_strided_slice %27 {offsets = [0, 1, 0], sizes = [16, 16, 128], strides = [1, 1, 1]} : vector<16x18x128xbf16> to vector<16x16x128xbf16>
    %35 = vector.shape_cast %34 : vector<16x16x128xbf16> to vector<256x128xbf16>
    %c4 = arith.constant 4 : index
    %c0_18 = arith.constant 0 : index
    %c0_19 = arith.constant 0 : index
    %36 = vector.load %arg3[%c4, %c0_18, %c0_19] : memref<9x128x128xbf16, #tpu.memory_space<vmem>>, vector<1x128x128xbf16>
    %37 = vector.shape_cast %36 : vector<1x128x128xbf16> to vector<128x128xbf16>
    %cst_20 = arith.constant dense<0.000000e+00> : vector<256x128xf32>
    %38 = tpu.matmul %35, %37, %cst_20 {dimension_numbers = #tpu.dot_dimension_numbers<[1], [0], [0], [1], [0, 0, 1, 1], [], []>} : vector<256x128xbf16>, vector<128x128xbf16>, vector<256x128xf32> -> vector<256x128xf32>
    %39 = arith.addf %33, %38 : vector<256x128xf32>
    %40 = vector.extract_strided_slice %27 {offsets = [0, 2, 0], sizes = [16, 16, 128], strides = [1, 1, 1]} : vector<16x18x128xbf16> to vector<16x16x128xbf16>
    %41 = vector.shape_cast %40 : vector<16x16x128xbf16> to vector<256x128xbf16>
    %c5 = arith.constant 5 : index
    %c0_21 = arith.constant 0 : index
    %c0_22 = arith.constant 0 : index
    %42 = vector.load %arg3[%c5, %c0_21, %c0_22] : memref<9x128x128xbf16, #tpu.memory_space<vmem>>, vector<1x128x128xbf16>
    %43 = vector.shape_cast %42 : vector<1x128x128xbf16> to vector<128x128xbf16>
    %cst_23 = arith.constant dense<0.000000e+00> : vector<256x128xf32>
    %44 = tpu.matmul %41, %43, %cst_23 {dimension_numbers = #tpu.dot_dimension_numbers<[1], [0], [0], [1], [0, 0, 1, 1], [], []>} : vector<256x128xbf16>, vector<128x128xbf16>, vector<256x128xf32> -> vector<256x128xf32>
    %45 = arith.addf %39, %44 : vector<256x128xf32>
    %c2_i32 = arith.constant 2 : i32
    %46 = arith.addi %0, %c2_i32 : i32
    %c0_24 = arith.constant 0 : index
    %47 = arith.index_cast %46 : i32 to index
    %c0_25 = arith.constant 0 : index
    %c0_26 = arith.constant 0 : index
    %48 = vector.load %arg2[%c0_24, %47, %c0_25, %c0_26] : memref<1x18x18x128xbf16, #tpu.memory_space<vmem>>, vector<1x16x18x128xbf16>
    %49 = vector.shape_cast %48 : vector<1x16x18x128xbf16> to vector<16x18x128xbf16>
    %50 = vector.extract_strided_slice %49 {offsets = [0, 0, 0], sizes = [16, 16, 128], strides = [1, 1, 1]} : vector<16x18x128xbf16> to vector<16x16x128xbf16>
    %51 = vector.shape_cast %50 : vector<16x16x128xbf16> to vector<256x128xbf16>
    %c6 = arith.constant 6 : index
    %c0_27 = arith.constant 0 : index
    %c0_28 = arith.constant 0 : index
    %52 = vector.load %arg3[%c6, %c0_27, %c0_28] : memref<9x128x128xbf16, #tpu.memory_space<vmem>>, vector<1x128x128xbf16>
    %53 = vector.shape_cast %52 : vector<1x128x128xbf16> to vector<128x128xbf16>
    %cst_29 = arith.constant dense<0.000000e+00> : vector<256x128xf32>
    %54 = tpu.matmul %51, %53, %cst_29 {dimension_numbers = #tpu.dot_dimension_numbers<[1], [0], [0], [1], [0, 0, 1, 1], [], []>} : vector<256x128xbf16>, vector<128x128xbf16>, vector<256x128xf32> -> vector<256x128xf32>
    %55 = arith.addf %45, %54 : vector<256x128xf32>
    %56 = vector.extract_strided_slice %49 {offsets = [0, 1, 0], sizes = [16, 16, 128], strides = [1, 1, 1]} : vector<16x18x128xbf16> to vector<16x16x128xbf16>
    %57 = vector.shape_cast %56 : vector<16x16x128xbf16> to vector<256x128xbf16>
    %c7 = arith.constant 7 : index
    %c0_30 = arith.constant 0 : index
    %c0_31 = arith.constant 0 : index
    %58 = vector.load %arg3[%c7, %c0_30, %c0_31] : memref<9x128x128xbf16, #tpu.memory_space<vmem>>, vector<1x128x128xbf16>
    %59 = vector.shape_cast %58 : vector<1x128x128xbf16> to vector<128x128xbf16>
    %cst_32 = arith.constant dense<0.000000e+00> : vector<256x128xf32>
    %60 = tpu.matmul %57, %59, %cst_32 {dimension_numbers = #tpu.dot_dimension_numbers<[1], [0], [0], [1], [0, 0, 1, 1], [], []>} : vector<256x128xbf16>, vector<128x128xbf16>, vector<256x128xf32> -> vector<256x128xf32>
    %61 = arith.addf %55, %60 : vector<256x128xf32>
    %62 = vector.extract_strided_slice %49 {offsets = [0, 2, 0], sizes = [16, 16, 128], strides = [1, 1, 1]} : vector<16x18x128xbf16> to vector<16x16x128xbf16>
    %63 = vector.shape_cast %62 : vector<16x16x128xbf16> to vector<256x128xbf16>
    %c8 = arith.constant 8 : index
    %c0_33 = arith.constant 0 : index
    %c0_34 = arith.constant 0 : index
    %64 = vector.load %arg3[%c8, %c0_33, %c0_34] : memref<9x128x128xbf16, #tpu.memory_space<vmem>>, vector<1x128x128xbf16>
    %65 = vector.shape_cast %64 : vector<1x128x128xbf16> to vector<128x128xbf16>
    %cst_35 = arith.constant dense<0.000000e+00> : vector<256x128xf32>
    %66 = tpu.matmul %63, %65, %cst_35 {dimension_numbers = #tpu.dot_dimension_numbers<[1], [0], [0], [1], [0, 0, 1, 1], [], []>} : vector<256x128xbf16>, vector<128x128xbf16>, vector<256x128xf32> -> vector<256x128xf32>
    %67 = arith.addf %61, %66 : vector<256x128xf32>
    %c0_36 = arith.constant 0 : index
    %c0_37 = arith.constant 0 : index
    %68 = vector.load %arg4[%c0_36, %c0_37] : memref<1x128xf32, #tpu.memory_space<vmem>>, vector<1x128xf32>
    %69 = vector.broadcast %68 : vector<1x128xf32> to vector<256x128xf32>
    %70 = arith.addf %67, %69 : vector<256x128xf32>
    %71 = arith.negf %70 : vector<256x128xf32>
    %72 = math.exp %71 : vector<256x128xf32>
    %cst_38 = arith.constant 1.000000e+00 : f32
    %73 = vector.broadcast %cst_38 : f32 to vector<256x128xf32>
    %74 = arith.addf %73, %72 : vector<256x128xf32>
    %75 = arith.divf %73, %74 : vector<256x128xf32>
    %76 = arith.mulf %70, %75 : vector<256x128xf32>
    %77 = vector.shape_cast %76 : vector<256x128xf32> to vector<16x16x128xf32>
    %c0_39 = arith.constant 0 : index
    %c0_40 = arith.constant 0 : index
    %c0_41 = arith.constant 0 : index
    %c0_42 = arith.constant 0 : index
    %78 = vector.load %arg5[%c0_39, %c0_40, %c0_41, %c0_42] : memref<1x16x16x128xf32, #tpu.memory_space<vmem>>, vector<1x16x16x128xf32>
    %79 = vector.shape_cast %78 : vector<1x16x16x128xf32> to vector<16x16x128xf32>
    %80 = arith.addf %77, %79 : vector<16x16x128xf32>
    %c0_43 = arith.constant 0 : index
    %c0_44 = arith.constant 0 : index
    %c0_45 = arith.constant 0 : index
    %c0_46 = arith.constant 0 : index
    %81 = vector.load %arg6[%c0_43, %c0_44, %c0_45, %c0_46] : memref<1x16x16x128xf32, #tpu.memory_space<vmem>>, vector<1x16x16x128xf32>
    %82 = vector.shape_cast %81 : vector<1x16x16x128xf32> to vector<16x16x128xf32>
    %83 = vector.shape_cast %80 : vector<16x16x128xf32> to vector<1x16x16x128xf32>
    tpu.vector_store %arg6[%c0_43, %c0_44, %c0_45, %c0_46], %83 {strides = array<i32>} : memref<1x16x16x128xf32, #tpu.memory_space<vmem>>, vector<1x16x16x128xf32>,
    return
  }
  func.func @transform_0(%arg0: i32, %arg1: i32) -> (i32, i32, i32, i32) {
    %c0_i32 = arith.constant 0 : i32
    %c0_i32_0 = arith.constant 0 : i32
    %c0_i32_1 = arith.constant 0 : i32
    %c0_i32_2 = arith.constant 0 : i32
    return %arg0, %c0_i32, %c0_i32_0, %c0_i32_1 : i32, i32, i32, i32
  }
  func.func @transform_1(%arg0: i32, %arg1: i32) -> (i32, i32, i32) {
    %c0_i32 = arith.constant 0 : i32
    %c0_i32_0 = arith.constant 0 : i32
    %c0_i32_1 = arith.constant 0 : i32
    %c0_i32_2 = arith.constant 0 : i32
    return %c0_i32, %c0_i32_0, %c0_i32_1 : i32, i32, i32
  }
  func.func @transform_2(%arg0: i32, %arg1: i32) -> (i32, i32) {
    %c0_i32 = arith.constant 0 : i32
    %c0_i32_0 = arith.constant 0 : i32
    %c0_i32_1 = arith.constant 0 : i32
    return %c0_i32, %c0_i32_0 : i32, i32
  }
  func.func @transform_3(%arg0: i32, %arg1: i32) -> (i32, i32, i32, i32) {
    %c0_i32 = arith.constant 0 : i32
    %c0_i32_0 = arith.constant 0 : i32
    %c0_i32_1 = arith.constant 0 : i32
    return %arg0, %arg1, %c0_i32, %c0_i32_0 : i32, i32, i32, i32
  }
  func.func @transform_4(%arg0: i32, %arg1: i32) -> (i32, i32, i32, i32) {
    %c0_i32 = arith.constant 0 : i32
    %c0_i32_0 = arith.constant 0 : i32
    %c0_i32_1 = arith.constant 0 : i32
    return %arg0, %arg1, %c0_i32, %c0_i32_0 : i32, i32, i32, i32
  }
}

</mosaic_0001>

<llo_original>
// kernel: bottleneck_forward.2
$region0: #{bottleneck_forward.2}
  #allocation0 [shape = 'u32[]', space=smem, size = 0x4, offset = 0x4, fixed_abs, tag = 'smem constant byte address 0x4 - core index']
  #allocation1 [shape = 'u32[144,128]{1,0:T(1,128)}', space=vmem, size = 0x12000, scoped, tag = 'internal scratch']
  %s0 = inlined_call_operand.vmem [shape: bf16[2,16,16,128], index: 0, kind: input, shape index: {}]
  %s1 = inlined_call_operand.vmem [shape: bf16[128,128], index: 1, kind: input, shape index: {}]
  %s2 = inlined_call_operand.vmem [shape: f32[1,128], index: 2, kind: input, shape index: {}]
  %s3 = inlined_call_operand.vmem [shape: bf16[2,16,16,128], index: 3, kind: output, shape index: {}]
  %s4 = sld [smem:[#allocation0]]
  $region45: #{bottleneck_forward.2} parent=0
    _
  %s6 = ssub.s32 1, %s4
  %s7 = scalar_select 0, %s6, %s4
  loop: start=0, step=1, limit=4
  $region2: #{bottleneck_forward.2} parent=0 // loop_pre_header
    _
  $region3: #{bottleneck_forward.2} parent=0 // loop_header
    %s9 = sphi 0, %s13
    %p10 = scmp.ge.s32.totalorder %s9, 4
    %s16 = sphi 0, %s28
    %s17 = sphi 0, %s24
    %s18 = sphi 0, %s16
    %s19 = sphi 0, %s17
    %s20 = sphi 0, %s18
    %s21 = sphi 0, %s19
    %s33 = sphi 0, %s35
    %s36 = sphi 0, %s33
    %s37 = sphi 0, %s36
    %s53 = sphi 0, %s37
    %s57 = sphi 0, %s57
    %s59 = sphi 0, %s57
    %s60 = sphi 0, %s59
    %s74 = sphi 0, %s60
    %s78 = sphi 0, %s78
    %s80 = sphi 0, %s78
    %s81 = sphi 0, %s80
    %s95 = sphi 0, %s81
    %s103 = sphi 0, %s105
    %s106 = sphi 0, %s103
    %s107 = sphi 0, %s106
    %s123 = sphi 0, %s107
  $region4: #{bottleneck_forward.2} parent=0 // loop_header_branch
    %12 = sbr.rel (%p10) target = $region8
  $region5: #{bottleneck_forward.2} parent=0 // loop_body
    %s14 = ssub.s32 %s9, 1
    %s15 = ssub.s32 %s9, 2
    %s22 = sadd.s32 1, %s17
    %p23 = scmp.ge.s32.totalorder %s22, 1
    %s24 = scalar_select %p23, 0, %s22
    %s25 = sadd.s32 1, %s16
    %s26 = scalar_select %p23, %s25, %s16
    %p27 = scmp.ge.s32.totalorder %s26, 2
    %s28 = scalar_select %p27, 0, %s26
    %s29 = ssub.s32 %s16, %s28
    %s30 = ssub.s32 %s17, %s24
    %s31 = sor.u32 %s29, %s30
    %p32 = scmp.eq.s32.totalorder %s31, 0
    %s34 = sadd.s32 %s33, 1
    %s35 = scalar_select %p32, %s33, %s34
    %p38 = pneg %p32
    %p39 = scmp.eq.s32.totalorder %s9, 1
    %p40 = por %p38, %p39
    %p41 = scmp.ne.s32.totalorder %s33, %s36
    %p42 = scmp.eq.s32.totalorder %s9, 0
    %p43 = por %p41, %p42
    %p44 = scmp.ne.s32.totalorder %s33, %s36
    %p45 = scmp.eq.s32.totalorder %s14, 1
    %p46 = por %p44, %p45
    %p47 = scmp.ne.s32.totalorder %s36, %s37
    %p48 = scmp.eq.s32.totalorder %s14, 0
    %p49 = por %p47, %p48
    %p50 = scmp.ne.s32.totalorder %s36, %s37
    %p51 = scmp.eq.s32.totalorder %s15, 1
    %p52 = por %p50, %p51
    %p54 = scmp.ne.s32.totalorder %s37, %s53
    %p55 = scmp.eq.s32.totalorder %s15, 0
    %p56 = por %p54, %p55
    %s58 = sadd.s32 %s57, 1
    %p61 = scmp.eq.s32.totalorder %s9, 1
    %p62 = scmp.ne.s32.totalorder %s57, %s59
    %p63 = scmp.eq.s32.totalorder %s9, 0
    %p64 = por %p62, %p63
    %p65 = scmp.ne.s32.totalorder %s57, %s59
    %p66 = scmp.eq.s32.totalorder %s14, 1
    %p67 = por %p65, %p66
    %p68 = scmp.ne.s32.totalorder %s59, %s60
    %p69 = scmp.eq.s32.totalorder %s14, 0
    %p70 = por %p68, %p69
    %p71 = scmp.ne.s32.totalorder %s59, %s60
    %p72 = scmp.eq.s32.totalorder %s15, 1
    %p73 = por %p71, %p72
    %p75 = scmp.ne.s32.totalorder %s60, %s74
    %p76 = scmp.eq.s32.totalorder %s15, 0
    %p77 = por %p75, %p76
    %s79 = sadd.s32 %s78, 1
    %p82 = scmp.eq.s32.totalorder %s9, 1
    %p83 = scmp.ne.s32.totalorder %s78, %s80
    %p84 = scmp.eq.s32.totalorder %s9, 0
    %p85 = por %p83, %p84
    %p86 = scmp.ne.s32.totalorder %s78, %s80
    %p87 = scmp.eq.s32.totalorder %s14, 1
    %p88 = por %p86, %p87
    %p89 = scmp.ne.s32.totalorder %s80, %s81
    %p90 = scmp.eq.s32.totalorder %s14, 0
    %p91 = por %p89, %p90
    %p92 = scmp.ne.s32.totalorder %s80, %s81
    %p93 = scmp.eq.s32.totalorder %s15, 1
    %p94 = por %p92, %p93
    %p96 = scmp.ne.s32.totalorder %s81, %s95
    %p97 = scmp.eq.s32.totalorder %s15, 0
    %p98 = por %p96, %p97
    %s99 = ssub.s32 %s16, %s28
    %s100 = ssub.s32 %s17, %s24
    %s101 = sor.u32 %s99, %s100
    %p102 = scmp.eq.s32.totalorder %s101, 0
    %s104 = sadd.s32 %s103, 1
    %s105 = scalar_select %p102, %s103, %s104
    %p108 = pneg %p102
    %p109 = scmp.eq.s32.totalorder %s9, 1
    %p110 = por %p108, %p109
    %p111 = scmp.ne.s32.totalorder %s103, %s106
    %p112 = scmp.eq.s32.totalorder %s9, 0
    %p113 = por %p111, %p112
    %p114 = scmp.ne.s32.totalorder %s103, %s106
    %p115 = scmp.eq.s32.totalorder %s14, 1
    %p116 = por %p114, %p115
    %p117 = scmp.ne.s32.totalorder %s106, %s107
    %p118 = scmp.eq.s32.totalorder %s14, 0
    %p119 = por %p117, %p118
    %p120 = scmp.ne.s32.totalorder %s106, %s107
    %p121 = scmp.eq.s32.totalorder %s15, 1
    %p122 = por %p120, %p121
    %p124 = scmp.ne.s32.totalorder %s107, %s123
    %p125 = scmp.eq.s32.totalorder %s15, 0
    %p126 = por %p124, %p125
    %p127 = scmp.le.s32.totalorder 1, %s9
    %p128 = scmp.lt.s32.totalorder %s9, 3
    %p129 = pnand %p127, %p128
    %p130 = pneg %p129
    // Predicated region
    $region9: #{bottleneck_forward.2} parent=5 // pred_check
      _
    $region10: #{bottleneck_forward.2} parent=5 // pred_check_branch
      %132 = sbr.rel (%p129) target = $region12
    $region11: #{bottleneck_forward.2} parent=5 // pred_region
      %s133 = ssub.s32 %s9, 1
      // Predicated region
      $region13: #{bottleneck_forward.2} parent=11 // pred_check
        %p134 = pneg %p70
      $region14: #{bottleneck_forward.2} parent=11 // pred_check_branch
        %136 = sbr.rel (%p134) target = $region16
      $region15: #{bottleneck_forward.2} parent=11 // pred_region
        _
      $region16: #{bottleneck_forward.2} parent=11 // pred_fallthru
        _
      // Predicated region
      $region17: #{bottleneck_forward.2} parent=11 // pred_check
        %p137 = pneg %p91
      $region18: #{bottleneck_forward.2} parent=11 // pred_check_branch
        %139 = sbr.rel (%p137) target = $region20
      $region19: #{bottleneck_forward.2} parent=11 // pred_region
        _
      $region20: #{bottleneck_forward.2} parent=11 // pred_fallthru
        _
    $region12: #{bottleneck_forward.2} parent=5 // pred_fallthru
      _
    %p140 = scmp.lt.s32.totalorder %s9, 2
    // Predicated region
    $region21: #{bottleneck_forward.2} parent=5 // pred_check
      %p141 = pneg %p140
    $region22: #{bottleneck_forward.2} parent=5 // pred_check_branch
      %143 = sbr.rel (%p141) target = $region24
    $region23: #{bottleneck_forward.2} parent=5 // pred_region
      // Predicated region
      $region25: #{bottleneck_forward.2} parent=23 // pred_check
        %p144 = pneg %p43
      $region26: #{bottleneck_forward.2} parent=23 // pred_check_branch
        %146 = sbr.rel (%p144) target = $region28
      $region27: #{bottleneck_forward.2} parent=23 // pred_region
        %s147 = smul.u32 16, %s17
        %p148 = scmp.lt.s32.totalorder %s16, 1
        %s149 = scalar_select %p148, %s16, 1
        %p150 = scmp.lt.s32.totalorder %s147, 15
        %s151 = scalar_select %p150, %s147, 15
        %s152 = smul.addr %s151, 2
        %s153 = smul.addr %s149, 32
        %s154 = sadd.s32 %s152, %s153
        %s155 = smul.addr %s154, 4
        %s156 = scalar_lea.vmem %s0, %s155
        %s157 = smul.u32 16, %s17
      $region28: #{bottleneck_forward.2} parent=23 // pred_fallthru
        _
    $region24: #{bottleneck_forward.2} parent=5 // pred_fallthru
      _
    %p158 = scmp.le.s32.totalorder 1, %s9
    %p159 = scmp.lt.s32.totalorder %s9, 3
    %p160 = pnand %p158, %p159
    %p161 = pneg %p160
    // Predicated region
    $region29: #{bottleneck_forward.2} parent=5 // pred_check
      _
    $region30: #{bottleneck_forward.2} parent=5 // pred_check_branch
      %163 = sbr.rel (%p160) target = $region32
    $region31: #{bottleneck_forward.2} parent=5 // pred_region
      %s164 = ssub.s32 %s9, 1
      %s165 = smul.u32 16, %s19
      %p166 = scmp.lt.s32.totalorder %s18, 1
      %s167 = scalar_select %p166, %s18, 1
      %p168 = scmp.lt.s32.totalorder %s165, 15
      %s169 = scalar_select %p168, %s165, 15
      %s170 = smul.addr %s169, 2
      %s171 = smul.addr %s167, 32
      %s172 = sadd.s32 %s170, %s171
      %s173 = smul.addr %s172, 4
      %s174 = scalar_lea.vmem %s0, %s173
      %p175 = pneg %p49
      %p176 = pneg %p46
      %p177 = pneg %p70
      %p178 = pneg %p67
      %p179 = pneg %p91
      %p180 = pneg %p88
      %p181 = pneg %p119
      %p182 = pneg %p116
      %s183 = smul.u32 16, %s19
      %p184 = scmp.lt.s32.totalorder %s18, 1
      %s185 = scalar_select %p184, %s18, 1
      %p186 = scmp.lt.s32.totalorder %s183, 15
      %s187 = scalar_select %p186, %s183, 15
      %s188 = smul.addr %s187, 2
      %s189 = smul.addr %s185, 32
      %s190 = sadd.s32 %s188, %s189
      %s191 = smul.addr %s190, 4
      %s192 = scalar_lea.vmem %s3, %s191
      %s193 = smul.u32 16, %s19
      %p194 = scmp.lt.s32.totalorder %s18, 1
      %s195 = scalar_select %p194, %s18, 1
      %p196 = scmp.lt.s32.totalorder %s193, 15
      %s197 = scalar_select %p196, %s193, 15
      %s198 = smul.addr %s197, 2
      %s199 = smul.addr %s195, 32
      %s200 = sadd.s32 %s198, %s199
      %s201 = smul.addr %s200, 4
      %s202 = scalar_lea.vmem %s0, %s201
      %s203 = smul.u32 16, %s19
      %s204 = smul.u32 16, %s19
      %p205 = scmp.lt.s32.totalorder %s18, 1
      %s206 = scalar_select %p205, %s18, 1
      %p207 = scmp.lt.s32.totalorder %s204, 15
      %s208 = scalar_select %p207, %s204, 15
      %s209 = smul.addr %s208, 2
      %s210 = smul.addr %s206, 32
      %s211 = sadd.s32 %s209, %s210
      %s212 = smul.addr %s211, 4
      %s213 = scalar_lea.vmem %s3, %s212
      %s214 = smul.u32 16, %s19
      %v216 = vld [vmem:[%s202] sm:$0xf]
      %v217 = vld [vmem:[%s202 + $0x4] sm:$0xf]
      %v218 = vld [vmem:[%s202 + $0x8] sm:$0xf]
      %v219 = vld [vmem:[%s202 + $0xc] sm:$0xf]
      %v220 = vld [vmem:[%s202 + $0x10] sm:$0xf]
      %v221 = vld [vmem:[%s202 + $0x14] sm:$0xf]
      %v222 = vld [vmem:[%s202 + $0x18] sm:$0xf]
      %v223 = vld [vmem:[%s202 + $0x1c] sm:$0xf]
      %v224 = vld [vmem:[%s202 + $0x20] sm:$0xf]
      %v225 = vld [vmem:[%s202 + $0x24] sm:$0xf]
      %v226 = vld [vmem:[%s202 + $0x28] sm:$0xf]
      %v227 = vld [vmem:[%s202 + $0x2c] sm:$0xf]
      %v228 = vld [vmem:[%s202 + $0x30] sm:$0xf]
      %v229 = vld [vmem:[%s202 + $0x34] sm:$0xf]
      %v230 = vld [vmem:[%s202 + $0x38] sm:$0xf]
      %v231 = vld [vmem:[%s202 + $0x3c] sm:$0xf]
      %v232 = vld [vmem:[%s202 + $0x40] sm:$0xf]
      %v233 = vld [vmem:[%s202 + $0x44] sm:$0xf]
      %v234 = vld [vmem:[%s202 + $0x48] sm:$0xf]
      %v235 = vld [vmem:[%s202 + $0x4c] sm:$0xf]
      %v236 = vld [vmem:[%s202 + $0x50] sm:$0xf]
      %v237 = vld [vmem:[%s202 + $0x54] sm:$0xf]
      %v238 = vld [vmem:[%s202 + $0x58] sm:$0xf]
      %v239 = vld [vmem:[%s202 + $0x5c] sm:$0xf]
      %v240 = vld [vmem:[%s202 + $0x60] sm:$0xf]
      %v241 = vld [vmem:[%s202 + $0x64] sm:$0xf]
      %v242 = vld [vmem:[%s202 + $0x68] sm:$0xf]
      %v243 = vld [vmem:[%s202 + $0x6c] sm:$0xf]
      %v244 = vld [vmem:[%s202 + $0x70] sm:$0xf]
      %v245 = vld [vmem:[%s202 + $0x74] sm:$0xf]
      %v246 = vld [vmem:[%s202 + $0x78] sm:$0xf]
      %v247 = vld [vmem:[%s202 + $0x7c] sm:$0xf]
      %v248 = vld [vmem:[%s1] sm:$0xf]
      %v249 = vld [vmem:[%s1 + $0x4] sm:$0xf]
      %v250 = vld [vmem:[%s1 + $0x8] sm:$0xf]
      %v251 = vld [vmem:[%s1 + $0xc] sm:$0xf]
      %v252 = vld [vmem:[%s1 + $0x10] sm:$0xf]
      %v253 = vld [vmem:[%s1 + $0x14] sm:$0xf]
      %v254 = vld [vmem:[%s1 + $0x18] sm:$0xf]
      %v255 = vld [vmem:[%s1 + $0x1c] sm:$0xf]
      %v256 = vld [vmem:[%s1 + $0x20] sm:$0xf]
      %v257 = vld [vmem:[%s1 + $0x24] sm:$0xf]
      %v258 = vld [vmem:[%s1 + $0x28] sm:$0xf]
      %v259 = vld [vmem:[%s1 + $0x2c] sm:$0xf]
      %v260 = vld [vmem:[%s1 + $0x30] sm:$0xf]
      %v261 = vld [vmem:[%s1 + $0x34] sm:$0xf]
      %v262 = vld [vmem:[%s1 + $0x38] sm:$0xf]
      %v263 = vld [vmem:[%s1 + $0x3c] sm:$0xf]
      %v264 = vld [vmem:[%s2] sm:$0x1]
      %v266 = vlaneseq
      %v267 = vshrl.u32 %v266, 7
      %v268 = vsub.s32 0, %v267
      %v269 = vrot.slane %v264, %v268
      %v303 = vunpack.c.l.b16 %v216
      %v304 = vunpack.c.l.b16 %v217
      %v305 = vunpack.c.l.b16 %v218
      %v306 = vunpack.c.l.b16 %v219
      %v307 = vunpack.c.l.b16 %v220
      %v308 = vunpack.c.l.b16 %v221
      %v309 = vunpack.c.l.b16 %v222
      %v310 = vunpack.c.l.b16 %v223
      %v311 = vunpack.c.l.b16 %v224
      %v312 = vunpack.c.l.b16 %v225
      %v313 = vunpack.c.l.b16 %v226
      %v314 = vunpack.c.l.b16 %v227
      %v315 = vunpack.c.l.b16 %v228
      %v316 = vunpack.c.l.b16 %v229
      %v317 = vunpack.c.l.b16 %v230
      %v318 = vunpack.c.l.b16 %v231
      %v319 = vunpack.c.l.b16 %v232
      %v320 = vunpack.c.l.b16 %v233
      %v321 = vunpack.c.l.b16 %v234
      %v322 = vunpack.c.l.b16 %v235
      %v323 = vunpack.c.l.b16 %v236
      %v324 = vunpack.c.l.b16 %v237
      %v325 = vunpack.c.l.b16 %v238
      %v326 = vunpack.c.l.b16 %v239
      %v327 = vunpack.c.l.b16 %v240
      %v328 = vunpack.c.l.b16 %v241
      %v329 = vunpack.c.l.b16 %v242
      %v330 = vunpack.c.l.b16 %v243
      %v331 = vunpack.c.l.b16 %v244
      %v332 = vunpack.c.l.b16 %v245
      %v333 = vunpack.c.l.b16 %v246
      %v334 = vunpack.c.l.b16 %v247
      %v335 = vpack.c.b16 %v304, %v303
      %v336 = vpack.c.b16 %v306, %v305
      %v337 = vpack.c.b16 %v308, %v307
      %v338 = vpack.c.b16 %v310, %v309
      %v339 = vpack.c.b16 %v312, %v311
      %v340 = vpack.c.b16 %v314, %v313
      %v341 = vpack.c.b16 %v316, %v315
      %v342 = vpack.c.b16 %v318, %v317
      %v343 = vpack.c.b16 %v320, %v319
      %v344 = vpack.c.b16 %v322, %v321
      %v345 = vpack.c.b16 %v324, %v323
      %v346 = vpack.c.b16 %v326, %v325
      %v347 = vpack.c.b16 %v328, %v327
      %v348 = vpack.c.b16 %v330, %v329
      %v349 = vpack.c.b16 %v332, %v331
      %v350 = vpack.c.b16 %v334, %v333
      %v383 = vunpack.c.l.b16 %v248
      %v384 = vunpack.c.l.b16 %v249
      %v385 = vunpack.c.l.b16 %v250
      %v386 = vunpack.c.l.b16 %v251
      %v387 = vunpack.c.l.b16 %v252
      %v388 = vunpack.c.l.b16 %v253
      %v389 = vunpack.c.l.b16 %v254
      %v390 = vunpack.c.l.b16 %v255
      %v391 = vunpack.c.l.b16 %v256
      %v392 = vunpack.c.l.b16 %v257
      %v393 = vunpack.c.l.b16 %v258
      %v394 = vunpack.c.l.b16 %v259
      %v395 = vunpack.c.l.b16 %v260
      %v396 = vunpack.c.l.b16 %v261
      %v397 = vunpack.c.l.b16 %v262
      %v398 = vunpack.c.l.b16 %v263
      %v399 = vpack.c.b16 %v384, %v383
      %v400 = vpack.c.b16 %v386, %v385
      %v401 = vpack.c.b16 %v388, %v387
      %v402 = vpack.c.b16 %v390, %v389
      %v403 = vpack.c.b16 %v392, %v391
      %v404 = vpack.c.b16 %v394, %v393
      %v405 = vpack.c.b16 %v396, %v395
      %v406 = vpack.c.b16 %v398, %v397
      %415 = vmatprep.subr.bf16.mxu0 0
      %416 = vmatpush1.bf16.msra.mxu0 %v399
      %417 = vmatprep.subr.bf16.mxu0 0
      %418 = vmatpush1.bf16.msra.mxu0 %v400
      %419 = vmatprep.subr.bf16.mxu0 0
      %420 = vmatpush1.bf16.msra.mxu0 %v401
      %421 = vmatprep.subr.bf16.mxu0 0
      %422 = vmatpush1.bf16.msra.mxu0 %v402
      %423 = vmatprep.subr.bf16.mxu0 0
      %424 = vmatpush1.bf16.msra.mxu0 %v403
      %425 = vmatprep.subr.bf16.mxu0 0
      %426 = vmatpush1.bf16.msra.mxu0 %v404
      %427 = vmatprep.subr.bf16.mxu0 0
      %428 = vmatpush1.bf16.msra.mxu0 %v405
      %429 = vmatprep.subr.bf16.mxu0 0
      %430 = vmatpush1.bf16.msra.mxu0 %v406
      %431 = vmatprep.subr.bf16.mxu0 0
      %432 = vmatpush1.bf16.msra.mxu0 0
      %433 = vmatprep.subr.bf16.mxu0 0
      %434 = vmatpush1.bf16.msra.mxu0 0
      %435 = vmatprep.subr.bf16.mxu0 0
      %436 = vmatpush1.bf16.msra.mxu0 0
      %437 = vmatprep.subr.bf16.mxu0 0
      %438 = vmatpush1.bf16.msra.mxu0 0
      %439 = vmatprep.subr.bf16.mxu0 0
      %440 = vmatpush1.bf16.msra.mxu0 0
      %441 = vmatprep.subr.bf16.mxu0 0
      %442 = vmatpush1.bf16.msra.mxu0 0
      %443 = vmatprep.subr.bf16.mxu0 0
      %444 = vmatpush1.bf16.msra.mxu0 0
      %445 = vmatprep.subr.bf16.mxu0 0
      %446 = vmatpush1.bf16.msra.mxu0 0
      %447 = vmatprep.mubr.bf16.mxu0 0
      %448 = vmatmul.mubr.bf16.gmra.mrb[0].mxu0 %v335
      %v449 = vpop.f32.mrb[0].mxu0
      %v450 = vadd.f32 %v269, %v449
      %v451 = vpop.f32.mrb[0].mxu0
      %v452 = vpop.f32.mrb[0].mxu0
      %v453 = vadd.f32 %v269, %v452
      %v454 = vpop.f32.mrb[0].mxu0
      %455 = vmatprep.mubr.bf16.mxu0 0
      %456 = vmatmul.mubr.bf16.gmra.mrb[0].mxu0 %v336
      %v457 = vpop.f32.mrb[0].mxu0
      %v458 = vadd.f32 %v269, %v457
      %v459 = vpop.f32.mrb[0].mxu0
      %v460 = vpop.f32.mrb[0].mxu0
      %v461 = vadd.f32 %v269, %v460
      %v462 = vpop.f32.mrb[0].mxu0
      %463 = vmatprep.mubr.bf16.mxu0 0
      %464 = vmatmul.mubr.bf16.gmra.mrb[0].mxu0 %v337
      %v465 = vpop.f32.mrb[0].mxu0
      %v466 = vadd.f32 %v269, %v465
      %v467 = vpop.f32.mrb[0].mxu0
      %v468 = vpop.f32.mrb[0].mxu0
      %v469 = vadd.f32 %v269, %v468
      %v470 = vpop.f32.mrb[0].mxu0
      %471 = vmatprep.mubr.bf16.mxu0 0
      %472 = vmatmul.mubr.bf16.gmra.mrb[0].mxu0 %v338
      %v473 = vpop.f32.mrb[0].mxu0
      %v474 = vadd.f32 %v269, %v473
      %v475 = vpop.f32.mrb[0].mxu0
      %v476 = vpop.f32.mrb[0].mxu0
      %v477 = vadd.f32 %v269, %v476
      %v478 = vpop.f32.mrb[0].mxu0
      %479 = vmatprep.mubr.bf16.mxu0 0
      %480 = vmatmul.mubr.bf16.gmra.mrb[0].mxu0 %v339
      %v481 = vpop.f32.mrb[0].mxu0
      %v482 = vadd.f32 %v269, %v481
      %v483 = vpop.f32.mrb[0].mxu0
      %v484 = vpop.f32.mrb[0].mxu0
      %v485 = vadd.f32 %v269, %v484
      %v486 = vpop.f32.mrb[0].mxu0
      %487 = vmatprep.mubr.bf16.mxu0 0
      %488 = vmatmul.mubr.bf16.gmra.mrb[0].mxu0 %v340
      %v489 = vpop.f32.mrb[0].mxu0
      %v490 = vadd.f32 %v269, %v489
      %v491 = vpop.f32.mrb[0].mxu0
      %v492 = vpop.f32.mrb[0].mxu0
      %v493 = vadd.f32 %v269, %v492
      %v494 = vpop.f32.mrb[0].mxu0
      %495 = vmatprep.mubr.bf16.mxu0 0
      %496 = vmatmul.mubr.bf16.gmra.mrb[0].mxu0 %v341
      %v497 = vpop.f32.mrb[0].mxu0
      %v498 = vadd.f32 %v269, %v497
      %v499 = vpop.f32.mrb[0].mxu0
      %v500 = vpop.f32.mrb[0].mxu0
      %v501 = vadd.f32 %v269, %v500
      %v502 = vpop.f32.mrb[0].mxu0
      %503 = vmatprep.mubr.bf16.mxu0 0
      %504 = vmatmul.mubr.bf16.gmra.mrb[0].mxu0 %v342
      %v505 = vpop.f32.mrb[0].mxu0
      %v506 = vadd.f32 %v269, %v505
      %v507 = vpop.f32.mrb[0].mxu0
      %v508 = vpop.f32.mrb[0].mxu0
      %v509 = vadd.f32 %v269, %v508
      %v510 = vpop.f32.mrb[0].mxu0
      %511 = vmatprep.mubr.bf16.mxu0 0
      %512 = vmatmul.mubr.bf16.gmra.mrb[0].mxu0 %v343
      %v513 = vpop.f32.mrb[0].mxu0
      %v514 = vadd.f32 %v269, %v513
      %v515 = vpop.f32.mrb[0].mxu0
      %v516 = vpop.f32.mrb[0].mxu0
      %v517 = vadd.f32 %v269, %v516
      %v518 = vpop.f32.mrb[0].mxu0
      %519 = vmatprep.mubr.bf16.mxu0 0
      %520 = vmatmul.mubr.bf16.gmra.mrb[0].mxu0 %v344
      %v521 = vpop.f32.mrb[0].mxu0
      %v522 = vadd.f32 %v269, %v521
      %v523 = vpop.f32.mrb[0].mxu0
      %v524 = vpop.f32.mrb[0].mxu0
      %v525 = vadd.f32 %v269, %v524
      %v526 = vpop.f32.mrb[0].mxu0
      %527 = vmatprep.mubr.bf16.mxu0 0
      %528 = vmatmul.mubr.bf16.gmra.mrb[0].mxu0 %v345
      %v529 = vpop.f32.mrb[0].mxu0
      %v530 = vadd.f32 %v269, %v529
      %v531 = vpop.f32.mrb[0].mxu0
      %v532 = vpop.f32.mrb[0].mxu0
      %v533 = vadd.f32 %v269, %v532
      %v534 = vpop.f32.mrb[0].mxu0
      %535 = vmatprep.mubr.bf16.mxu0 0
      %536 = vmatmul.mubr.bf16.gmra.mrb[0].mxu0 %v346
      %v537 = vpop.f32.mrb[0].mxu0
      %v538 = vadd.f32 %v269, %v537
      %v539 = vpop.f32.mrb[0].mxu0
      %v540 = vpop.f32.mrb[0].mxu0
      %v541 = vadd.f32 %v269, %v540
      %v542 = vpop.f32.mrb[0].mxu0
      %543 = vmatprep.mubr.bf16.mxu0 0
      %544 = vmatmul.mubr.bf16.gmra.mrb[0].mxu0 %v347
      %v545 = vpop.f32.mrb[0].mxu0
      %v546 = vadd.f32 %v269, %v545
      %v547 = vpop.f32.mrb[0].mxu0
      %v548 = vpop.f32.mrb[0].mxu0
      %v549 = vadd.f32 %v269, %v548
      %v550 = vpop.f32.mrb[0].mxu0
      %551 = vmatprep.mubr.bf16.mxu0 0
      %552 = vmatmul.mubr.bf16.gmra.mrb[0].mxu0 %v348
      %v553 = vpop.f32.mrb[0].mxu0
      %v554 = vadd.f32 %v269, %v553
      %v555 = vpop.f32.mrb[0].mxu0
      %v556 = vpop.f32.mrb[0].mxu0
      %v557 = vadd.f32 %v269, %v556
      %v558 = vpop.f32.mrb[0].mxu0
      %559 = vmatprep.mubr.bf16.mxu0 0
      %560 = vmatmul.mubr.bf16.gmra.mrb[0].mxu0 %v349
      %v561 = vpop.f32.mrb[0].mxu0
      %v562 = vadd.f32 %v269, %v561
      %v563 = vpop.f32.mrb[0].mxu0
      %v564 = vpop.f32.mrb[0].mxu0
      %v565 = vadd.f32 %v269, %v564
      %v566 = vpop.f32.mrb[0].mxu0
      %567 = vmatprep.mubr.bf16.mxu0 0
      %568 = vmatmul.mubr.bf16.gmra.mrb[0].mxu0 %v350
      %v569 = vpop.f32.mrb[0].mxu0
      %v570 = vadd.f32 %v269, %v569
      %v571 = vpop.f32.mrb[0].mxu0
      %v572 = vpop.f32.mrb[0].mxu0
      %v573 = vadd.f32 %v269, %v572
      %v574 = vpop.f32.mrb[0].mxu0
      %575 = vdwg.mxu0
      %v576 = vxor.u32 %v450, 2147483648
      %v577 = vxor.u32 %v453, 2147483648
      %v578 = vxor.u32 %v458, 2147483648
      %v579 = vxor.u32 %v461, 2147483648
      %v580 = vxor.u32 %v466, 2147483648
      %v581 = vxor.u32 %v469, 2147483648
      %v582 = vxor.u32 %v474, 2147483648
      %v583 = vxor.u32 %v477, 2147483648
      %v584 = vxor.u32 %v482, 2147483648
      %v585 = vxor.u32 %v485, 2147483648
      %v586 = vxor.u32 %v490, 2147483648
      %v587 = vxor.u32 %v493, 2147483648
      %v588 = vxor.u32 %v498, 2147483648
      %v589 = vxor.u32 %v501, 2147483648
      %v590 = vxor.u32 %v506, 2147483648
      %v591 = vxor.u32 %v509, 2147483648
      %v592 = vxor.u32 %v514, 2147483648
      %v593 = vxor.u32 %v517, 2147483648
      %v594 = vxor.u32 %v522, 2147483648
      %v595 = vxor.u32 %v525, 2147483648
      %v596 = vxor.u32 %v530, 2147483648
      %v597 = vxor.u32 %v533, 2147483648
      %v598 = vxor.u32 %v538, 2147483648
      %v599 = vxor.u32 %v541, 2147483648
      %v600 = vxor.u32 %v546, 2147483648
      %v601 = vxor.u32 %v549, 2147483648
      %v602 = vxor.u32 %v554, 2147483648
      %v603 = vxor.u32 %v557, 2147483648
      %v604 = vxor.u32 %v562, 2147483648
      %v605 = vxor.u32 %v565, 2147483648
      %v606 = vxor.u32 %v570, 2147483648
      %v607 = vxor.u32 %v573, 2147483648
      %v608 = vmul.f32 %v576, 1.442695
      %v609 = vpow.pop %v608
      %v610 = vmul.f32 %v577, 1.442695
      %v611 = vpow.pop %v610
      %v612 = vmul.f32 %v578, 1.442695
      %v613 = vpow.pop %v612
      %v614 = vmul.f32 %v579, 1.442695
      %v615 = vpow.pop %v614
      %v616 = vmul.f32 %v580, 1.442695
      %v617 = vpow.pop %v616
      %v618 = vmul.f32 %v581, 1.442695
      %v619 = vpow.pop %v618
      %v620 = vmul.f32 %v582, 1.442695
      %v621 = vpow.pop %v620
      %v622 = vmul.f32 %v583, 1.442695
      %v623 = vpow.pop %v622
      %v624 = vmul.f32 %v584, 1.442695
      %v625 = vpow.pop %v624
      %v626 = vmul.f32 %v585, 1.442695
      %v627 = vpow.pop %v626
      %v628 = vmul.f32 %v586, 1.442695
      %v629 = vpow.pop %v628
      %v630 = vmul.f32 %v587, 1.442695
      %v631 = vpow.pop %v630
      %v632 = vmul.f32 %v588, 1.442695
      %v633 = vpow.pop %v632
      %v634 = vmul.f32 %v589, 1.442695
      %v635 = vpow.pop %v634
      %v636 = vmul.f32 %v590, 1.442695
      %v637 = vpow.pop %v636
      %v638 = vmul.f32 %v591, 1.442695
      %v639 = vpow.pop %v638
      %v640 = vmul.f32 %v592, 1.442695
      %v641 = vpow.pop %v640
      %v642 = vmul.f32 %v593, 1.442695
      %v643 = vpow.pop %v642
      %v644 = vmul.f32 %v594, 1.442695
      %v645 = vpow.pop %v644
      %v646 = vmul.f32 %v595, 1.442695
      %v647 = vpow.pop %v646
      %v648 = vmul.f32 %v596, 1.442695
      %v649 = vpow.pop %v648
      %v650 = vmul.f32 %v597, 1.442695
      %v651 = vpow.pop %v650
      %v652 = vmul.f32 %v598, 1.442695
      %v653 = vpow.pop %v652
      %v654 = vmul.f32 %v599, 1.442695
      %v655 = vpow.pop %v654
      %v656 = vmul.f32 %v600, 1.442695
      %v657 = vpow.pop %v656
      %v658 = vmul.f32 %v601, 1.442695
      %v659 = vpow.pop %v658
      %v660 = vmul.f32 %v602, 1.442695
      %v661 = vpow.pop %v660
      %v662 = vmul.f32 %v603, 1.442695
      %v663 = vpow.pop %v662
      %v664 = vmul.f32 %v604, 1.442695
      %v665 = vpow.pop %v664
      %v666 = vmul.f32 %v605, 1.442695
      %v667 = vpow.pop %v666
      %v668 = vmul.f32 %v606, 1.442695
      %v669 = vpow.pop %v668
      %v670 = vmul.f32 %v607, 1.442695
      %v671 = vpow.pop %v670
      %v672 = vadd.f32 %v609, 1.0
      %v673 = vadd.f32 %v611, 1.0
      %v674 = vadd.f32 %v613, 1.0
      %v675 = vadd.f32 %v615, 1.0
      %v676 = vadd.f32 %v617, 1.0
      %v677 = vadd.f32 %v619, 1.0
      %v678 = vadd.f32 %v621, 1.0
      %v679 = vadd.f32 %v623, 1.0
      %v680 = vadd.f32 %v625, 1.0
      %v681 = vadd.f32 %v627, 1.0
      %v682 = vadd.f32 %v629, 1.0
      %v683 = vadd.f32 %v631, 1.0
      %v684 = vadd.f32 %v633, 1.0
      %v685 = vadd.f32 %v635, 1.0
      %v686 = vadd.f32 %v637, 1.0
      %v687 = vadd.f32 %v639, 1.0
      %v688 = vadd.f32 %v641, 1.0
      %v689 = vadd.f32 %v643, 1.0
      %v690 = vadd.f32 %v645, 1.0
      %v691 = vadd.f32 %v647, 1.0
      %v692 = vadd.f32 %v649, 1.0
      %v693 = vadd.f32 %v651, 1.0
      %v694 = vadd.f32 %v653, 1.0
      %v695 = vadd.f32 %v655, 1.0
      %v696 = vadd.f32 %v657, 1.0
      %v697 = vadd.f32 %v659, 1.0
      %v698 = vadd.f32 %v661, 1.0
      %v699 = vadd.f32 %v663, 1.0
      %v700 = vadd.f32 %v665, 1.0
      %v701 = vadd.f32 %v667, 1.0
      %v702 = vadd.f32 %v669, 1.0
      %v703 = vadd.f32 %v671, 1.0
      %v704 = vrcp.pop %v672
      %v705 = vmul.f32 1.0, %v704
      %v706 = vrcp.pop %v673
      %v707 = vmul.f32 1.0, %v706
      %v708 = vrcp.pop %v674
      %v709 = vmul.f32 1.0, %v708
      %v710 = vrcp.pop %v675
      %v711 = vmul.f32 1.0, %v710
      %v712 = vrcp.pop %v676
      %v713 = vmul.f32 1.0, %v712
      %v714 = vrcp.pop %v677
      %v715 = vmul.f32 1.0, %v714
      %v716 = vrcp.pop %v678
      %v717 = vmul.f32 1.0, %v716
      %v718 = vrcp.pop %v679
      %v719 = vmul.f32 1.0, %v718
      %v720 = vrcp.pop %v680
      %v721 = vmul.f32 1.0, %v720
      %v722 = vrcp.pop %v681
      %v723 = vmul.f32 1.0, %v722
      %v724 = vrcp.pop %v682
      %v725 = vmul.f32 1.0, %v724
      %v726 = vrcp.pop %v683
      %v727 = vmul.f32 1.0, %v726
      %v728 = vrcp.pop %v684
      %v729 = vmul.f32 1.0, %v728
      %v730 = vrcp.pop %v685
      %v731 = vmul.f32 1.0, %v730
      %v732 = vrcp.pop %v686
      %v733 = vmul.f32 1.0, %v732
      %v734 = vrcp.pop %v687
      %v735 = vmul.f32 1.0, %v734
      %v736 = vrcp.pop %v688
      %v737 = vmul.f32 1.0, %v736
      %v738 = vrcp.pop %v689
      %v739 = vmul.f32 1.0, %v738
      %v740 = vrcp.pop %v690
      %v741 = vmul.f32 1.0, %v740
      %v742 = vrcp.pop %v691
      %v743 = vmul.f32 1.0, %v742
      %v744 = vrcp.pop %v692
      %v745 = vmul.f32 1.0, %v744
      %v746 = vrcp.pop %v693
      %v747 = vmul.f32 1.0, %v746
      %v748 = vrcp.pop %v694
      %v749 = vmul.f32 1.0, %v748
      %v750 = vrcp.pop %v695
      %v751 = vmul.f32 1.0, %v750
      %v752 = vrcp.pop %v696
      %v753 = vmul.f32 1.0, %v752
      %v754 = vrcp.pop %v697
      %v755 = vmul.f32 1.0, %v754
      %v756 = vrcp.pop %v698
      %v757 = vmul.f32 1.0, %v756
      %v758 = vrcp.pop %v699
      %v759 = vmul.f32 1.0, %v758
      %v760 = vrcp.pop %v700
      %v761 = vmul.f32 1.0, %v760
      %v762 = vrcp.pop %v701
      %v763 = vmul.f32 1.0, %v762
      %v764 = vrcp.pop %v702
      %v765 = vmul.f32 1.0, %v764
      %v766 = vrcp.pop %v703
      %v767 = vmul.f32 1.0, %v766
      %v768 = vmul.f32 %v450, %v705
      %v769 = vmul.f32 %v453, %v707
      %v770 = vmul.f32 %v458, %v709
      %v771 = vmul.f32 %v461, %v711
      %v772 = vmul.f32 %v466, %v713
      %v773 = vmul.f32 %v469, %v715
      %v774 = vmul.f32 %v474, %v717
      %v775 = vmul.f32 %v477, %v719
      %v776 = vmul.f32 %v482, %v721
      %v777 = vmul.f32 %v485, %v723
      %v778 = vmul.f32 %v490, %v725
      %v779 = vmul.f32 %v493, %v727
      %v780 = vmul.f32 %v498, %v729
      %v781 = vmul.f32 %v501, %v731
      %v782 = vmul.f32 %v506, %v733
      %v783 = vmul.f32 %v509, %v735
      %v784 = vmul.f32 %v514, %v737
      %v785 = vmul.f32 %v517, %v739
      %v786 = vmul.f32 %v522, %v741
      %v787 = vmul.f32 %v525, %v743
      %v788 = vmul.f32 %v530, %v745
      %v789 = vmul.f32 %v533, %v747
      %v790 = vmul.f32 %v538, %v749
      %v791 = vmul.f32 %v541, %v751
      %v792 = vmul.f32 %v546, %v753
      %v793 = vmul.f32 %v549, %v755
      %v794 = vmul.f32 %v554, %v757
      %v795 = vmul.f32 %v557, %v759
      %v796 = vmul.f32 %v562, %v761
      %v797 = vmul.f32 %v565, %v763
      %v798 = vmul.f32 %v570, %v765
      %v799 = vmul.f32 %v573, %v767
      %v800 = vpack.c.bf16 %v769, %v768
      %v801 = vpack.c.bf16 %v771, %v770
      %v802 = vpack.c.bf16 %v773, %v772
      %v803 = vpack.c.bf16 %v775, %v774
      %v804 = vpack.c.bf16 %v777, %v776
      %v805 = vpack.c.bf16 %v779, %v778
      %v806 = vpack.c.bf16 %v781, %v780
      %v807 = vpack.c.bf16 %v783, %v782
      %v808 = vpack.c.bf16 %v785, %v784
      %v809 = vpack.c.bf16 %v787, %v786
      %v810 = vpack.c.bf16 %v789, %v788
      %v811 = vpack.c.bf16 %v791, %v790
      %v812 = vpack.c.bf16 %v793, %v792
      %v813 = vpack.c.bf16 %v795, %v794
      %v814 = vpack.c.bf16 %v797, %v796
      %v815 = vpack.c.bf16 %v799, %v798
      %v832 = vunpack.c.l.b16 %v800
      %v833 = vunpack.c.h.b16 %v800
      %v834 = vunpack.c.l.b16 %v801
      %v835 = vunpack.c.h.b16 %v801
      %v836 = vunpack.c.l.b16 %v802
      %v837 = vunpack.c.h.b16 %v802
      %v838 = vunpack.c.l.b16 %v803
      %v839 = vunpack.c.h.b16 %v803
      %v840 = vunpack.c.l.b16 %v804
      %v841 = vunpack.c.h.b16 %v804
      %v842 = vunpack.c.l.b16 %v805
      %v843 = vunpack.c.h.b16 %v805
      %v844 = vunpack.c.l.b16 %v806
      %v845 = vunpack.c.h.b16 %v806
      %v846 = vunpack.c.l.b16 %v807
      %v847 = vunpack.c.h.b16 %v807
      %v848 = vunpack.c.l.b16 %v808
      %v849 = vunpack.c.h.b16 %v808
      %v850 = vunpack.c.l.b16 %v809
      %v851 = vunpack.c.h.b16 %v809
      %v852 = vunpack.c.l.b16 %v810
      %v853 = vunpack.c.h.b16 %v810
      %v854 = vunpack.c.l.b16 %v811
      %v855 = vunpack.c.h.b16 %v811
      %v856 = vunpack.c.l.b16 %v812
      %v857 = vunpack.c.h.b16 %v812
      %v858 = vunpack.c.l.b16 %v813
      %v859 = vunpack.c.h.b16 %v813
      %v860 = vunpack.c.l.b16 %v814
      %v861 = vunpack.c.h.b16 %v814
      %v862 = vunpack.c.l.b16 %v815
      %v863 = vunpack.c.h.b16 %v815
      %v864 = vpack.c.b16 %v832, %v832
      %v865 = vpack.c.b16 %v833, %v833
      %v866 = vpack.c.b16 %v834, %v834
      %v867 = vpack.c.b16 %v835, %v835
      %v868 = vpack.c.b16 %v836, %v836
      %v869 = vpack.c.b16 %v837, %v837
      %v870 = vpack.c.b16 %v838, %v838
      %v871 = vpack.c.b16 %v839, %v839
      %v872 = vpack.c.b16 %v840, %v840
      %v873 = vpack.c.b16 %v841, %v841
      %v874 = vpack.c.b16 %v842, %v842
      %v875 = vpack.c.b16 %v843, %v843
      %v876 = vpack.c.b16 %v844, %v844
      %v877 = vpack.c.b16 %v845, %v845
      %v878 = vpack.c.b16 %v846, %v846
      %v879 = vpack.c.b16 %v847, %v847
      %v880 = vpack.c.b16 %v848, %v848
      %v881 = vpack.c.b16 %v849, %v849
      %v882 = vpack.c.b16 %v850, %v850
      %v883 = vpack.c.b16 %v851, %v851
      %v884 = vpack.c.b16 %v852, %v852
      %v885 = vpack.c.b16 %v853, %v853
      %v886 = vpack.c.b16 %v854, %v854
      %v887 = vpack.c.b16 %v855, %v855
      %v888 = vpack.c.b16 %v856, %v856
      %v889 = vpack.c.b16 %v857, %v857
      %v890 = vpack.c.b16 %v858, %v858
      %v891 = vpack.c.b16 %v859, %v859
      %v892 = vpack.c.b16 %v860, %v860
      %v893 = vpack.c.b16 %v861, %v861
      %v894 = vpack.c.b16 %v862, %v862
      %v895 = vpack.c.b16 %v863, %v863
      %928 = vst [vmem:[%s213] sm:$0xf] %v864
      %929 = vst [vmem:[%s213 + $0x4] sm:$0xf] %v865
      %930 = vst [vmem:[%s213 + $0x8] sm:$0xf] %v866
      %931 = vst [vmem:[%s213 + $0xc] sm:$0xf] %v867
      %932 = vst [vmem:[%s213 + $0x10] sm:$0xf] %v868
      %933 = vst [vmem:[%s213 + $0x14] sm:$0xf] %v869
      %934 = vst [vmem:[%s213 + $0x18] sm:$0xf] %v870
      %935 = vst [vmem:[%s213 + $0x1c] sm:$0xf] %v871
      %936 = vst [vmem:[%s213 + $0x20] sm:$0xf] %v872
      %937 = vst [vmem:[%s213 + $0x24] sm:$0xf] %v873
      %938 = vst [vmem:[%s213 + $0x28] sm:$0xf] %v874
      %939 = vst [vmem:[%s213 + $0x2c] sm:$0xf] %v875
      %940 = vst [vmem:[%s213 + $0x30] sm:$0xf] %v876
      %941 = vst [vmem:[%s213 + $0x34] sm:$0xf] %v877
      %942 = vst [vmem:[%s213 + $0x38] sm:$0xf] %v878
      %943 = vst [vmem:[%s213 + $0x3c] sm:$0xf] %v879
      %944 = vst [vmem:[%s213 + $0x40] sm:$0xf] %v880
      %945 = vst [vmem:[%s213 + $0x44] sm:$0xf] %v881
      %946 = vst [vmem:[%s213 + $0x48] sm:$0xf] %v882
      %947 = vst [vmem:[%s213 + $0x4c] sm:$0xf] %v883
      %948 = vst [vmem:[%s213 + $0x50] sm:$0xf] %v884
      %949 = vst [vmem:[%s213 + $0x54] sm:$0xf] %v885
      %950 = vst [vmem:[%s213 + $0x58] sm:$0xf] %v886
      %951 = vst [vmem:[%s213 + $0x5c] sm:$0xf] %v887
      %952 = vst [vmem:[%s213 + $0x60] sm:$0xf] %v888
      %953 = vst [vmem:[%s213 + $0x64] sm:$0xf] %v889
      %954 = vst [vmem:[%s213 + $0x68] sm:$0xf] %v890
      %955 = vst [vmem:[%s213 + $0x6c] sm:$0xf] %v891
      %956 = vst [vmem:[%s213 + $0x70] sm:$0xf] %v892
      %957 = vst [vmem:[%s213 + $0x74] sm:$0xf] %v893
      %958 = vst [vmem:[%s213 + $0x78] sm:$0xf] %v894
      %959 = vst [vmem:[%s213 + $0x7c] sm:$0xf] %v895
      %s960 = smul.u32 16, %s19
      %p961 = scmp.lt.s32.totalorder %s18, 1
      %s962 = scalar_select %p961, %s18, 1
      %p963 = scmp.lt.s32.totalorder %s960, 15
      %s964 = scalar_select %p963, %s960, 15
      %s965 = smul.addr %s964, 2
      %s966 = smul.addr %s962, 32
      %s967 = sadd.s32 %s965, %s966
      %s968 = smul.addr %s967, 4
      %s969 = scalar_lea.vmem %s3, %s968
      // Predicated region
      $region33: #{bottleneck_forward.2} parent=31 // pred_check
        %p970 = pneg %p116
      $region34: #{bottleneck_forward.2} parent=31 // pred_check_branch
        %972 = sbr.rel (%p970) target = $region36
      $region35: #{bottleneck_forward.2} parent=31 // pred_region
        %s973 = smul.u32 16, %s19
      $region36: #{bottleneck_forward.2} parent=31 // pred_fallthru
        _
    $region32: #{bottleneck_forward.2} parent=5 // pred_fallthru
      _
    %p974 = scmp.le.s32.totalorder 2, %s9
    // Predicated region
    $region37: #{bottleneck_forward.2} parent=5 // pred_check
      %p975 = pneg %p974
    $region38: #{bottleneck_forward.2} parent=5 // pred_check_branch
      %977 = sbr.rel (%p975) target = $region40
    $region39: #{bottleneck_forward.2} parent=5 // pred_region
      %s978 = ssub.s32 %s9, 2
      // Predicated region
      $region41: #{bottleneck_forward.2} parent=39 // pred_check
        %p979 = pneg %p122
      $region42: #{bottleneck_forward.2} parent=39 // pred_check_branch
        %981 = sbr.rel (%p979) target = $region44
      $region43: #{bottleneck_forward.2} parent=39 // pred_region
        %s982 = smul.u32 16, %s21
        %p983 = scmp.lt.s32.totalorder %s20, 1
        %s984 = scalar_select %p983, %s20, 1
        %p985 = scmp.lt.s32.totalorder %s982, 15
        %s986 = scalar_select %p985, %s982, 15
        %s987 = smul.addr %s986, 2
        %s988 = smul.addr %s984, 32
        %s989 = sadd.s32 %s987, %s988
        %s990 = smul.addr %s989, 4
        %s991 = scalar_lea.vmem %s3, %s990
      $region44: #{bottleneck_forward.2} parent=39 // pred_fallthru
        _
    $region40: #{bottleneck_forward.2} parent=5 // pred_fallthru
      _
  $region6: #{bottleneck_forward.2} parent=0 // loop_footer
    %s13 = sadd.s32 1, %s9
  $region7: #{bottleneck_forward.2} parent=0 // loop_footer_branch
    %8 = sbr.rel target = $region3
  $region8: #{bottleneck_forward.2} parent=0 // loop_exit
    _

// kernel: bottleneck_forward.3
$region0: #{bottleneck_forward.3}
  #allocation0 [shape = 'u32[]', space=smem, size = 0x4, offset = 0x4, fixed_abs, tag = 'smem constant byte address 0x4 - core index']
  #allocation1 [shape = 'u32[144,128]{1,0:T(1,128)}', space=vmem, size = 0x12000, scoped, tag = 'internal scratch']
  %s0 = inlined_call_operand.vmem [shape: bf16[2,18,18,128], index: 0, kind: input, shape index: {}]
  %s1 = inlined_call_operand.vmem [shape: bf16[9,128,128], index: 1, kind: input, shape index: {}]
  %s2 = inlined_call_operand.vmem [shape: f32[1,128], index: 2, kind: input, shape index: {}]
  %s3 = inlined_call_operand.vmem [shape: f32[2,16,16,128], index: 3, kind: input, shape index: {}]
  %s4 = inlined_call_operand.vmem [shape: f32[2,16,16,128], index: 4, kind: output, shape index: {}]
  %s5 = sld [smem:[#allocation0]]
  $region49: #{bottleneck_forward.3} parent=0
    _
  %s7 = ssub.s32 1, %s5
  %s8 = scalar_select 0, %s7, %s5
  loop: start=0, step=1, limit=4
  $region2: #{bottleneck_forward.3} parent=0 // loop_pre_header
    _
  $region3: #{bottleneck_forward.3} parent=0 // loop_header
    %s10 = sphi 0, %s14
    %p11 = scmp.ge.s32.totalorder %s10, 4
    %s17 = sphi 0, %s29
    %s18 = sphi 0, %s25
    %s19 = sphi 0, %s17
    %s20 = sphi 0, %s18
    %s21 = sphi 0, %s19
    %s22 = sphi 0, %s20
    %s32 = sphi 0, %s34
    %s35 = sphi 0, %s32
    %s36 = sphi 0, %s35
    %s52 = sphi 0, %s36
    %s56 = sphi 0, %s56
    %s58 = sphi 0, %s56
    %s59 = sphi 0, %s58
    %s73 = sphi 0, %s59
    %s77 = sphi 0, %s77
    %s79 = sphi 0, %s77
    %s80 = sphi 0, %s79
    %s94 = sphi 0, %s80
    %s102 = sphi 0, %s104
    %s105 = sphi 0, %s102
    %s106 = sphi 0, %s105
    %s122 = sphi 0, %s106
    %s130 = sphi 0, %s132
    %s133 = sphi 0, %s130
    %s134 = sphi 0, %s133
    %s150 = sphi 0, %s134
  $region4: #{bottleneck_forward.3} parent=0 // loop_header_branch
    %13 = sbr.rel (%p11) target = $region8
  $region5: #{bottleneck_forward.3} parent=0 // loop_body
    %s15 = ssub.s32 %s10, 1
    %s16 = ssub.s32 %s10, 2
    %s23 = sadd.s32 1, %s18
    %p24 = scmp.ge.s32.totalorder %s23, 1
    %s25 = scalar_select %p24, 0, %s23
    %s26 = sadd.s32 1, %s17
    %s27 = scalar_select %p24, %s26, %s17
    %p28 = scmp.ge.s32.totalorder %s27, 2
    %s29 = scalar_select %p28, 0, %s27
    %s30 = ssub.s32 %s17, %s29
    %p31 = scmp.eq.s32.totalorder %s30, 0
    %s33 = sadd.s32 %s32, 1
    %s34 = scalar_select %p31, %s32, %s33
    %p37 = pneg %p31
    %p38 = scmp.eq.s32.totalorder %s10, 1
    %p39 = por %p37, %p38
    %p40 = scmp.ne.s32.totalorder %s32, %s35
    %p41 = scmp.eq.s32.totalorder %s10, 0
    %p42 = por %p40, %p41
    %p43 = scmp.ne.s32.totalorder %s32, %s35
    %p44 = scmp.eq.s32.totalorder %s15, 1
    %p45 = por %p43, %p44
    %p46 = scmp.ne.s32.totalorder %s35, %s36
    %p47 = scmp.eq.s32.totalorder %s15, 0
    %p48 = por %p46, %p47
    %p49 = scmp.ne.s32.totalorder %s35, %s36
    %p50 = scmp.eq.s32.totalorder %s16, 1
    %p51 = por %p49, %p50
    %p53 = scmp.ne.s32.totalorder %s36, %s52
    %p54 = scmp.eq.s32.totalorder %s16, 0
    %p55 = por %p53, %p54
    %s57 = sadd.s32 %s56, 1
    %p60 = scmp.eq.s32.totalorder %s10, 1
    %p61 = scmp.ne.s32.totalorder %s56, %s58
    %p62 = scmp.eq.s32.totalorder %s10, 0
    %p63 = por %p61, %p62
    %p64 = scmp.ne.s32.totalorder %s56, %s58
    %p65 = scmp.eq.s32.totalorder %s15, 1
    %p66 = por %p64, %p65
    %p67 = scmp.ne.s32.totalorder %s58, %s59
    %p68 = scmp.eq.s32.totalorder %s15, 0
    %p69 = por %p67, %p68
    %p70 = scmp.ne.s32.totalorder %s58, %s59
    %p71 = scmp.eq.s32.totalorder %s16, 1
    %p72 = por %p70, %p71
    %p74 = scmp.ne.s32.totalorder %s59, %s73
    %p75 = scmp.eq.s32.totalorder %s16, 0
    %p76 = por %p74, %p75
    %s78 = sadd.s32 %s77, 1
    %p81 = scmp.eq.s32.totalorder %s10, 1
    %p82 = scmp.ne.s32.totalorder %s77, %s79
    %p83 = scmp.eq.s32.totalorder %s10, 0
    %p84 = por %p82, %p83
    %p85 = scmp.ne.s32.totalorder %s77, %s79
    %p86 = scmp.eq.s32.totalorder %s15, 1
    %p87 = por %p85, %p86
    %p88 = scmp.ne.s32.totalorder %s79, %s80
    %p89 = scmp.eq.s32.totalorder %s15, 0
    %p90 = por %p88, %p89
    %p91 = scmp.ne.s32.totalorder %s79, %s80
    %p92 = scmp.eq.s32.totalorder %s16, 1
    %p93 = por %p91, %p92
    %p95 = scmp.ne.s32.totalorder %s80, %s94
    %p96 = scmp.eq.s32.totalorder %s16, 0
    %p97 = por %p95, %p96
    %s98 = ssub.s32 %s17, %s29
    %s99 = ssub.s32 %s18, %s25
    %s100 = sor.u32 %s98, %s99
    %p101 = scmp.eq.s32.totalorder %s100, 0
    %s103 = sadd.s32 %s102, 1
    %s104 = scalar_select %p101, %s102, %s103
    %p107 = pneg %p101
    %p108 = scmp.eq.s32.totalorder %s10, 1
    %p109 = por %p107, %p108
    %p110 = scmp.ne.s32.totalorder %s102, %s105
    %p111 = scmp.eq.s32.totalorder %s10, 0
    %p112 = por %p110, %p111
    %p113 = scmp.ne.s32.totalorder %s102, %s105
    %p114 = scmp.eq.s32.totalorder %s15, 1
    %p115 = por %p113, %p114
    %p116 = scmp.ne.s32.totalorder %s105, %s106
    %p117 = scmp.eq.s32.totalorder %s15, 0
    %p118 = por %p116, %p117
    %p119 = scmp.ne.s32.totalorder %s105, %s106
    %p120 = scmp.eq.s32.totalorder %s16, 1
    %p121 = por %p119, %p120
    %p123 = scmp.ne.s32.totalorder %s106, %s122
    %p124 = scmp.eq.s32.totalorder %s16, 0
    %p125 = por %p123, %p124
    %s126 = ssub.s32 %s17, %s29
    %s127 = ssub.s32 %s18, %s25
    %s128 = sor.u32 %s126, %s127
    %p129 = scmp.eq.s32.totalorder %s128, 0
    %s131 = sadd.s32 %s130, 1
    %s132 = scalar_select %p129, %s130, %s131
    %p135 = pneg %p129
    %p136 = scmp.eq.s32.totalorder %s10, 1
    %p137 = por %p135, %p136
    %p138 = scmp.ne.s32.totalorder %s130, %s133
    %p139 = scmp.eq.s32.totalorder %s10, 0
    %p140 = por %p138, %p139
    %p141 = scmp.ne.s32.totalorder %s130, %s133
    %p142 = scmp.eq.s32.totalorder %s15, 1
    %p143 = por %p141, %p142
    %p144 = scmp.ne.s32.totalorder %s133, %s134
    %p145 = scmp.eq.s32.totalorder %s15, 0
    %p146 = por %p144, %p145
    %p147 = scmp.ne.s32.totalorder %s133, %s134
    %p148 = scmp.eq.s32.totalorder %s16, 1
    %p149 = por %p147, %p148
    %p151 = scmp.ne.s32.totalorder %s134, %s150
    %p152 = scmp.eq.s32.totalorder %s16, 0
    %p153 = por %p151, %p152
    %p154 = scmp.le.s32.totalorder 1, %s10
    %p155 = scmp.lt.s32.totalorder %s10, 3
    %p156 = pnand %p154, %p155
    %p157 = pneg %p156
    // Predicated region
    $region9: #{bottleneck_forward.3} parent=5 // pred_check
      _
    $region10: #{bottleneck_forward.3} parent=5 // pred_check_branch
      %159 = sbr.rel (%p156) target = $region12
    $region11: #{bottleneck_forward.3} parent=5 // pred_region
      %s160 = ssub.s32 %s10, 1
      // Predicated region
      $region13: #{bottleneck_forward.3} parent=11 // pred_check
        %p161 = pneg %p69
      $region14: #{bottleneck_forward.3} parent=11 // pred_check_branch
        %163 = sbr.rel (%p161) target = $region16
      $region15: #{bottleneck_forward.3} parent=11 // pred_region
        _
      $region16: #{bottleneck_forward.3} parent=11 // pred_fallthru
        _
      // Predicated region
      $region17: #{bottleneck_forward.3} parent=11 // pred_check
        %p164 = pneg %p90
      $region18: #{bottleneck_forward.3} parent=11 // pred_check_branch
        %166 = sbr.rel (%p164) target = $region20
      $region19: #{bottleneck_forward.3} parent=11 // pred_region
        _
      $region20: #{bottleneck_forward.3} parent=11 // pred_fallthru
        _
    $region12: #{bottleneck_forward.3} parent=5 // pred_fallthru
      _
    %p167 = scmp.lt.s32.totalorder %s10, 2
    // Predicated region
    $region21: #{bottleneck_forward.3} parent=5 // pred_check
      %p168 = pneg %p167
    $region22: #{bottleneck_forward.3} parent=5 // pred_check_branch
      %170 = sbr.rel (%p168) target = $region24
    $region23: #{bottleneck_forward.3} parent=5 // pred_region
      // Predicated region
      $region25: #{bottleneck_forward.3} parent=23 // pred_check
        %p171 = pneg %p42
      $region26: #{bottleneck_forward.3} parent=23 // pred_check_branch
        %173 = sbr.rel (%p171) target = $region28
      $region27: #{bottleneck_forward.3} parent=23 // pred_region
        %p174 = scmp.lt.s32.totalorder %s17, 1
        %s175 = scalar_select %p174, %s17, 1
        %s176 = smul.addr %s175, 54
        %s177 = smul.addr %s176, 4
        %s178 = scalar_lea.vmem %s0, %s177
      $region28: #{bottleneck_forward.3} parent=23 // pred_fallthru
        _
      // Predicated region
      $region29: #{bottleneck_forward.3} parent=23 // pred_check
        %p179 = pneg %p112
      $region30: #{bottleneck_forward.3} parent=23 // pred_check_branch
        %181 = sbr.rel (%p179) target = $region32
      $region31: #{bottleneck_forward.3} parent=23 // pred_region
        %s182 = smul.u32 16, %s18
        %p183 = scmp.lt.s32.totalorder %s17, 1
        %s184 = scalar_select %p183, %s17, 1
        %p185 = scmp.lt.s32.totalorder %s182, 15
        %s186 = scalar_select %p185, %s182, 15
        %s187 = smul.addr %s186, 2
        %s188 = smul.addr %s184, 32
        %s189 = sadd.s32 %s187, %s188
        %s190 = smul.addr %s189, 8
        %s191 = scalar_lea.vmem %s3, %s190
        %s192 = smul.u32 16, %s18
      $region32: #{bottleneck_forward.3} parent=23 // pred_fallthru
        _
    $region24: #{bottleneck_forward.3} parent=5 // pred_fallthru
      _
    %p193 = scmp.le.s32.totalorder 1, %s10
    %p194 = scmp.lt.s32.totalorder %s10, 3
    %p195 = pnand %p193, %p194
    %p196 = pneg %p195
    // Predicated region
    $region33: #{bottleneck_forward.3} parent=5 // pred_check
      _
    $region34: #{bottleneck_forward.3} parent=5 // pred_check_branch
      %198 = sbr.rel (%p195) target = $region36
    $region35: #{bottleneck_forward.3} parent=5 // pred_region
      %s199 = ssub.s32 %s10, 1
      %p200 = scmp.lt.s32.totalorder %s19, 1
      %s201 = scalar_select %p200, %s19, 1
      %s202 = smul.addr %s201, 54
      %s203 = smul.addr %s202, 4
      %s204 = scalar_lea.vmem %s0, %s203
      %p205 = pneg %p48
      %p206 = pneg %p45
      %p207 = pneg %p69
      %p208 = pneg %p66
      %p209 = pneg %p90
      %p210 = pneg %p87
      %s211 = smul.u32 16, %s20
      %p212 = scmp.lt.s32.totalorder %s19, 1
      %s213 = scalar_select %p212, %s19, 1
      %p214 = scmp.lt.s32.totalorder %s211, 15
      %s215 = scalar_select %p214, %s211, 15
      %s216 = smul.addr %s215, 2
      %s217 = smul.addr %s213, 32
      %s218 = sadd.s32 %s216, %s217
      %s219 = smul.addr %s218, 8
      %s220 = scalar_lea.vmem %s3, %s219
      %p221 = pneg %p118
      %p222 = pneg %p115
      %p223 = pneg %p146
      %p224 = pneg %p143
      %s225 = smul.u32 16, %s20
      %p226 = scmp.lt.s32.totalorder %s19, 1
      %s227 = scalar_select %p226, %s19, 1
      %p228 = scmp.lt.s32.totalorder %s225, 15
      %s229 = scalar_select %p228, %s225, 15
      %s230 = smul.addr %s229, 2
      %s231 = smul.addr %s227, 32
      %s232 = sadd.s32 %s230, %s231
      %s233 = smul.addr %s232, 8
      %s234 = scalar_lea.vmem %s4, %s233
      %p235 = scmp.lt.s32.totalorder %s19, 1
      %s236 = scalar_select %p235, %s19, 1
      %s237 = smul.addr %s236, 54
      %s238 = smul.addr %s237, 4
      %s239 = scalar_lea.vmem %s0, %s238
      %s240 = smul.u32 16, %s20
      %p241 = scmp.lt.s32.totalorder %s19, 1
      %s242 = scalar_select %p241, %s19, 1
      %p243 = scmp.lt.s32.totalorder %s240, 15
      %s244 = scalar_select %p243, %s240, 15
      %s245 = smul.addr %s244, 2
      %s246 = smul.addr %s242, 32
      %s247 = sadd.s32 %s245, %s246
      %s248 = smul.addr %s247, 8
      %s249 = scalar_lea.vmem %s3, %s248
      %s250 = smul.u32 16, %s20
      %s251 = smul.u32 16, %s20
      %p252 = scmp.lt.s32.totalorder %s19, 1
      %s253 = scalar_select %p252, %s19, 1
      %p254 = scmp.lt.s32.totalorder %s251, 15
      %s255 = scalar_select %p254, %s251, 15
      %s256 = smul.addr %s255, 2
      %s257 = smul.addr %s253, 32
      %s258 = sadd.s32 %s256, %s257
      %s259 = smul.addr %s258, 8
      %s260 = scalar_lea.vmem %s4, %s259
      %s261 = smul.u32 16, %s20
      %s263 = smul.u32 %s20, 16
      %s264 = smul.u32 %s263, 3
      %s265 = smul.addr %s264, 4
      %s266 = scalar_lea.vmem %s239, %s265
      %v267 = vld [vmem:[%s266] sm:$0xf]
      %v268 = vld [vmem:[%s266 + $0x4] sm:$0xf]
      %v269 = vld [vmem:[%s266 + $0x8] sm:$0x1]
      %v270 = vld [vmem:[%s266 + $0xc] sm:$0xf]
      %v271 = vld [vmem:[%s266 + $0x10] sm:$0xf]
      %v272 = vld [vmem:[%s266 + $0x14] sm:$0x1]
      %v273 = vld [vmem:[%s266 + $0x18] sm:$0xf]
      %v274 = vld [vmem:[%s266 + $0x1c] sm:$0xf]
      %v275 = vld [vmem:[%s266 + $0x20] sm:$0x1]
      %v276 = vld [vmem:[%s266 + $0x24] sm:$0xf]
      %v277 = vld [vmem:[%s266 + $0x28] sm:$0xf]
      %v278 = vld [vmem:[%s266 + $0x2c] sm:$0x1]
      %v279 = vld [vmem:[%s266 + $0x30] sm:$0xf]
      %v280 = vld [vmem:[%s266 + $0x34] sm:$0xf]
      %v281 = vld [vmem:[%s266 + $0x38] sm:$0x1]
      %v282 = vld [vmem:[%s266 + $0x3c] sm:$0xf]
      %v283 = vld [vmem:[%s266 + $0x40] sm:$0xf]
      %v284 = vld [vmem:[%s266 + $0x44] sm:$0x1]
      %v285 = vld [vmem:[%s266 + $0x48] sm:$0xf]
      %v286 = vld [vmem:[%s266 + $0x4c] sm:$0xf]
      %v287 = vld [vmem:[%s266 + $0x50] sm:$0x1]
      %v288 = vld [vmem:[%s266 + $0x54] sm:$0xf]
      %v289 = vld [vmem:[%s266 + $0x58] sm:$0xf]
      %v290 = vld [vmem:[%s266 + $0x5c] sm:$0x1]
      %v291 = vld [vmem:[%s266 + $0x60] sm:$0xf]
      %v292 = vld [vmem:[%s266 + $0x64] sm:$0xf]
      %v293 = vld [vmem:[%s266 + $0x68] sm:$0x1]
      %v294 = vld [vmem:[%s266 + $0x6c] sm:$0xf]
      %v295 = vld [vmem:[%s266 + $0x70] sm:$0xf]
      %v296 = vld [vmem:[%s266 + $0x74] sm:$0x1]
      %v297 = vld [vmem:[%s266 + $0x78] sm:$0xf]
      %v298 = vld [vmem:[%s266 + $0x7c] sm:$0xf]
      %v299 = vld [vmem:[%s266 + $0x80] sm:$0x1]
      %v300 = vld [vmem:[%s266 + $0x84] sm:$0xf]
      %v301 = vld [vmem:[%s266 + $0x88] sm:$0xf]
      %v302 = vld [vmem:[%s266 + $0x8c] sm:$0x1]
      %v303 = vld [vmem:[%s266 + $0x90] sm:$0xf]
      %v304 = vld [vmem:[%s266 + $0x94] sm:$0xf]
      %v305 = vld [vmem:[%s266 + $0x98] sm:$0x1]
      %v306 = vld [vmem:[%s266 + $0x9c] sm:$0xf]
      %v307 = vld [vmem:[%s266 + $0xa0] sm:$0xf]
      %v308 = vld [vmem:[%s266 + $0xa4] sm:$0x1]
      %v309 = vld [vmem:[%s266 + $0xa8] sm:$0xf]
      %v310 = vld [vmem:[%s266 + $0xac] sm:$0xf]
      %v311 = vld [vmem:[%s266 + $0xb0] sm:$0x1]
      %v312 = vld [vmem:[%s266 + $0xb4] sm:$0xf]
      %v313 = vld [vmem:[%s266 + $0xb8] sm:$0xf]
      %v314 = vld [vmem:[%s266 + $0xbc] sm:$0x1]
      %v315 = vld [vmem:[%s1] sm:$0xf]
      %v316 = vld [vmem:[%s1 + $0x4] sm:$0xf]
      %v317 = vld [vmem:[%s1 + $0x8] sm:$0xf]
      %v318 = vld [vmem:[%s1 + $0xc] sm:$0xf]
      %v319 = vld [vmem:[%s1 + $0x10] sm:$0xf]
      %v320 = vld [vmem:[%s1 + $0x14] sm:$0xf]
      %v321 = vld [vmem:[%s1 + $0x18] sm:$0xf]
      %v322 = vld [vmem:[%s1 + $0x1c] sm:$0xf]
      %v323 = vld [vmem:[%s1 + $0x20] sm:$0xf]
      %v324 = vld [vmem:[%s1 + $0x24] sm:$0xf]
      %v325 = vld [vmem:[%s1 + $0x28] sm:$0xf]
      %v326 = vld [vmem:[%s1 + $0x2c] sm:$0xf]
      %v327 = vld [vmem:[%s1 + $0x30] sm:$0xf]
      %v328 = vld [vmem:[%s1 + $0x34] sm:$0xf]
      %v329 = vld [vmem:[%s1 + $0x38] sm:$0xf]
      %v330 = vld [vmem:[%s1 + $0x3c] sm:$0xf]
      %vm331 = vsmask.f32 3328
      %vm332 = vsmask.f32 7440
      %vm333 = vmor %vm331, %vm332
      %v335 = vshrl.u32 %v267, 16
      %v337 = vrot.slane %v335, 4
      %v338 = vshll.u32 %v267, 16
      %v340 = vrot.slane %v338, 5
      %v341 = vor.u32 %v337, %v340
      %v342 = vrot.slane %v341, 4
      %v344 = vshll.u32 %v268, 16
      %v346 = vrot.slane %v344, 5
      %v347 = vsel %vm333, %v342, %v346
      %v348 = vshrl.u32 %v268, 16
      %v350 = vrot.slane %v348, 4
      %v351 = vor.u32 %v350, %v346
      %v352 = vrot.slane %v351, 4
      %v354 = vshll.u32 %v269, 16
      %v356 = vrot.slane %v354, 5
      %v357 = vsel %vm333, %v352, %v356
      %v359 = vshrl.u32 %v270, 16
      %v361 = vrot.slane %v359, 4
      %v362 = vshll.u32 %v270, 16
      %v364 = vrot.slane %v362, 5
      %v365 = vor.u32 %v361, %v364
      %v366 = vrot.slane %v365, 4
      %v368 = vshll.u32 %v271, 16
      %v370 = vrot.slane %v368, 5
      %v371 = vsel %vm333, %v366, %v370
      %v372 = vshrl.u32 %v271, 16
      %v374 = vrot.slane %v372, 4
      %v375 = vor.u32 %v374, %v370
      %v376 = vrot.slane %v375, 4
      %v378 = vshll.u32 %v272, 16
      %v380 = vrot.slane %v378, 5
      %v381 = vsel %vm333, %v376, %v380
      %v383 = vshrl.u32 %v273, 16
      %v385 = vrot.slane %v383, 4
      %v386 = vshll.u32 %v273, 16
      %v388 = vrot.slane %v386, 5
      %v389 = vor.u32 %v385, %v388
      %v390 = vrot.slane %v389, 4
      %v392 = vshll.u32 %v274, 16
      %v394 = vrot.slane %v392, 5
      %v395 = vsel %vm333, %v390, %v394
      %v396 = vshrl.u32 %v274, 16
      %v398 = vrot.slane %v396, 4
      %v399 = vor.u32 %v398, %v394
      %v400 = vrot.slane %v399, 4
      %v402 = vshll.u32 %v275, 16
      %v404 = vrot.slane %v402, 5
      %v405 = vsel %vm333, %v400, %v404
      %v407 = vshrl.u32 %v276, 16
      %v409 = vrot.slane %v407, 4
      %v410 = vshll.u32 %v276, 16
      %v412 = vrot.slane %v410, 5
      %v413 = vor.u32 %v409, %v412
      %v414 = vrot.slane %v413, 4
      %v416 = vshll.u32 %v277, 16
      %v418 = vrot.slane %v416, 5
      %v419 = vsel %vm333, %v414, %v418
      %v420 = vshrl.u32 %v277, 16
      %v422 = vrot.slane %v420, 4
      %v423 = vor.u32 %v422, %v418
      %v424 = vrot.slane %v423, 4
      %v426 = vshll.u32 %v278, 16
      %v428 = vrot.slane %v426, 5
      %v429 = vsel %vm333, %v424, %v428
      %v431 = vshrl.u32 %v279, 16
      %v433 = vrot.slane %v431, 4
      %v434 = vshll.u32 %v279, 16
      %v436 = vrot.slane %v434, 5
      %v437 = vor.u32 %v433, %v436
      %v438 = vrot.slane %v437, 4
      %v440 = vshll.u32 %v280, 16
      %v442 = vrot.slane %v440, 5
      %v443 = vsel %vm333, %v438, %v442
      %v444 = vshrl.u32 %v280, 16
      %v446 = vrot.slane %v444, 4
      %v447 = vor.u32 %v446, %v442
      %v448 = vrot.slane %v447, 4
      %v450 = vshll.u32 %v281, 16
      %v452 = vrot.slane %v450, 5
      %v453 = vsel %vm333, %v448, %v452
      %v455 = vshrl.u32 %v282, 16
      %v457 = vrot.slane %v455, 4
      %v458 = vshll.u32 %v282, 16
      %v460 = vrot.slane %v458, 5
      %v461 = vor.u32 %v457, %v460
      %v462 = vrot.slane %v461, 4
      %v464 = vshll.u32 %v283, 16
      %v466 = vrot.slane %v464, 5
      %v467 = vsel %vm333, %v462, %v466
      %v468 = vshrl.u32 %v283, 16
      %v470 = vrot.slane %v468, 4
      %v471 = vor.u32 %v470, %v466
      %v472 = vrot.slane %v471, 4
      %v474 = vshll.u32 %v284, 16
      %v476 = vrot.slane %v474, 5
      %v477 = vsel %vm333, %v472, %v476
      %v479 = vshrl.u32 %v285, 16
      %v481 = vrot.slane %v479, 4
      %v482 = vshll.u32 %v285, 16
      %v484 = vrot.slane %v482, 5
      %v485 = vor.u32 %v481, %v484
      %v486 = vrot.slane %v485, 4
      %v488 = vshll.u32 %v286, 16
      %v490 = vrot.slane %v488, 5
      %v491 = vsel %vm333, %v486, %v490
      %v492 = vshrl.u32 %v286, 16
      %v494 = vrot.slane %v492, 4
      %v495 = vor.u32 %v494, %v490
      %v496 = vrot.slane %v495, 4
      %v498 = vshll.u32 %v287, 16
      %v500 = vrot.slane %v498, 5
      %v501 = vsel %vm333, %v496, %v500
      %v503 = vshrl.u32 %v288, 16
      %v505 = vrot.slane %v503, 4
      %v506 = vshll.u32 %v288, 16
      %v508 = vrot.slane %v506, 5
      %v509 = vor.u32 %v505, %v508
      %v510 = vrot.slane %v509, 4
      %v512 = vshll.u32 %v289, 16
      %v514 = vrot.slane %v512, 5
      %v515 = vsel %vm333, %v510, %v514
      %v516 = vshrl.u32 %v289, 16
      %v518 = vrot.slane %v516, 4
      %v519 = vor.u32 %v518, %v514
      %v520 = vrot.slane %v519, 4
      %v522 = vshll.u32 %v290, 16
      %v524 = vrot.slane %v522, 5
      %v525 = vsel %vm333, %v520, %v524
      %v527 = vshrl.u32 %v291, 16
      %v529 = vrot.slane %v527, 4
      %v530 = vshll.u32 %v291, 16
      %v532 = vrot.slane %v530, 5
      %v533 = vor.u32 %v529, %v532
      %v534 = vrot.slane %v533, 4
      %v536 = vshll.u32 %v292, 16
      %v538 = vrot.slane %v536, 5
      %v539 = vsel %vm333, %v534, %v538
      %v540 = vshrl.u32 %v292, 16
      %v542 = vrot.slane %v540, 4
      %v543 = vor.u32 %v542, %v538
      %v544 = vrot.slane %v543, 4
      %v546 = vshll.u32 %v293, 16
      %v548 = vrot.slane %v546, 5
      %v549 = vsel %vm333, %v544, %v548
      %v551 = vshrl.u32 %v294, 16
      %v553 = vrot.slane %v551, 4
      %v554 = vshll.u32 %v294, 16
      %v556 = vrot.slane %v554, 5
      %v557 = vor.u32 %v553, %v556
      %v558 = vrot.slane %v557, 4
      %v560 = vshll.u32 %v295, 16
      %v562 = vrot.slane %v560, 5
      %v563 = vsel %vm333, %v558, %v562
      %v564 = vshrl.u32 %v295, 16
      %v566 = vrot.slane %v564, 4
      %v567 = vor.u32 %v566, %v562
      %v568 = vrot.slane %v567, 4
      %v570 = vshll.u32 %v296, 16
      %v572 = vrot.slane %v570, 5
      %v573 = vsel %vm333, %v568, %v572
      %v575 = vshrl.u32 %v297, 16
      %v577 = vrot.slane %v575, 4
      %v578 = vshll.u32 %v297, 16
      %v580 = vrot.slane %v578, 5
      %v581 = vor.u32 %v577, %v580
      %v582 = vrot.slane %v581, 4
      %v584 = vshll.u32 %v298, 16
      %v586 = vrot.slane %v584, 5
      %v587 = vsel %vm333, %v582, %v586
      %v588 = vshrl.u32 %v298, 16
      %v590 = vrot.slane %v588, 4
      %v591 = vor.u32 %v590, %v586
      %v592 = vrot.slane %v591, 4
      %v594 = vshll.u32 %v299, 16
      %v596 = vrot.slane %v594, 5
      %v597 = vsel %vm333, %v592, %v596
      %v599 = vshrl.u32 %v300, 16
      %v601 = vrot.slane %v599, 4
      %v602 = vshll.u32 %v300, 16
      %v604 = vrot.slane %v602, 5
      %v605 = vor.u32 %v601, %v604
      %v606 = vrot.slane %v605, 4
      %v608 = vshll.u32 %v301, 16
      %v610 = vrot.slane %v608, 5
      %v611 = vsel %vm333, %v606, %v610
      %v612 = vshrl.u32 %v301, 16
      %v614 = vrot.slane %v612, 4
      %v615 = vor.u32 %v614, %v610
      %v616 = vrot.slane %v615, 4
      %v618 = vshll.u32 %v302, 16
      %v620 = vrot.slane %v618, 5
      %v621 = vsel %vm333, %v616, %v620
      %v623 = vshrl.u32 %v303, 16
      %v625 = vrot.slane %v623, 4
      %v626 = vshll.u32 %v303, 16
      %v628 = vrot.slane %v626, 5
      %v629 = vor.u32 %v625, %v628
      %v630 = vrot.slane %v629, 4
      %v632 = vshll.u32 %v304, 16
      %v634 = vrot.slane %v632, 5
      %v635 = vsel %vm333, %v630, %v634
      %v636 = vshrl.u32 %v304, 16
      %v638 = vrot.slane %v636, 4
      %v639 = vor.u32 %v638, %v634
      %v640 = vrot.slane %v639, 4
      %v642 = vshll.u32 %v305, 16
      %v644 = vrot.slane %v642, 5
      %v645 = vsel %vm333, %v640, %v644
      %v647 = vshrl.u32 %v306, 16
      %v649 = vrot.slane %v647, 4
      %v650 = vshll.u32 %v306, 16
      %v652 = vrot.slane %v650, 5
      %v653 = vor.u32 %v649, %v652
      %v654 = vrot.slane %v653, 4
      %v656 = vshll.u32 %v307, 16
      %v658 = vrot.slane %v656, 5
      %v659 = vsel %vm333, %v654, %v658
      %v660 = vshrl.u32 %v307, 16
      %v662 = vrot.slane %v660, 4
      %v663 = vor.u32 %v662, %v658
      %v664 = vrot.slane %v663, 4
      %v666 = vshll.u32 %v308, 16
      %v668 = vrot.slane %v666, 5
      %v669 = vsel %vm333, %v664, %v668
      %v671 = vshrl.u32 %v309, 16
      %v673 = vrot.slane %v671, 4
      %v674 = vshll.u32 %v309, 16
      %v676 = vrot.slane %v674, 5
      %v677 = vor.u32 %v673, %v676
      %v678 = vrot.slane %v677, 4
      %v680 = vshll.u32 %v310, 16
      %v682 = vrot.slane %v680, 5
      %v683 = vsel %vm333, %v678, %v682
      %v684 = vshrl.u32 %v310, 16
      %v686 = vrot.slane %v684, 4
      %v687 = vor.u32 %v686, %v682
      %v688 = vrot.slane %v687, 4
      %v690 = vshll.u32 %v311, 16
      %v692 = vrot.slane %v690, 5
      %v693 = vsel %vm333, %v688, %v692
      %v695 = vshrl.u32 %v312, 16
      %v697 = vrot.slane %v695, 4
      %v698 = vshll.u32 %v312, 16
      %v700 = vrot.slane %v698, 5
      %v701 = vor.u32 %v697, %v700
      %v702 = vrot.slane %v701, 4
      %v704 = vshll.u32 %v313, 16
      %v706 = vrot.slane %v704, 5
      %v707 = vsel %vm333, %v702, %v706
      %v708 = vshrl.u32 %v313, 16
      %v710 = vrot.slane %v708, 4
      %v711 = vor.u32 %v710, %v706
      %v712 = vrot.slane %v711, 4
      %v714 = vshll.u32 %v314, 16
      %v716 = vrot.slane %v714, 5
      %v717 = vsel %vm333, %v712, %v716
      %s718 = scalar_lea.vmem %s1, 64
      %v719 = vld [vmem:[%s718] sm:$0xf]
      %v720 = vld [vmem:[%s718 + $0x4] sm:$0xf]
      %v721 = vld [vmem:[%s718 + $0x8] sm:$0xf]
      %v722 = vld [vmem:[%s718 + $0xc] sm:$0xf]
      %v723 = vld [vmem:[%s718 + $0x10] sm:$0xf]
      %v724 = vld [vmem:[%s718 + $0x14] sm:$0xf]
      %v725 = vld [vmem:[%s718 + $0x18] sm:$0xf]
      %v726 = vld [vmem:[%s718 + $0x1c] sm:$0xf]
      %v727 = vld [vmem:[%s718 + $0x20] sm:$0xf]
      %v728 = vld [vmem:[%s718 + $0x24] sm:$0xf]
      %v729 = vld [vmem:[%s718 + $0x28] sm:$0xf]
      %v730 = vld [vmem:[%s718 + $0x2c] sm:$0xf]
      %v731 = vld [vmem:[%s718 + $0x30] sm:$0xf]
      %v732 = vld [vmem:[%s718 + $0x34] sm:$0xf]
      %v733 = vld [vmem:[%s718 + $0x38] sm:$0xf]
      %v734 = vld [vmem:[%s718 + $0x3c] sm:$0xf]
      %v735 = vunpack.c.l.b16 %v347
      %v736 = vunpack.c.l.b16 %v357
      %v737 = vunpack.c.l.b16 %v371
      %v738 = vunpack.c.l.b16 %v381
      %v739 = vunpack.c.l.b16 %v395
      %v740 = vunpack.c.l.b16 %v405
      %v741 = vunpack.c.l.b16 %v419
      %v742 = vunpack.c.l.b16 %v429
      %v743 = vunpack.c.l.b16 %v443
      %v744 = vunpack.c.l.b16 %v453
      %v745 = vunpack.c.l.b16 %v467
      %v746 = vunpack.c.l.b16 %v477
      %v747 = vunpack.c.l.b16 %v491
      %v748 = vunpack.c.l.b16 %v501
      %v749 = vunpack.c.l.b16 %v515
      %v750 = vunpack.c.l.b16 %v525
      %v751 = vunpack.c.l.b16 %v539
      %v752 = vunpack.c.l.b16 %v549
      %v753 = vunpack.c.l.b16 %v563
      %v754 = vunpack.c.l.b16 %v573
      %v755 = vunpack.c.l.b16 %v587
      %v756 = vunpack.c.l.b16 %v597
      %v757 = vunpack.c.l.b16 %v611
      %v758 = vunpack.c.l.b16 %v621
      %v759 = vunpack.c.l.b16 %v635
      %v760 = vunpack.c.l.b16 %v645
      %v761 = vunpack.c.l.b16 %v659
      %v762 = vunpack.c.l.b16 %v669
      %v763 = vunpack.c.l.b16 %v683
      %v764 = vunpack.c.l.b16 %v693
      %v765 = vunpack.c.l.b16 %v707
      %v766 = vunpack.c.l.b16 %v717
      %v767 = vpack.c.b16 %v736, %v735
      %v768 = vpack.c.b16 %v738, %v737
      %v769 = vpack.c.b16 %v740, %v739
      %v770 = vpack.c.b16 %v742, %v741
      %v771 = vpack.c.b16 %v744, %v743
      %v772 = vpack.c.b16 %v746, %v745
      %v773 = vpack.c.b16 %v748, %v747
      %v774 = vpack.c.b16 %v750, %v749
      %v775 = vpack.c.b16 %v752, %v751
      %v776 = vpack.c.b16 %v754, %v753
      %v777 = vpack.c.b16 %v756, %v755
      %v778 = vpack.c.b16 %v758, %v757
      %v779 = vpack.c.b16 %v760, %v759
      %v780 = vpack.c.b16 %v762, %v761
      %v781 = vpack.c.b16 %v764, %v763
      %v782 = vpack.c.b16 %v766, %v765
      %v815 = vunpack.c.l.b16 %v719
      %v816 = vunpack.c.l.b16 %v720
      %v817 = vunpack.c.l.b16 %v721
      %v818 = vunpack.c.l.b16 %v722
      %v819 = vunpack.c.l.b16 %v723
      %v820 = vunpack.c.l.b16 %v724
      %v821 = vunpack.c.l.b16 %v725
      %v822 = vunpack.c.l.b16 %v726
      %v823 = vunpack.c.l.b16 %v727
      %v824 = vunpack.c.l.b16 %v728
      %v825 = vunpack.c.l.b16 %v729
      %v826 = vunpack.c.l.b16 %v730
      %v827 = vunpack.c.l.b16 %v731
      %v828 = vunpack.c.l.b16 %v732
      %v829 = vunpack.c.l.b16 %v733
      %v830 = vunpack.c.l.b16 %v734
      %v831 = vpack.c.b16 %v816, %v815
      %v832 = vpack.c.b16 %v818, %v817
      %v833 = vpack.c.b16 %v820, %v819
      %v834 = vpack.c.b16 %v822, %v821
      %v835 = vpack.c.b16 %v824, %v823
      %v836 = vpack.c.b16 %v826, %v825
      %v837 = vpack.c.b16 %v828, %v827
      %v838 = vpack.c.b16 %v830, %v829
      %847 = vmatprep.subr.bf16.mxu0 0
      %848 = vmatpush1.bf16.msra.mxu0 %v831
      %849 = vmatprep.subr.bf16.mxu0 0
      %850 = vmatpush1.bf16.msra.mxu0 %v832
      %851 = vmatprep.subr.bf16.mxu0 0
      %852 = vmatpush1.bf16.msra.mxu0 %v833
      %853 = vmatprep.subr.bf16.mxu0 0
      %854 = vmatpush1.bf16.msra.mxu0 %v834
      %855 = vmatprep.subr.bf16.mxu0 0
      %856 = vmatpush1.bf16.msra.mxu0 %v835
      %857 = vmatprep.subr.bf16.mxu0 0
      %858 = vmatpush1.bf16.msra.mxu0 %v836
      %859 = vmatprep.subr.bf16.mxu0 0
      %860 = vmatpush1.bf16.msra.mxu0 %v837
      %861 = vmatprep.subr.bf16.mxu0 0
      %862 = vmatpush1.bf16.msra.mxu0 %v838
      %863 = vmatprep.subr.bf16.mxu0 0
      %864 = vmatpush1.bf16.msra.mxu0 0
      %865 = vmatprep.subr.bf16.mxu0 0
      %866 = vmatpush1.bf16.msra.mxu0 0
      %867 = vmatprep.subr.bf16.mxu0 0
      %868 = vmatpush1.bf16.msra.mxu0 0
      %869 = vmatprep.subr.bf16.mxu0 0
      %870 = vmatpush1.bf16.msra.mxu0 0
      %871 = vmatprep.subr.bf16.mxu0 0
      %872 = vmatpush1.bf16.msra.mxu0 0
      %873 = vmatprep.subr.bf16.mxu0 0
      %874 = vmatpush1.bf16.msra.mxu0 0
      %875 = vmatprep.subr.bf16.mxu0 0
      %876 = vmatpush1.bf16.msra.mxu0 0
      %877 = vmatprep.subr.bf16.mxu0 0
      %878 = vmatpush1.bf16.msra.mxu0 0
      %879 = vmatprep.mubr.bf16.mxu0 0
      %880 = vmatmul.mubr.bf16.gmra.mrb[0].mxu0 %v767
      %v881 = vpop.f32.mrb[0].mxu0
      %v882 = vadd.f32 0.0, %v881
      %v883 = vpop.f32.mrb[0].mxu0
      %v884 = vpop.f32.mrb[0].mxu0
      %v885 = vadd.f32 0.0, %v884
      %v886 = vpop.f32.mrb[0].mxu0
      %887 = vmatprep.mubr.bf16.mxu0 0
      %888 = vmatmul.mubr.bf16.gmra.mrb[0].mxu0 %v768
      %v889 = vpop.f32.mrb[0].mxu0
      %v890 = vadd.f32 0.0, %v889
      %v891 = vpop.f32.mrb[0].mxu0
      %v892 = vpop.f32.mrb[0].mxu0
      %v893 = vadd.f32 0.0, %v892
      %v894 = vpop.f32.mrb[0].mxu0
      %895 = vmatprep.mubr.bf16.mxu0 0
      %896 = vmatmul.mubr.bf16.gmra.mrb[0].mxu0 %v769
      %v897 = vpop.f32.mrb[0].mxu0
      %v898 = vadd.f32 0.0, %v897
      %v899 = vpop.f32.mrb[0].mxu0
      %v900 = vpop.f32.mrb[0].mxu0
      %v901 = vadd.f32 0.0, %v900
      %v902 = vpop.f32.mrb[0].mxu0
      %903 = vmatprep.mubr.bf16.mxu0 0
      %904 = vmatmul.mubr.bf16.gmra.mrb[0].mxu0 %v770
      %v905 = vpop.f32.mrb[0].mxu0
      %v906 = vadd.f32 0.0, %v905
      %v907 = vpop.f32.mrb[0].mxu0
      %v908 = vpop.f32.mrb[0].mxu0
      %v909 = vadd.f32 0.0, %v908
      %v910 = vpop.f32.mrb[0].mxu0
      %911 = vmatprep.mubr.bf16.mxu0 0
      %912 = vmatmul.mubr.bf16.gmra.mrb[0].mxu0 %v771
      %v913 = vpop.f32.mrb[0].mxu0
      %v914 = vadd.f32 0.0, %v913
      %v915 = vpop.f32.mrb[0].mxu0
      %v916 = vpop.f32.mrb[0].mxu0
      %v917 = vadd.f32 0.0, %v916
      %v918 = vpop.f32.mrb[0].mxu0
      %919 = vmatprep.mubr.bf16.mxu0 0
      %920 = vmatmul.mubr.bf16.gmra.mrb[0].mxu0 %v772
      %v921 = vpop.f32.mrb[0].mxu0
      %v922 = vadd.f32 0.0, %v921
      %v923 = vpop.f32.mrb[0].mxu0
      %v924 = vpop.f32.mrb[0].mxu0
      %v925 = vadd.f32 0.0, %v924
      %v926 = vpop.f32.mrb[0].mxu0
      %927 = vmatprep.mubr.bf16.mxu0 0
      %928 = vmatmul.mubr.bf16.gmra.mrb[0].mxu0 %v773
      %v929 = vpop.f32.mrb[0].mxu0
      %v930 = vadd.f32 0.0, %v929
      %v931 = vpop.f32.mrb[0].mxu0
      %v932 = vpop.f32.mrb[0].mxu0
      %v933 = vadd.f32 0.0, %v932
      %v934 = vpop.f32.mrb[0].mxu0
      %935 = vmatprep.mubr.bf16.mxu0 0
      %936 = vmatmul.mubr.bf16.gmra.mrb[0].mxu0 %v774
      %v937 = vpop.f32.mrb[0].mxu0
      %v938 = vadd.f32 0.0, %v937
      %v939 = vpop.f32.mrb[0].mxu0
      %v940 = vpop.f32.mrb[0].mxu0
      %v941 = vadd.f32 0.0, %v940
      %v942 = vpop.f32.mrb[0].mxu0
      %943 = vmatprep.mubr.bf16.mxu0 0
      %944 = vmatmul.mubr.bf16.gmra.mrb[0].mxu0 %v775
      %v945 = vpop.f32.mrb[0].mxu0
      %v946 = vadd.f32 0.0, %v945
      %v947 = vpop.f32.mrb[0].mxu0
      %v948 = vpop.f32.mrb[0].mxu0
      %v949 = vadd.f32 0.0, %v948
      %v950 = vpop.f32.mrb[0].mxu0
      %951 = vmatprep.mubr.bf16.mxu0 0
      %952 = vmatmul.mubr.bf16.gmra.mrb[0].mxu0 %v776
      %v953 = vpop.f32.mrb[0].mxu0
      %v954 = vadd.f32 0.0, %v953
      %v955 = vpop.f32.mrb[0].mxu0
      %v956 = vpop.f32.mrb[0].mxu0
      %v957 = vadd.f32 0.0, %v956
      %v958 = vpop.f32.mrb[0].mxu0
      %959 = vmatprep.mubr.bf16.mxu0 0
      %960 = vmatmul.mubr.bf16.gmra.mrb[0].mxu0 %v777
      %v961 = vpop.f32.mrb[0].mxu0
      %v962 = vadd.f32 0.0, %v961
      %v963 = vpop.f32.mrb[0].mxu0
      %v964 = vpop.f32.mrb[0].mxu0
      %v965 = vadd.f32 0.0, %v964
      %v966 = vpop.f32.mrb[0].mxu0
      %967 = vmatprep.mubr.bf16.mxu0 0
      %968 = vmatmul.mubr.bf16.gmra.mrb[0].mxu0 %v778
      %v969 = vpop.f32.mrb[0].mxu0
      %v970 = vadd.f32 0.0, %v969
      %v971 = vpop.f32.mrb[0].mxu0
      %v972 = vpop.f32.mrb[0].mxu0
      %v973 = vadd.f32 0.0, %v972
      %v974 = vpop.f32.mrb[0].mxu0
      %975 = vmatprep.mubr.bf16.mxu0 0
      %976 = vmatmul.mubr.bf16.gmra.mrb[0].mxu0 %v779
      %v977 = vpop.f32.mrb[0].mxu0
      %v978 = vadd.f32 0.0, %v977
      %v979 = vpop.f32.mrb[0].mxu0
      %v980 = vpop.f32.mrb[0].mxu0
      %v981 = vadd.f32 0.0, %v980
      %v982 = vpop.f32.mrb[0].mxu0
      %983 = vmatprep.mubr.bf16.mxu0 0
      %984 = vmatmul.mubr.bf16.gmra.mrb[0].mxu0 %v780
      %v985 = vpop.f32.mrb[0].mxu0
      %v986 = vadd.f32 0.0, %v985
      %v987 = vpop.f32.mrb[0].mxu0
      %v988 = vpop.f32.mrb[0].mxu0
      %v989 = vadd.f32 0.0, %v988
      %v990 = vpop.f32.mrb[0].mxu0
      %991 = vmatprep.mubr.bf16.mxu0 0
      %992 = vmatmul.mubr.bf16.gmra.mrb[0].mxu0 %v781
      %v993 = vpop.f32.mrb[0].mxu0
      %v994 = vadd.f32 0.0, %v993
      %v995 = vpop.f32.mrb[0].mxu0
      %v996 = vpop.f32.mrb[0].mxu0
      %v997 = vadd.f32 0.0, %v996
      %v998 = vpop.f32.mrb[0].mxu0
      %999 = vmatprep.mubr.bf16.mxu0 0
      %1000 = vmatmul.mubr.bf16.gmra.mrb[0].mxu0 %v782
      %v1001 = vpop.f32.mrb[0].mxu0
      %v1002 = vadd.f32 0.0, %v1001
      %v1003 = vpop.f32.mrb[0].mxu0
      %v1004 = vpop.f32.mrb[0].mxu0
      %v1005 = vadd.f32 0.0, %v1004
      %v1006 = vpop.f32.mrb[0].mxu0
      %1007 = vdwg.mxu0
      %v1040 = vunpack.c.l.b16 %v267
      %v1041 = vunpack.c.l.b16 %v268
      %v1042 = vunpack.c.l.b16 %v270
      %v1043 = vunpack.c.l.b16 %v271
      %v1044 = vunpack.c.l.b16 %v273
      %v1045 = vunpack.c.l.b16 %v274
      %v1046 = vunpack.c.l.b16 %v276
      %v1047 = vunpack.c.l.b16 %v277
      %v1048 = vunpack.c.l.b16 %v279
      %v1049 = vunpack.c.l.b16 %v280
      %v1050 = vunpack.c.l.b16 %v282
      %v1051 = vunpack.c.l.b16 %v283
      %v1052 = vunpack.c.l.b16 %v285
      %v1053 = vunpack.c.l.b16 %v286
      %v1054 = vunpack.c.l.b16 %v288
      %v1055 = vunpack.c.l.b16 %v289
      %v1056 = vunpack.c.l.b16 %v291
      %v1057 = vunpack.c.l.b16 %v292
      %v1058 = vunpack.c.l.b16 %v294
      %v1059 = vunpack.c.l.b16 %v295
      %v1060 = vunpack.c.l.b16 %v297
      %v1061 = vunpack.c.l.b16 %v298
      %v1062 = vunpack.c.l.b16 %v300
      %v1063 = vunpack.c.l.b16 %v301
      %v1064 = vunpack.c.l.b16 %v303
      %v1065 = vunpack.c.l.b16 %v304
      %v1066 = vunpack.c.l.b16 %v306
      %v1067 = vunpack.c.l.b16 %v307
      %v1068 = vunpack.c.l.b16 %v309
      %v1069 = vunpack.c.l.b16 %v310
      %v1070 = vunpack.c.l.b16 %v312
      %v1071 = vunpack.c.l.b16 %v313
      %v1072 = vpack.c.b16 %v1041, %v1040
      %v1073 = vpack.c.b16 %v1043, %v1042
      %v1074 = vpack.c.b16 %v1045, %v1044
      %v1075 = vpack.c.b16 %v1047, %v1046
      %v1076 = vpack.c.b16 %v1049, %v1048
      %v1077 = vpack.c.b16 %v1051, %v1050
      %v1078 = vpack.c.b16 %v1053, %v1052
      %v1079 = vpack.c.b16 %v1055, %v1054
      %v1080 = vpack.c.b16 %v1057, %v1056
      %v1081 = vpack.c.b16 %v1059, %v1058
      %v1082 = vpack.c.b16 %v1061, %v1060
      %v1083 = vpack.c.b16 %v1063, %v1062
      %v1084 = vpack.c.b16 %v1065, %v1064
      %v1085 = vpack.c.b16 %v1067, %v1066
      %v1086 = vpack.c.b16 %v1069, %v1068
      %v1087 = vpack.c.b16 %v1071, %v1070
      %v1120 = vunpack.c.l.b16 %v315
      %v1121 = vunpack.c.l.b16 %v316
      %v1122 = vunpack.c.l.b16 %v317
      %v1123 = vunpack.c.l.b16 %v318
      %v1124 = vunpack.c.l.b16 %v319
      %v1125 = vunpack.c.l.b16 %v320
      %v1126 = vunpack.c.l.b16 %v321
      %v1127 = vunpack.c.l.b16 %v322
      %v1128 = vunpack.c.l.b16 %v323
      %v1129 = vunpack.c.l.b16 %v324
      %v1130 = vunpack.c.l.b16 %v325
      %v1131 = vunpack.c.l.b16 %v326
      %v1132 = vunpack.c.l.b16 %v327
      %v1133 = vunpack.c.l.b16 %v328
      %v1134 = vunpack.c.l.b16 %v329
      %v1135 = vunpack.c.l.b16 %v330
      %v1136 = vpack.c.b16 %v1121, %v1120
      %v1137 = vpack.c.b16 %v1123, %v1122
      %v1138 = vpack.c.b16 %v1125, %v1124
      %v1139 = vpack.c.b16 %v1127, %v1126
      %v1140 = vpack.c.b16 %v1129, %v1128
      %v1141 = vpack.c.b16 %v1131, %v1130
      %v1142 = vpack.c.b16 %v1133, %v1132
      %v1143 = vpack.c.b16 %v1135, %v1134
      %1152 = vmatprep.subr.bf16.mxu0 0
      %1153 = vmatpush1.bf16.msra.mxu0 %v1136
      %1154 = vmatprep.subr.bf16.mxu0 0
      %1155 = vmatpush1.bf16.msra.mxu0 %v1137
      %1156 = vmatprep.subr.bf16.mxu0 0
      %1157 = vmatpush1.bf16.msra.mxu0 %v1138
      %1158 = vmatprep.subr.bf16.mxu0 0
      %1159 = vmatpush1.bf16.msra.mxu0 %v1139
      %1160 = vmatprep.subr.bf16.mxu0 0
      %1161 = vmatpush1.bf16.msra.mxu0 %v1140
      %1162 = vmatprep.subr.bf16.mxu0 0
      %1163 = vmatpush1.bf16.msra.mxu0 %v1141
      %1164 = vmatprep.subr.bf16.mxu0 0
      %1165 = vmatpush1.bf16.msra.mxu0 %v1142
      %1166 = vmatprep.subr.bf16.mxu0 0
      %1167 = vmatpush1.bf16.msra.mxu0 %v1143
      %1168 = vmatprep.subr.bf16.mxu0 0
      %1169 = vmatpush1.bf16.msra.mxu0 0
      %1170 = vmatprep.subr.bf16.mxu0 0
      %1171 = vmatpush1.bf16.msra.mxu0 0
      %1172 = vmatprep.subr.bf16.mxu0 0
      %1173 = vmatpush1.bf16.msra.mxu0 0
      %1174 = vmatprep.subr.bf16.mxu0 0
      %1175 = vmatpush1.bf16.msra.mxu0 0
      %1176 = vmatprep.subr.bf16.mxu0 0
      %1177 = vmatpush1.bf16.msra.mxu0 0
      %1178 = vmatprep.subr.bf16.mxu0 0
      %1179 = vmatpush1.bf16.msra.mxu0 0
      %1180 = vmatprep.subr.bf16.mxu0 0
      %1181 = vmatpush1.bf16.msra.mxu0 0
      %1182 = vmatprep.subr.bf16.mxu0 0
      %1183 = vmatpush1.bf16.msra.mxu0 0
      %1184 = vmatprep.mubr.bf16.mxu0 0
      %1185 = vmatmul.mubr.bf16.gmra.mrb[0].mxu0 %v1072
      %v1186 = vpop.f32.mrb[0].mxu0
      %v1187 = vadd.f32 %v882, %v1186
      %v1188 = vpop.f32.mrb[0].mxu0
      %v1189 = vpop.f32.mrb[0].mxu0
      %v1190 = vadd.f32 %v885, %v1189
      %v1191 = vpop.f32.mrb[0].mxu0
      %1192 = vmatprep.mubr.bf16.mxu0 0
      %1193 = vmatmul.mubr.bf16.gmra.mrb[0].mxu0 %v1073
      %v1194 = vpop.f32.mrb[0].mxu0
      %v1195 = vadd.f32 %v890, %v1194
      %v1196 = vpop.f32.mrb[0].mxu0
      %v1197 = vpop.f32.mrb[0].mxu0
      %v1198 = vadd.f32 %v893, %v1197
      %v1199 = vpop.f32.mrb[0].mxu0
      %1200 = vmatprep.mubr.bf16.mxu0 0
      %1201 = vmatmul.mubr.bf16.gmra.mrb[0].mxu0 %v1074
      %v1202 = vpop.f32.mrb[0].mxu0
      %v1203 = vadd.f32 %v898, %v1202
      %v1204 = vpop.f32.mrb[0].mxu0
      %v1205 = vpop.f32.mrb[0].mxu0
      %v1206 = vadd.f32 %v901, %v1205
      %v1207 = vpop.f32.mrb[0].mxu0
      %1208 = vmatprep.mubr.bf16.mxu0 0
      %1209 = vmatmul.mubr.bf16.gmra.mrb[0].mxu0 %v1075
      %v1210 = vpop.f32.mrb[0].mxu0
      %v1211 = vadd.f32 %v906, %v1210
      %v1212 = vpop.f32.mrb[0].mxu0
      %v1213 = vpop.f32.mrb[0].mxu0
      %v1214 = vadd.f32 %v909, %v1213
      %v1215 = vpop.f32.mrb[0].mxu0
      %1216 = vmatprep.mubr.bf16.mxu0 0
      %1217 = vmatmul.mubr.bf16.gmra.mrb[0].mxu0 %v1076
      %v1218 = vpop.f32.mrb[0].mxu0
      %v1219 = vadd.f32 %v914, %v1218
      %v1220 = vpop.f32.mrb[0].mxu0
      %v1221 = vpop.f32.mrb[0].mxu0
      %v1222 = vadd.f32 %v917, %v1221
      %v1223 = vpop.f32.mrb[0].mxu0
      %1224 = vmatprep.mubr.bf16.mxu0 0
      %1225 = vmatmul.mubr.bf16.gmra.mrb[0].mxu0 %v1077
      %v1226 = vpop.f32.mrb[0].mxu0
      %v1227 = vadd.f32 %v922, %v1226
      %v1228 = vpop.f32.mrb[0].mxu0
      %v1229 = vpop.f32.mrb[0].mxu0
      %v1230 = vadd.f32 %v925, %v1229
      %v1231 = vpop.f32.mrb[0].mxu0
      %1232 = vmatprep.mubr.bf16.mxu0 0
      %1233 = vmatmul.mubr.bf16.gmra.mrb[0].mxu0 %v1078
      %v1234 = vpop.f32.mrb[0].mxu0
      %v1235 = vadd.f32 %v930, %v1234
      %v1236 = vpop.f32.mrb[0].mxu0
      %v1237 = vpop.f32.mrb[0].mxu0
      %v1238 = vadd.f32 %v933, %v1237
      %v1239 = vpop.f32.mrb[0].mxu0
      %1240 = vmatprep.mubr.bf16.mxu0 0
      %1241 = vmatmul.mubr.bf16.gmra.mrb[0].mxu0 %v1079
      %v1242 = vpop.f32.mrb[0].mxu0
      %v1243 = vadd.f32 %v938, %v1242
      %v1244 = vpop.f32.mrb[0].mxu0
      %v1245 = vpop.f32.mrb[0].mxu0
      %v1246 = vadd.f32 %v941, %v1245
      %v1247 = vpop.f32.mrb[0].mxu0
      %1248 = vmatprep.mubr.bf16.mxu0 0
      %1249 = vmatmul.mubr.bf16.gmra.mrb[0].mxu0 %v1080
      %v1250 = vpop.f32.mrb[0].mxu0
      %v1251 = vadd.f32 %v946, %v1250
      %v1252 = vpop.f32.mrb[0].mxu0
      %v1253 = vpop.f32.mrb[0].mxu0
      %v1254 = vadd.f32 %v949, %v1253
      %v1255 = vpop.f32.mrb[0].mxu0
      %1256 = vmatprep.mubr.bf16.mxu0 0
      %1257 = vmatmul.mubr.bf16.gmra.mrb[0].mxu0 %v1081
      %v1258 = vpop.f32.mrb[0].mxu0
      %v1259 = vadd.f32 %v954, %v1258
      %v1260 = vpop.f32.mrb[0].mxu0
      %v1261 = vpop.f32.mrb[0].mxu0
      %v1262 = vadd.f32 %v957, %v1261
      %v1263 = vpop.f32.mrb[0].mxu0
      %1264 = vmatprep.mubr.bf16.mxu0 0
      %1265 = vmatmul.mubr.bf16.gmra.mrb[0].mxu0 %v1082
      %v1266 = vpop.f32.mrb[0].mxu0
      %v1267 = vadd.f32 %v962, %v1266
      %v1268 = vpop.f32.mrb[0].mxu0
      %v1269 = vpop.f32.mrb[0].mxu0
      %v1270 = vadd.f32 %v965, %v1269
      %v1271 = vpop.f32.mrb[0].mxu0
      %1272 = vmatprep.mubr.bf16.mxu0 0
      %1273 = vmatmul.mubr.bf16.gmra.mrb[0].mxu0 %v1083
      %v1274 = vpop.f32.mrb[0].mxu0
      %v1275 = vadd.f32 %v970, %v1274
      %v1276 = vpop.f32.mrb[0].mxu0
      %v1277 = vpop.f32.mrb[0].mxu0
      %v1278 = vadd.f32 %v973, %v1277
      %v1279 = vpop.f32.mrb[0].mxu0
      %1280 = vmatprep.mubr.bf16.mxu0 0
      %1281 = vmatmul.mubr.bf16.gmra.mrb[0].mxu0 %v1084
      %v1282 = vpop.f32.mrb[0].mxu0
      %v1283 = vadd.f32 %v978, %v1282
      %v1284 = vpop.f32.mrb[0].mxu0
      %v1285 = vpop.f32.mrb[0].mxu0
      %v1286 = vadd.f32 %v981, %v1285
      %v1287 = vpop.f32.mrb[0].mxu0
      %1288 = vmatprep.mubr.bf16.mxu0 0
      %1289 = vmatmul.mubr.bf16.gmra.mrb[0].mxu0 %v1085
      %v1290 = vpop.f32.mrb[0].mxu0
      %v1291 = vadd.f32 %v986, %v1290
      %v1292 = vpop.f32.mrb[0].mxu0
      %v1293 = vpop.f32.mrb[0].mxu0
      %v1294 = vadd.f32 %v989, %v1293
      %v1295 = vpop.f32.mrb[0].mxu0
      %1296 = vmatprep.mubr.bf16.mxu0 0
      %1297 = vmatmul.mubr.bf16.gmra.mrb[0].mxu0 %v1086
      %v1298 = vpop.f32.mrb[0].mxu0
      %v1299 = vadd.f32 %v994, %v1298
      %v1300 = vpop.f32.mrb[0].mxu0
      %v1301 = vpop.f32.mrb[0].mxu0
      %v1302 = vadd.f32 %v997, %v1301
      %v1303 = vpop.f32.mrb[0].mxu0
      %1304 = vmatprep.mubr.bf16.mxu0 0
      %1305 = vmatmul.mubr.bf16.gmra.mrb[0].mxu0 %v1087
      %v1306 = vpop.f32.mrb[0].mxu0
      %v1307 = vadd.f32 %v1002, %v1306
      %v1308 = vpop.f32.mrb[0].mxu0
      %v1309 = vpop.f32.mrb[0].mxu0
      %v1310 = vadd.f32 %v1005, %v1309
      %v1311 = vpop.f32.mrb[0].mxu0
      %1312 = vdwg.mxu0
      %vm1329 = vcmask 1042432
      %vm1330 = vcmask 1046532
      %vm1331 = vmor %vm1329, %vm1330
      %v1332 = vrot.slane %v267, 5
      %v1333 = vrot.slane %v1332, 4
      %v1334 = vrot.slane %v268, 5
      %v1335 = vsel %vm1331, %v1333, %v1334
      %v1336 = vrot.slane %v1334, 4
      %v1337 = vrot.slane %v269, 5
      %v1338 = vsel %vm1331, %v1336, %v1337
      %v1339 = vrot.slane %v270, 5
      %v1340 = vrot.slane %v1339, 4
      %v1341 = vrot.slane %v271, 5
      %v1342 = vsel %vm1331, %v1340, %v1341
      %v1343 = vrot.slane %v1341, 4
      %v1344 = vrot.slane %v272, 5
      %v1345 = vsel %vm1331, %v1343, %v1344
      %v1346 = vrot.slane %v273, 5
      %v1347 = vrot.slane %v1346, 4
      %v1348 = vrot.slane %v274, 5
      %v1349 = vsel %vm1331, %v1347, %v1348
      %v1350 = vrot.slane %v1348, 4
      %v1351 = vrot.slane %v275, 5
      %v1352 = vsel %vm1331, %v1350, %v1351
      %v1353 = vrot.slane %v276, 5
      %v1354 = vrot.slane %v1353, 4
      %v1355 = vrot.slane %v277, 5
      %v1356 = vsel %vm1331, %v1354, %v1355
      %v1357 = vrot.slane %v1355, 4
      %v1358 = vrot.slane %v278, 5
      %v1359 = vsel %vm1331, %v1357, %v1358
      %v1360 = vrot.slane %v279, 5
      %v1361 = vrot.slane %v1360, 4
      %v1362 = vrot.slane %v280, 5
      %v1363 = vsel %vm1331, %v1361, %v1362
      %v1364 = vrot.slane %v1362, 4
      %v1365 = vrot.slane %v281, 5
      %v1366 = vsel %vm1331, %v1364, %v1365
      %v1367 = vrot.slane %v282, 5
      %v1368 = vrot.slane %v1367, 4
      %v1369 = vrot.slane %v283, 5
      %v1370 = vsel %vm1331, %v1368, %v1369
      %v1371 = vrot.slane %v1369, 4
      %v1372 = vrot.slane %v284, 5
      %v1373 = vsel %vm1331, %v1371, %v1372
      %v1374 = vrot.slane %v285, 5
      %v1375 = vrot.slane %v1374, 4
      %v1376 = vrot.slane %v286, 5
      %v1377 = vsel %vm1331, %v1375, %v1376
      %v1378 = vrot.slane %v1376, 4
      %v1379 = vrot.slane %v287, 5
      %v1380 = vsel %vm1331, %v1378, %v1379
      %v1381 = vrot.slane %v288, 5
      %v1382 = vrot.slane %v1381, 4
      %v1383 = vrot.slane %v289, 5
      %v1384 = vsel %vm1331, %v1382, %v1383
      %v1385 = vrot.slane %v1383, 4
      %v1386 = vrot.slane %v290, 5
      %v1387 = vsel %vm1331, %v1385, %v1386
      %v1388 = vrot.slane %v291, 5
      %v1389 = vrot.slane %v1388, 4
      %v1390 = vrot.slane %v292, 5
      %v1391 = vsel %vm1331, %v1389, %v1390
      %v1392 = vrot.slane %v1390, 4
      %v1393 = vrot.slane %v293, 5
      %v1394 = vsel %vm1331, %v1392, %v1393
      %v1395 = vrot.slane %v294, 5
      %v1396 = vrot.slane %v1395, 4
      %v1397 = vrot.slane %v295, 5
      %v1398 = vsel %vm1331, %v1396, %v1397
      %v1399 = vrot.slane %v1397, 4
      %v1400 = vrot.slane %v296, 5
      %v1401 = vsel %vm1331, %v1399, %v1400
      %v1402 = vrot.slane %v297, 5
      %v1403 = vrot.slane %v1402, 4
      %v1404 = vrot.slane %v298, 5
      %v1405 = vsel %vm1331, %v1403, %v1404
      %v1406 = vrot.slane %v1404, 4
      %v1407 = vrot.slane %v299, 5
      %v1408 = vsel %vm1331, %v1406, %v1407
      %v1409 = vrot.slane %v300, 5
      %v1410 = vrot.slane %v1409, 4
      %v1411 = vrot.slane %v301, 5
      %v1412 = vsel %vm1331, %v1410, %v1411
      %v1413 = vrot.slane %v1411, 4
      %v1414 = vrot.slane %v302, 5
      %v1415 = vsel %vm1331, %v1413, %v1414
      %v1416 = vrot.slane %v303, 5
      %v1417 = vrot.slane %v1416, 4
      %v1418 = vrot.slane %v304, 5
      %v1419 = vsel %vm1331, %v1417, %v1418
      %v1420 = vrot.slane %v1418, 4
      %v1421 = vrot.slane %v305, 5
      %v1422 = vsel %vm1331, %v1420, %v1421
      %v1423 = vrot.slane %v306, 5
      %v1424 = vrot.slane %v1423, 4
      %v1425 = vrot.slane %v307, 5
      %v1426 = vsel %vm1331, %v1424, %v1425
      %v1427 = vrot.slane %v1425, 4
      %v1428 = vrot.slane %v308, 5
      %v1429 = vsel %vm1331, %v1427, %v1428
      %v1430 = vrot.slane %v309, 5
      %v1431 = vrot.slane %v1430, 4
      %v1432 = vrot.slane %v310, 5
      %v1433 = vsel %vm1331, %v1431, %v1432
      %v1434 = vrot.slane %v1432, 4
      %v1435 = vrot.slane %v311, 5
      %v1436 = vsel %vm1331, %v1434, %v1435
      %v1437 = vrot.slane %v312, 5
      %v1438 = vrot.slane %v1437, 4
      %v1439 = vrot.slane %v313, 5
      %v1440 = vsel %vm1331, %v1438, %v1439
      %v1441 = vrot.slane %v1439, 4
      %v1442 = vrot.slane %v314, 5
      %v1443 = vsel %vm1331, %v1441, %v1442
      %s1444 = scalar_lea.vmem %s1, 128
      %v1445 = vld [vmem:[%s1444] sm:$0xf]
      %v1446 = vld [vmem:[%s1444 + $0x4] sm:$0xf]
      %v1447 = vld [vmem:[%s1444 + $0x8] sm:$0xf]
      %v1448 = vld [vmem:[%s1444 + $0xc] sm:$0xf]
      %v1449 = vld [vmem:[%s1444 + $0x10] sm:$0xf]
      %v1450 = vld [vmem:[%s1444 + $0x14] sm:$0xf]
      %v1451 = vld [vmem:[%s1444 + $0x18] sm:$0xf]
      %v1452 = vld [vmem:[%s1444 + $0x1c] sm:$0xf]
      %v1453 = vld [vmem:[%s1444 + $0x20] sm:$0xf]
      %v1454 = vld [vmem:[%s1444 + $0x24] sm:$0xf]
      %v1455 = vld [vmem:[%s1444 + $0x28] sm:$0xf]
      %v1456 = vld [vmem:[%s1444 + $0x2c] sm:$0xf]
      %v1457 = vld [vmem:[%s1444 + $0x30] sm:$0xf]
      %v1458 = vld [vmem:[%s1444 + $0x34] sm:$0xf]
      %v1459 = vld [vmem:[%s1444 + $0x38] sm:$0xf]
      %v1460 = vld [vmem:[%s1444 + $0x3c] sm:$0xf]
      %v1461 = vunpack.c.l.b16 %v1335
      %v1462 = vunpack.c.l.b16 %v1338
      %v1463 = vunpack.c.l.b16 %v1342
      %v1464 = vunpack.c.l.b16 %v1345
      %v1465 = vunpack.c.l.b16 %v1349
      %v1466 = vunpack.c.l.b16 %v1352
      %v1467 = vunpack.c.l.b16 %v1356
      %v1468 = vunpack.c.l.b16 %v1359
      %v1469 = vunpack.c.l.b16 %v1363
      %v1470 = vunpack.c.l.b16 %v1366
      %v1471 = vunpack.c.l.b16 %v1370
      %v1472 = vunpack.c.l.b16 %v1373
      %v1473 = vunpack.c.l.b16 %v1377
      %v1474 = vunpack.c.l.b16 %v1380
      %v1475 = vunpack.c.l.b16 %v1384
      %v1476 = vunpack.c.l.b16 %v1387
      %v1477 = vunpack.c.l.b16 %v1391
      %v1478 = vunpack.c.l.b16 %v1394
      %v1479 = vunpack.c.l.b16 %v1398
      %v1480 = vunpack.c.l.b16 %v1401
      %v1481 = vunpack.c.l.b16 %v1405
      %v1482 = vunpack.c.l.b16 %v1408
      %v1483 = vunpack.c.l.b16 %v1412
      %v1484 = vunpack.c.l.b16 %v1415
      %v1485 = vunpack.c.l.b16 %v1419
      %v1486 = vunpack.c.l.b16 %v1422
      %v1487 = vunpack.c.l.b16 %v1426
      %v1488 = vunpack.c.l.b16 %v1429
      %v1489 = vunpack.c.l.b16 %v1433
      %v1490 = vunpack.c.l.b16 %v1436
      %v1491 = vunpack.c.l.b16 %v1440
      %v1492 = vunpack.c.l.b16 %v1443
      %v1493 = vpack.c.b16 %v1462, %v1461
      %v1494 = vpack.c.b16 %v1464, %v1463
      %v1495 = vpack.c.b16 %v1466, %v1465
      %v1496 = vpack.c.b16 %v1468, %v1467
      %v1497 = vpack.c.b16 %v1470, %v1469
      %v1498 = vpack.c.b16 %v1472, %v1471
      %v1499 = vpack.c.b16 %v1474, %v1473
      %v1500 = vpack.c.b16 %v1476, %v1475
      %v1501 = vpack.c.b16 %v1478, %v1477
      %v1502 = vpack.c.b16 %v1480, %v1479
      %v1503 = vpack.c.b16 %v1482, %v1481
      %v1504 = vpack.c.b16 %v1484, %v1483
      %v1505 = vpack.c.b16 %v1486, %v1485
      %v1506 = vpack.c.b16 %v1488, %v1487
      %v1507 = vpack.c.b16 %v1490, %v1489
      %v1508 = vpack.c.b16 %v1492, %v1491
      %v1541 = vunpack.c.l.b16 %v1445
      %v1542 = vunpack.c.l.b16 %v1446
      %v1543 = vunpack.c.l.b16 %v1447
      %v1544 = vunpack.c.l.b16 %v1448
      %v1545 = vunpack.c.l.b16 %v1449
      %v1546 = vunpack.c.l.b16 %v1450
      %v1547 = vunpack.c.l.b16 %v1451
      %v1548 = vunpack.c.l.b16 %v1452
      %v1549 = vunpack.c.l.b16 %v1453
      %v1550 = vunpack.c.l.b16 %v1454
      %v1551 = vunpack.c.l.b16 %v1455
      %v1552 = vunpack.c.l.b16 %v1456
      %v1553 = vunpack.c.l.b16 %v1457
      %v1554 = vunpack.c.l.b16 %v1458
      %v1555 = vunpack.c.l.b16 %v1459
      %v1556 = vunpack.c.l.b16 %v1460
      %v1557 = vpack.c.b16 %v1542, %v1541
      %v1558 = vpack.c.b16 %v1544, %v1543
      %v1559 = vpack.c.b16 %v1546, %v1545
      %v1560 = vpack.c.b16 %v1548, %v1547
      %v1561 = vpack.c.b16 %v1550, %v1549
      %v1562 = vpack.c.b16 %v1552, %v1551
      %v1563 = vpack.c.b16 %v1554, %v1553
      %v1564 = vpack.c.b16 %v1556, %v1555
      %1573 = vmatprep.subr.bf16.mxu0 0
      %1574 = vmatpush1.bf16.msra.mxu0 %v1557
      %1575 = vmatprep.subr.bf16.mxu0 0
      %1576 = vmatpush1.bf16.msra.mxu0 %v1558
      %1577 = vmatprep.subr.bf16.mxu0 0
      %1578 = vmatpush1.bf16.msra.mxu0 %v1559
      %1579 = vmatprep.subr.bf16.mxu0 0
      %1580 = vmatpush1.bf16.msra.mxu0 %v1560
      %1581 = vmatprep.subr.bf16.mxu0 0
      %1582 = vmatpush1.bf16.msra.mxu0 %v1561
      %1583 = vmatprep.subr.bf16.mxu0 0
      %1584 = vmatpush1.bf16.msra.mxu0 %v1562
      %1585 = vmatprep.subr.bf16.mxu0 0
      %1586 = vmatpush1.bf16.msra.mxu0 %v1563
      %1587 = vmatprep.subr.bf16.mxu0 0
      %1588 = vmatpush1.bf16.msra.mxu0 %v1564
      %1589 = vmatprep.subr.bf16.mxu0 0
      %1590 = vmatpush1.bf16.msra.mxu0 0
      %1591 = vmatprep.subr.bf16.mxu0 0
      %1592 = vmatpush1.bf16.msra.mxu0 0
      %1593 = vmatprep.subr.bf16.mxu0 0
      %1594 = vmatpush1.bf16.msra.mxu0 0
      %1595 = vmatprep.subr.bf16.mxu0 0
      %1596 = vmatpush1.bf16.msra.mxu0 0
      %1597 = vmatprep.subr.bf16.mxu0 0
      %1598 = vmatpush1.bf16.msra.mxu0 0
      %1599 = vmatprep.subr.bf16.mxu0 0
      %1600 = vmatpush1.bf16.msra.mxu0 0
      %1601 = vmatprep.subr.bf16.mxu0 0
      %1602 = vmatpush1.bf16.msra.mxu0 0
      %1603 = vmatprep.subr.bf16.mxu0 0
      %1604 = vmatpush1.bf16.msra.mxu0 0
      %1605 = vmatprep.mubr.bf16.mxu0 0
      %1606 = vmatmul.mubr.bf16.gmra.mrb[0].mxu0 %v1493
      %v1607 = vpop.f32.mrb[0].mxu0
      %v1608 = vadd.f32 0.0, %v1607
      %v1609 = vpop.f32.mrb[0].mxu0
      %v1610 = vpop.f32.mrb[0].mxu0
      %v1611 = vadd.f32 0.0, %v1610
      %v1612 = vpop.f32.mrb[0].mxu0
      %1613 = vmatprep.mubr.bf16.mxu0 0
      %1614 = vmatmul.mubr.bf16.gmra.mrb[0].mxu0 %v1494
      %v1615 = vpop.f32.mrb[0].mxu0
      %v1616 = vadd.f32 0.0, %v1615
      %v1617 = vpop.f32.mrb[0].mxu0
      %v1618 = vpop.f32.mrb[0].mxu0
      %v1619 = vadd.f32 0.0, %v1618
      %v1620 = vpop.f32.mrb[0].mxu0
      %1621 = vmatprep.mubr.bf16.mxu0 0
      %1622 = vmatmul.mubr.bf16.gmra.mrb[0].mxu0 %v1495
      %v1623 = vpop.f32.mrb[0].mxu0
      %v1624 = vadd.f32 0.0, %v1623
      %v1625 = vpop.f32.mrb[0].mxu0
      %v1626 = vpop.f32.mrb[0].mxu0
      %v1627 = vadd.f32 0.0, %v1626
      %v1628 = vpop.f32.mrb[0].mxu0
      %1629 = vmatprep.mubr.bf16.mxu0 0
      %1630 = vmatmul.mubr.bf16.gmra.mrb[0].mxu0 %v1496
      %v1631 = vpop.f32.mrb[0].mxu0
      %v1632 = vadd.f32 0.0, %v1631
      %v1633 = vpop.f32.mrb[0].mxu0
      %v1634 = vpop.f32.mrb[0].mxu0
      %v1635 = vadd.f32 0.0, %v1634
      %v1636 = vpop.f32.mrb[0].mxu0
      %1637 = vmatprep.mubr.bf16.mxu0 0
      %1638 = vmatmul.mubr.bf16.gmra.mrb[0].mxu0 %v1497
      %v1639 = vpop.f32.mrb[0].mxu0
      %v1640 = vadd.f32 0.0, %v1639
      %v1641 = vpop.f32.mrb[0].mxu0
      %v1642 = vpop.f32.mrb[0].mxu0
      %v1643 = vadd.f32 0.0, %v1642
      %v1644 = vpop.f32.mrb[0].mxu0
      %1645 = vmatprep.mubr.bf16.mxu0 0
      %1646 = vmatmul.mubr.bf16.gmra.mrb[0].mxu0 %v1498
      %v1647 = vpop.f32.mrb[0].mxu0
      %v1648 = vadd.f32 0.0, %v1647
      %v1649 = vpop.f32.mrb[0].mxu0
      %v1650 = vpop.f32.mrb[0].mxu0
      %v1651 = vadd.f32 0.0, %v1650
      %v1652 = vpop.f32.mrb[0].mxu0
      %1653 = vmatprep.mubr.bf16.mxu0 0
      %1654 = vmatmul.mubr.bf16.gmra.mrb[0].mxu0 %v1499
      %v1655 = vpop.f32.mrb[0].mxu0
      %v1656 = vadd.f32 0.0, %v1655
      %v1657 = vpop.f32.mrb[0].mxu0
      %v1658 = vpop.f32.mrb[0].mxu0
      %v1659 = vadd.f32 0.0, %v1658
      %v1660 = vpop.f32.mrb[0].mxu0
      %1661 = vmatprep.mubr.bf16.mxu0 0
      %1662 = vmatmul.mubr.bf16.gmra.mrb[0].mxu0 %v1500
      %v1663 = vpop.f32.mrb[0].mxu0
      %v1664 = vadd.f32 0.0, %v1663
      %v1665 = vpop.f32.mrb[0].mxu0
      %v1666 = vpop.f32.mrb[0].mxu0
      %v1667 = vadd.f32 0.0, %v1666
      %v1668 = vpop.f32.mrb[0].mxu0
      %1669 = vmatprep.mubr.bf16.mxu0 0
      %1670 = vmatmul.mubr.bf16.gmra.mrb[0].mxu0 %v1501
      %v1671 = vpop.f32.mrb[0].mxu0
      %v1672 = vadd.f32 0.0, %v1671
      %v1673 = vpop.f32.mrb[0].mxu0
      %v1674 = vpop.f32.mrb[0].mxu0
      %v1675 = vadd.f32 0.0, %v1674
      %v1676 = vpop.f32.mrb[0].mxu0
      %1677 = vmatprep.mubr.bf16.mxu0 0
      %1678 = vmatmul.mubr.bf16.gmra.mrb[0].mxu0 %v1502
      %v1679 = vpop.f32.mrb[0].mxu0
      %v1680 = vadd.f32 0.0, %v1679
      %v1681 = vpop.f32.mrb[0].mxu0
      %v1682 = vpop.f32.mrb[0].mxu0
      %v1683 = vadd.f32 0.0, %v1682
      %v1684 = vpop.f32.mrb[0].mxu0
      %1685 = vmatprep.mubr.bf16.mxu0 0
      %1686 = vmatmul.mubr.bf16.gmra.mrb[0].mxu0 %v1503
      %v1687 = vpop.f32.mrb[0].mxu0
      %v1688 = vadd.f32 0.0, %v1687
      %v1689 = vpop.f32.mrb[0].mxu0
      %v1690 = vpop.f32.mrb[0].mxu0
      %v1691 = vadd.f32 0.0, %v1690
      %v1692 = vpop.f32.mrb[0].mxu0
      %1693 = vmatprep.mubr.bf16.mxu0 0
      %1694 = vmatmul.mubr.bf16.gmra.mrb[0].mxu0 %v1504
      %v1695 = vpop.f32.mrb[0].mxu0
      %v1696 = vadd.f32 0.0, %v1695
      %v1697 = vpop.f32.mrb[0].mxu0
      %v1698 = vpop.f32.mrb[0].mxu0
      %v1699 = vadd.f32 0.0, %v1698
      %v1700 = vpop.f32.mrb[0].mxu0
      %1701 = vmatprep.mubr.bf16.mxu0 0
      %1702 = vmatmul.mubr.bf16.gmra.mrb[0].mxu0 %v1505
      %v1703 = vpop.f32.mrb[0].mxu0
      %v1704 = vadd.f32 0.0, %v1703
      %v1705 = vpop.f32.mrb[0].mxu0
      %v1706 = vpop.f32.mrb[0].mxu0
      %v1707 = vadd.f32 0.0, %v1706
      %v1708 = vpop.f32.mrb[0].mxu0
      %1709 = vmatprep.mubr.bf16.mxu0 0
      %1710 = vmatmul.mubr.bf16.gmra.mrb[0].mxu0 %v1506
      %v1711 = vpop.f32.mrb[0].mxu0
      %v1712 = vadd.f32 0.0, %v1711
      %v1713 = vpop.f32.mrb[0].mxu0
      %v1714 = vpop.f32.mrb[0].mxu0
      %v1715 = vadd.f32 0.0, %v1714
      %v1716 = vpop.f32.mrb[0].mxu0
      %1717 = vmatprep.mubr.bf16.mxu0 0
      %1718 = vmatmul.mubr.bf16.gmra.mrb[0].mxu0 %v1507
      %v1719 = vpop.f32.mrb[0].mxu0
      %v1720 = vadd.f32 0.0, %v1719
      %v1721 = vpop.f32.mrb[0].mxu0
      %v1722 = vpop.f32.mrb[0].mxu0
      %v1723 = vadd.f32 0.0, %v1722
      %v1724 = vpop.f32.mrb[0].mxu0
      %1725 = vmatprep.mubr.bf16.mxu0 0
      %1726 = vmatmul.mubr.bf16.gmra.mrb[0].mxu0 %v1508
      %v1727 = vpop.f32.mrb[0].mxu0
      %v1728 = vadd.f32 0.0, %v1727
      %v1729 = vpop.f32.mrb[0].mxu0
      %v1730 = vpop.f32.mrb[0].mxu0
      %v1731 = vadd.f32 0.0, %v1730
      %v1732 = vpop.f32.mrb[0].mxu0
      %1733 = vdwg.mxu0
      %v1734 = vadd.f32 %v1187, %v1608
      %v1735 = vadd.f32 %v1190, %v1611
      %v1736 = vadd.f32 %v1195, %v1616
      %v1737 = vadd.f32 %v1198, %v1619
      %v1738 = vadd.f32 %v1203, %v1624
      %v1739 = vadd.f32 %v1206, %v1627
      %v1740 = vadd.f32 %v1211, %v1632
      %v1741 = vadd.f32 %v1214, %v1635
      %v1742 = vadd.f32 %v1219, %v1640
      %v1743 = vadd.f32 %v1222, %v1643
      %v1744 = vadd.f32 %v1227, %v1648
      %v1745 = vadd.f32 %v1230, %v1651
      %v1746 = vadd.f32 %v1235, %v1656
      %v1747 = vadd.f32 %v1238, %v1659
      %v1748 = vadd.f32 %v1243, %v1664
      %v1749 = vadd.f32 %v1246, %v1667
      %v1750 = vadd.f32 %v1251, %v1672
      %v1751 = vadd.f32 %v1254, %v1675
      %v1752 = vadd.f32 %v1259, %v1680
      %v1753 = vadd.f32 %v1262, %v1683
      %v1754 = vadd.f32 %v1267, %v1688
      %v1755 = vadd.f32 %v1270, %v1691
      %v1756 = vadd.f32 %v1275, %v1696
      %v1757 = vadd.f32 %v1278, %v1699
      %v1758 = vadd.f32 %v1283, %v1704
      %v1759 = vadd.f32 %v1286, %v1707
      %v1760 = vadd.f32 %v1291, %v1712
      %v1761 = vadd.f32 %v1294, %v1715
      %v1762 = vadd.f32 %v1299, %v1720
      %v1763 = vadd.f32 %v1302, %v1723
      %v1764 = vadd.f32 %v1307, %v1728
      %v1765 = vadd.f32 %v1310, %v1731
      %s1766 = sadd.s32 %s263, 1
      %s1767 = smul.u32 %s1766, 3
      %s1768 = smul.addr %s1767, 4
      %s1769 = scalar_lea.vmem %s239, %s1768
      %v1770 = vld [vmem:[%s1769] sm:$0xf]
      %v1771 = vld [vmem:[%s1769 + $0x4] sm:$0xf]
      %v1772 = vld [vmem:[%s1769 + $0x8] sm:$0x1]
      %v1773 = vld [vmem:[%s1769 + $0xc] sm:$0xf]
      %v1774 = vld [vmem:[%s1769 + $0x10] sm:$0xf]
      %v1775 = vld [vmem:[%s1769 + $0x14] sm:$0x1]
      %v1776 = vld [vmem:[%s1769 + $0x18] sm:$0xf]
      %v1777 = vld [vmem:[%s1769 + $0x1c] sm:$0xf]
      %v1778 = vld [vmem:[%s1769 + $0x20] sm:$0x1]
      %v1779 = vld [vmem:[%s1769 + $0x24] sm:$0xf]
      %v1780 = vld [vmem:[%s1769 + $0x28] sm:$0xf]
      %v1781 = vld [vmem:[%s1769 + $0x2c] sm:$0x1]
      %v1782 = vld [vmem:[%s1769 + $0x30] sm:$0xf]
      %v1783 = vld [vmem:[%s1769 + $0x34] sm:$0xf]
      %v1784 = vld [vmem:[%s1769 + $0x38] sm:$0x1]
      %v1785 = vld [vmem:[%s1769 + $0x3c] sm:$0xf]
      %v1786 = vld [vmem:[%s1769 + $0x40] sm:$0xf]
      %v1787 = vld [vmem:[%s1769 + $0x44] sm:$0x1]
      %v1788 = vld [vmem:[%s1769 + $0x48] sm:$0xf]
      %v1789 = vld [vmem:[%s1769 + $0x4c] sm:$0xf]
      %v1790 = vld [vmem:[%s1769 + $0x50] sm:$0x1]
      %v1791 = vld [vmem:[%s1769 + $0x54] sm:$0xf]
      %v1792 = vld [vmem:[%s1769 + $0x58] sm:$0xf]
      %v1793 = vld [vmem:[%s1769 + $0x5c] sm:$0x1]
      %v1794 = vld [vmem:[%s1769 + $0x60] sm:$0xf]
      %v1795 = vld [vmem:[%s1769 + $0x64] sm:$0xf]
      %v1796 = vld [vmem:[%s1769 + $0x68] sm:$0x1]
      %v1797 = vld [vmem:[%s1769 + $0x6c] sm:$0xf]
      %v1798 = vld [vmem:[%s1769 + $0x70] sm:$0xf]
      %v1799 = vld [vmem:[%s1769 + $0x74] sm:$0x1]
      %v1800 = vld [vmem:[%s1769 + $0x78] sm:$0xf]
      %v1801 = vld [vmem:[%s1769 + $0x7c] sm:$0xf]
      %v1802 = vld [vmem:[%s1769 + $0x80] sm:$0x1]
      %v1803 = vld [vmem:[%s1769 + $0x84] sm:$0xf]
      %v1804 = vld [vmem:[%s1769 + $0x88] sm:$0xf]
      %v1805 = vld [vmem:[%s1769 + $0x8c] sm:$0x1]
      %v1806 = vld [vmem:[%s1769 + $0x90] sm:$0xf]
      %v1807 = vld [vmem:[%s1769 + $0x94] sm:$0xf]
      %v1808 = vld [vmem:[%s1769 + $0x98] sm:$0x1]
      %v1809 = vld [vmem:[%s1769 + $0x9c] sm:$0xf]
      %v1810 = vld [vmem:[%s1769 + $0xa0] sm:$0xf]
      %v1811 = vld [vmem:[%s1769 + $0xa4] sm:$0x1]
      %v1812 = vld [vmem:[%s1769 + $0xa8] sm:$0xf]
      %v1813 = vld [vmem:[%s1769 + $0xac] sm:$0xf]
      %v1814 = vld [vmem:[%s1769 + $0xb0] sm:$0x1]
      %v1815 = vld [vmem:[%s1769 + $0xb4] sm:$0xf]
      %v1816 = vld [vmem:[%s1769 + $0xb8] sm:$0xf]
      %v1817 = vld [vmem:[%s1769 + $0xbc] sm:$0x1]
      %s1818 = scalar_lea.vmem %s1, 192
      %v1819 = vld [vmem:[%s1818] sm:$0xf]
      %v1820 = vld [vmem:[%s1818 + $0x4] sm:$0xf]
      %v1821 = vld [vmem:[%s1818 + $0x8] sm:$0xf]
      %v1822 = vld [vmem:[%s1818 + $0xc] sm:$0xf]
      %v1823 = vld [vmem:[%s1818 + $0x10] sm:$0xf]
      %v1824 = vld [vmem:[%s1818 + $0x14] sm:$0xf]
      %v1825 = vld [vmem:[%s1818 + $0x18] sm:$0xf]
      %v1826 = vld [vmem:[%s1818 + $0x1c] sm:$0xf]
      %v1827 = vld [vmem:[%s1818 + $0x20] sm:$0xf]
      %v1828 = vld [vmem:[%s1818 + $0x24] sm:$0xf]
      %v1829 = vld [vmem:[%s1818 + $0x28] sm:$0xf]
      %v1830 = vld [vmem:[%s1818 + $0x2c] sm:$0xf]
      %v1831 = vld [vmem:[%s1818 + $0x30] sm:$0xf]
      %v1832 = vld [vmem:[%s1818 + $0x34] sm:$0xf]
      %v1833 = vld [vmem:[%s1818 + $0x38] sm:$0xf]
      %v1834 = vld [vmem:[%s1818 + $0x3c] sm:$0xf]
      %v1867 = vunpack.c.l.b16 %v1770
      %v1868 = vunpack.c.l.b16 %v1771
      %v1869 = vunpack.c.l.b16 %v1773
      %v1870 = vunpack.c.l.b16 %v1774
      %v1871 = vunpack.c.l.b16 %v1776
      %v1872 = vunpack.c.l.b16 %v1777
      %v1873 = vunpack.c.l.b16 %v1779
      %v1874 = vunpack.c.l.b16 %v1780
      %v1875 = vunpack.c.l.b16 %v1782
      %v1876 = vunpack.c.l.b16 %v1783
      %v1877 = vunpack.c.l.b16 %v1785
      %v1878 = vunpack.c.l.b16 %v1786
      %v1879 = vunpack.c.l.b16 %v1788
      %v1880 = vunpack.c.l.b16 %v1789
      %v1881 = vunpack.c.l.b16 %v1791
      %v1882 = vunpack.c.l.b16 %v1792
      %v1883 = vunpack.c.l.b16 %v1794
      %v1884 = vunpack.c.l.b16 %v1795
      %v1885 = vunpack.c.l.b16 %v1797
      %v1886 = vunpack.c.l.b16 %v1798
      %v1887 = vunpack.c.l.b16 %v1800
      %v1888 = vunpack.c.l.b16 %v1801
      %v1889 = vunpack.c.l.b16 %v1803
      %v1890 = vunpack.c.l.b16 %v1804
      %v1891 = vunpack.c.l.b16 %v1806
      %v1892 = vunpack.c.l.b16 %v1807
      %v1893 = vunpack.c.l.b16 %v1809
      %v1894 = vunpack.c.l.b16 %v1810
      %v1895 = vunpack.c.l.b16 %v1812
      %v1896 = vunpack.c.l.b16 %v1813
      %v1897 = vunpack.c.l.b16 %v1815
      %v1898 = vunpack.c.l.b16 %v1816
      %v1899 = vpack.c.b16 %v1868, %v1867
      %v1900 = vpack.c.b16 %v1870, %v1869
      %v1901 = vpack.c.b16 %v1872, %v1871
      %v1902 = vpack.c.b16 %v1874, %v1873
      %v1903 = vpack.c.b16 %v1876, %v1875
      %v1904 = vpack.c.b16 %v1878, %v1877
      %v1905 = vpack.c.b16 %v1880, %v1879
      %v1906 = vpack.c.b16 %v1882, %v1881
      %v1907 = vpack.c.b16 %v1884, %v1883
      %v1908 = vpack.c.b16 %v1886, %v1885
      %v1909 = vpack.c.b16 %v1888, %v1887
      %v1910 = vpack.c.b16 %v1890, %v1889
      %v1911 = vpack.c.b16 %v1892, %v1891
      %v1912 = vpack.c.b16 %v1894, %v1893
      %v1913 = vpack.c.b16 %v1896, %v1895
      %v1914 = vpack.c.b16 %v1898, %v1897
      %v1947 = vunpack.c.l.b16 %v1819
      %v1948 = vunpack.c.l.b16 %v1820
      %v1949 = vunpack.c.l.b16 %v1821
      %v1950 = vunpack.c.l.b16 %v1822
      %v1951 = vunpack.c.l.b16 %v1823
      %v1952 = vunpack.c.l.b16 %v1824
      %v1953 = vunpack.c.l.b16 %v1825
      %v1954 = vunpack.c.l.b16 %v1826
      %v1955 = vunpack.c.l.b16 %v1827
      %v1956 = vunpack.c.l.b16 %v1828
      %v1957 = vunpack.c.l.b16 %v1829
      %v1958 = vunpack.c.l.b16 %v1830
      %v1959 = vunpack.c.l.b16 %v1831
      %v1960 = vunpack.c.l.b16 %v1832
      %v1961 = vunpack.c.l.b16 %v1833
      %v1962 = vunpack.c.l.b16 %v1834
      %v1963 = vpack.c.b16 %v1948, %v1947
      %v1964 = vpack.c.b16 %v1950, %v1949
      %v1965 = vpack.c.b16 %v1952, %v1951
      %v1966 = vpack.c.b16 %v1954, %v1953
      %v1967 = vpack.c.b16 %v1956, %v1955
      %v1968 = vpack.c.b16 %v1958, %v1957
      %v1969 = vpack.c.b16 %v1960, %v1959
      %v1970 = vpack.c.b16 %v1962, %v1961
      %1979 = vmatprep.subr.bf16.mxu0 0
      %1980 = vmatpush1.bf16.msra.mxu0 %v1963
      %1981 = vmatprep.subr.bf16.mxu0 0
      %1982 = vmatpush1.bf16.msra.mxu0 %v1964
      %1983 = vmatprep.subr.bf16.mxu0 0
      %1984 = vmatpush1.bf16.msra.mxu0 %v1965
      %1985 = vmatprep.subr.bf16.mxu0 0
      %1986 = vmatpush1.bf16.msra.mxu0 %v1966
      %1987 = vmatprep.subr.bf16.mxu0 0
      %1988 = vmatpush1.bf16.msra.mxu0 %v1967
      %1989 = vmatprep.subr.bf16.mxu0 0
      %1990 = vmatpush1.bf16.msra.mxu0 %v1968
      %1991 = vmatprep.subr.bf16.mxu0 0
      %1992 = vmatpush1.bf16.msra.mxu0 %v1969
      %1993 = vmatprep.subr.bf16.mxu0 0
      %1994 = vmatpush1.bf16.msra.mxu0 %v1970
      %1995 = vmatprep.subr.bf16.mxu0 0
      %1996 = vmatpush1.bf16.msra.mxu0 0
      %1997 = vmatprep.subr.bf16.mxu0 0
      %1998 = vmatpush1.bf16.msra.mxu0 0
      %1999 = vmatprep.subr.bf16.mxu0 0
      %2000 = vmatpush1.bf16.msra.mxu0 0
      %2001 = vmatprep.subr.bf16.mxu0 0
      %2002 = vmatpush1.bf16.msra.mxu0 0
      %2003 = vmatprep.subr.bf16.mxu0 0
      %2004 = vmatpush1.bf16.msra.mxu0 0
      %2005 = vmatprep.subr.bf16.mxu0 0
      %2006 = vmatpush1.bf16.msra.mxu0 0
      %2007 = vmatprep.subr.bf16.mxu0 0
      %2008 = vmatpush1.bf16.msra.mxu0 0
      %2009 = vmatprep.subr.bf16.mxu0 0
      %2010 = vmatpush1.bf16.msra.mxu0 0
      %2011 = vmatprep.mubr.bf16.mxu0 0
      %2012 = vmatmul.mubr.bf16.gmra.mrb[0].mxu0 %v1899
      %v2013 = vpop.f32.mrb[0].mxu0
      %v2014 = vadd.f32 0.0, %v2013
      %v2015 = vpop.f32.mrb[0].mxu0
      %v2016 = vpop.f32.mrb[0].mxu0
      %v2017 = vadd.f32 0.0, %v2016
      %v2018 = vpop.f32.mrb[0].mxu0
      %2019 = vmatprep.mubr.bf16.mxu0 0
      %2020 = vmatmul.mubr.bf16.gmra.mrb[0].mxu0 %v1900
      %v2021 = vpop.f32.mrb[0].mxu0
      %v2022 = vadd.f32 0.0, %v2021
      %v2023 = vpop.f32.mrb[0].mxu0
      %v2024 = vpop.f32.mrb[0].mxu0
      %v2025 = vadd.f32 0.0, %v2024
      %v2026 = vpop.f32.mrb[0].mxu0
      %2027 = vmatprep.mubr.bf16.mxu0 0
      %2028 = vmatmul.mubr.bf16.gmra.mrb[0].mxu0 %v1901
      %v2029 = vpop.f32.mrb[0].mxu0
      %v2030 = vadd.f32 0.0, %v2029
      %v2031 = vpop.f32.mrb[0].mxu0
      %v2032 = vpop.f32.mrb[0].mxu0
      %v2033 = vadd.f32 0.0, %v2032
      %v2034 = vpop.f32.mrb[0].mxu0
      %2035 = vmatprep.mubr.bf16.mxu0 0
      %2036 = vmatmul.mubr.bf16.gmra.mrb[0].mxu0 %v1902
      %v2037 = vpop.f32.mrb[0].mxu0
      %v2038 = vadd.f32 0.0, %v2037
      %v2039 = vpop.f32.mrb[0].mxu0
      %v2040 = vpop.f32.mrb[0].mxu0
      %v2041 = vadd.f32 0.0, %v2040
      %v2042 = vpop.f32.mrb[0].mxu0
      %2043 = vmatprep.mubr.bf16.mxu0 0
      %2044 = vmatmul.mubr.bf16.gmra.mrb[0].mxu0 %v1903
      %v2045 = vpop.f32.mrb[0].mxu0
      %v2046 = vadd.f32 0.0, %v2045
      %v2047 = vpop.f32.mrb[0].mxu0
      %v2048 = vpop.f32.mrb[0].mxu0
      %v2049 = vadd.f32 0.0, %v2048
      %v2050 = vpop.f32.mrb[0].mxu0
      %2051 = vmatprep.mubr.bf16.mxu0 0
      %2052 = vmatmul.mubr.bf16.gmra.mrb[0].mxu0 %v1904
      %v2053 = vpop.f32.mrb[0].mxu0
      %v2054 = vadd.f32 0.0, %v2053
      %v2055 = vpop.f32.mrb[0].mxu0
      %v2056 = vpop.f32.mrb[0].mxu0
      %v2057 = vadd.f32 0.0, %v2056
      %v2058 = vpop.f32.mrb[0].mxu0
      %2059 = vmatprep.mubr.bf16.mxu0 0
      %2060 = vmatmul.mubr.bf16.gmra.mrb[0].mxu0 %v1905
      %v2061 = vpop.f32.mrb[0].mxu0
      %v2062 = vadd.f32 0.0, %v2061
      %v2063 = vpop.f32.mrb[0].mxu0
      %v2064 = vpop.f32.mrb[0].mxu0
      %v2065 = vadd.f32 0.0, %v2064
      %v2066 = vpop.f32.mrb[0].mxu0
      %2067 = vmatprep.mubr.bf16.mxu0 0
      %2068 = vmatmul.mubr.bf16.gmra.mrb[0].mxu0 %v1906
      %v2069 = vpop.f32.mrb[0].mxu0
      %v2070 = vadd.f32 0.0, %v2069
      %v2071 = vpop.f32.mrb[0].mxu0
      %v2072 = vpop.f32.mrb[0].mxu0
      %v2073 = vadd.f32 0.0, %v2072
      %v2074 = vpop.f32.mrb[0].mxu0
      %2075 = vmatprep.mubr.bf16.mxu0 0
      %2076 = vmatmul.mubr.bf16.gmra.mrb[0].mxu0 %v1907
      %v2077 = vpop.f32.mrb[0].mxu0
      %v2078 = vadd.f32 0.0, %v2077
      %v2079 = vpop.f32.mrb[0].mxu0
      %v2080 = vpop.f32.mrb[0].mxu0
      %v2081 = vadd.f32 0.0, %v2080
      %v2082 = vpop.f32.mrb[0].mxu0
      %2083 = vmatprep.mubr.bf16.mxu0 0
      %2084 = vmatmul.mubr.bf16.gmra.mrb[0].mxu0 %v1908
      %v2085 = vpop.f32.mrb[0].mxu0
      %v2086 = vadd.f32 0.0, %v2085
      %v2087 = vpop.f32.mrb[0].mxu0
      %v2088 = vpop.f32.mrb[0].mxu0
      %v2089 = vadd.f32 0.0, %v2088
      %v2090 = vpop.f32.mrb[0].mxu0
      %2091 = vmatprep.mubr.bf16.mxu0 0
      %2092 = vmatmul.mubr.bf16.gmra.mrb[0].mxu0 %v1909
      %v2093 = vpop.f32.mrb[0].mxu0
      %v2094 = vadd.f32 0.0, %v2093
      %v2095 = vpop.f32.mrb[0].mxu0
      %v2096 = vpop.f32.mrb[0].mxu0
      %v2097 = vadd.f32 0.0, %v2096
      %v2098 = vpop.f32.mrb[0].mxu0
      %2099 = vmatprep.mubr.bf16.mxu0 0
      %2100 = vmatmul.mubr.bf16.gmra.mrb[0].mxu0 %v1910
      %v2101 = vpop.f32.mrb[0].mxu0
      %v2102 = vadd.f32 0.0, %v2101
      %v2103 = vpop.f32.mrb[0].mxu0
      %v2104 = vpop.f32.mrb[0].mxu0
      %v2105 = vadd.f32 0.0, %v2104
      %v2106 = vpop.f32.mrb[0].mxu0
      %2107 = vmatprep.mubr.bf16.mxu0 0
      %2108 = vmatmul.mubr.bf16.gmra.mrb[0].mxu0 %v1911
      %v2109 = vpop.f32.mrb[0].mxu0
      %v2110 = vadd.f32 0.0, %v2109
      %v2111 = vpop.f32.mrb[0].mxu0
      %v2112 = vpop.f32.mrb[0].mxu0
      %v2113 = vadd.f32 0.0, %v2112
      %v2114 = vpop.f32.mrb[0].mxu0
      %2115 = vmatprep.mubr.bf16.mxu0 0
      %2116 = vmatmul.mubr.bf16.gmra.mrb[0].mxu0 %v1912
      %v2117 = vpop.f32.mrb[0].mxu0
      %v2118 = vadd.f32 0.0, %v2117
      %v2119 = vpop.f32.mrb[0].mxu0
      %v2120 = vpop.f32.mrb[0].mxu0
      %v2121 = vadd.f32 0.0, %v2120
      %v2122 = vpop.f32.mrb[0].mxu0
      %2123 = vmatprep.mubr.bf16.mxu0 0
      %2124 = vmatmul.mubr.bf16.gmra.mrb[0].mxu0 %v1913
      %v2125 = vpop.f32.mrb[0].mxu0
      %v2126 = vadd.f32 0.0, %v2125
      %v2127 = vpop.f32.mrb[0].mxu0
      %v2128 = vpop.f32.mrb[0].mxu0
      %v2129 = vadd.f32 0.0, %v2128
      %v2130 = vpop.f32.mrb[0].mxu0
      %2131 = vmatprep.mubr.bf16.mxu0 0
      %2132 = vmatmul.mubr.bf16.gmra.mrb[0].mxu0 %v1914
      %v2133 = vpop.f32.mrb[0].mxu0
      %v2134 = vadd.f32 0.0, %v2133
      %v2135 = vpop.f32.mrb[0].mxu0
      %v2136 = vpop.f32.mrb[0].mxu0
      %v2137 = vadd.f32 0.0, %v2136
      %v2138 = vpop.f32.mrb[0].mxu0
      %2139 = vdwg.mxu0
      %v2140 = vadd.f32 %v1734, %v2014
      %v2141 = vadd.f32 %v1735, %v2017
      %v2142 = vadd.f32 %v1736, %v2022
      %v2143 = vadd.f32 %v1737, %v2025
      %v2144 = vadd.f32 %v1738, %v2030
      %v2145 = vadd.f32 %v1739, %v2033
      %v2146 = vadd.f32 %v1740, %v2038
      %v2147 = vadd.f32 %v1741, %v2041
      %v2148 = vadd.f32 %v1742, %v2046
      %v2149 = vadd.f32 %v1743, %v2049
      %v2150 = vadd.f32 %v1744, %v2054
      %v2151 = vadd.f32 %v1745, %v2057
      %v2152 = vadd.f32 %v1746, %v2062
      %v2153 = vadd.f32 %v1747, %v2065
      %v2154 = vadd.f32 %v1748, %v2070
      %v2155 = vadd.f32 %v1749, %v2073
      %v2156 = vadd.f32 %v1750, %v2078
      %v2157 = vadd.f32 %v1751, %v2081
      %v2158 = vadd.f32 %v1752, %v2086
      %v2159 = vadd.f32 %v1753, %v2089
      %v2160 = vadd.f32 %v1754, %v2094
      %v2161 = vadd.f32 %v1755, %v2097
      %v2162 = vadd.f32 %v1756, %v2102
      %v2163 = vadd.f32 %v1757, %v2105
      %v2164 = vadd.f32 %v1758, %v2110
      %v2165 = vadd.f32 %v1759, %v2113
      %v2166 = vadd.f32 %v1760, %v2118
      %v2167 = vadd.f32 %v1761, %v2121
      %v2168 = vadd.f32 %v1762, %v2126
      %v2169 = vadd.f32 %v1763, %v2129
      %v2170 = vadd.f32 %v1764, %v2134
      %v2171 = vadd.f32 %v1765, %v2137
      %v2173 = vshrl.u32 %v1770, 16
      %v2175 = vrot.slane %v2173, 4
      %v2176 = vshll.u32 %v1770, 16
      %v2178 = vrot.slane %v2176, 5
      %v2179 = vor.u32 %v2175, %v2178
      %v2180 = vrot.slane %v2179, 4
      %v2182 = vshll.u32 %v1771, 16
      %v2184 = vrot.slane %v2182, 5
      %v2185 = vsel %vm333, %v2180, %v2184
      %v2186 = vshrl.u32 %v1771, 16
      %v2188 = vrot.slane %v2186, 4
      %v2189 = vor.u32 %v2188, %v2184
      %v2190 = vrot.slane %v2189, 4
      %v2192 = vshll.u32 %v1772, 16
      %v2194 = vrot.slane %v2192, 5
      %v2195 = vsel %vm333, %v2190, %v2194
      %v2197 = vshrl.u32 %v1773, 16
      %v2199 = vrot.slane %v2197, 4
      %v2200 = vshll.u32 %v1773, 16
      %v2202 = vrot.slane %v2200, 5
      %v2203 = vor.u32 %v2199, %v2202
      %v2204 = vrot.slane %v2203, 4
      %v2206 = vshll.u32 %v1774, 16
      %v2208 = vrot.slane %v2206, 5
      %v2209 = vsel %vm333, %v2204, %v2208
      %v2210 = vshrl.u32 %v1774, 16
      %v2212 = vrot.slane %v2210, 4
      %v2213 = vor.u32 %v2212, %v2208
      %v2214 = vrot.slane %v2213, 4
      %v2216 = vshll.u32 %v1775, 16
      %v2218 = vrot.slane %v2216, 5
      %v2219 = vsel %vm333, %v2214, %v2218
      %v2221 = vshrl.u32 %v1776, 16
      %v2223 = vrot.slane %v2221, 4
      %v2224 = vshll.u32 %v1776, 16
      %v2226 = vrot.slane %v2224, 5
      %v2227 = vor.u32 %v2223, %v2226
      %v2228 = vrot.slane %v2227, 4
      %v2230 = vshll.u32 %v1777, 16
      %v2232 = vrot.slane %v2230, 5
      %v2233 = vsel %vm333, %v2228, %v2232
      %v2234 = vshrl.u32 %v1777, 16
      %v2236 = vrot.slane %v2234, 4
      %v2237 = vor.u32 %v2236, %v2232
      %v2238 = vrot.slane %v2237, 4
      %v2240 = vshll.u32 %v1778, 16
      %v2242 = vrot.slane %v2240, 5
      %v2243 = vsel %vm333, %v2238, %v2242
      %v2245 = vshrl.u32 %v1779, 16
      %v2247 = vrot.slane %v2245, 4
      %v2248 = vshll.u32 %v1779, 16
      %v2250 = vrot.slane %v2248, 5
      %v2251 = vor.u32 %v2247, %v2250
      %v2252 = vrot.slane %v2251, 4
      %v2254 = vshll.u32 %v1780, 16
      %v2256 = vrot.slane %v2254, 5
      %v2257 = vsel %vm333, %v2252, %v2256
      %v2258 = vshrl.u32 %v1780, 16
      %v2260 = vrot.slane %v2258, 4
      %v2261 = vor.u32 %v2260, %v2256
      %v2262 = vrot.slane %v2261, 4
      %v2264 = vshll.u32 %v1781, 16
      %v2266 = vrot.slane %v2264, 5
      %v2267 = vsel %vm333, %v2262, %v2266
      %v2269 = vshrl.u32 %v1782, 16
      %v2271 = vrot.slane %v2269, 4
      %v2272 = vshll.u32 %v1782, 16
      %v2274 = vrot.slane %v2272, 5
      %v2275 = vor.u32 %v2271, %v2274
      %v2276 = vrot.slane %v2275, 4
      %v2278 = vshll.u32 %v1783, 16
      %v2280 = vrot.slane %v2278, 5
      %v2281 = vsel %vm333, %v2276, %v2280
      %v2282 = vshrl.u32 %v1783, 16
      %v2284 = vrot.slane %v2282, 4
      %v2285 = vor.u32 %v2284, %v2280
      %v2286 = vrot.slane %v2285, 4
      %v2288 = vshll.u32 %v1784, 16
      %v2290 = vrot.slane %v2288, 5
      %v2291 = vsel %vm333, %v2286, %v2290
      %v2293 = vshrl.u32 %v1785, 16
      %v2295 = vrot.slane %v2293, 4
      %v2296 = vshll.u32 %v1785, 16
      %v2298 = vrot.slane %v2296, 5
      %v2299 = vor.u32 %v2295, %v2298
      %v2300 = vrot.slane %v2299, 4
      %v2302 = vshll.u32 %v1786, 16
      %v2304 = vrot.slane %v2302, 5
      %v2305 = vsel %vm333, %v2300, %v2304
      %v2306 = vshrl.u32 %v1786, 16
      %v2308 = vrot.slane %v2306, 4
      %v2309 = vor.u32 %v2308, %v2304
      %v2310 = vrot.slane %v2309, 4
      %v2312 = vshll.u32 %v1787, 16
      %v2314 = vrot.slane %v2312, 5
      %v2315 = vsel %vm333, %v2310, %v2314
      %v2317 = vshrl.u32 %v1788, 16
      %v2319 = vrot.slane %v2317, 4
      %v2320 = vshll.u32 %v1788, 16
      %v2322 = vrot.slane %v2320, 5
      %v2323 = vor.u32 %v2319, %v2322
      %v2324 = vrot.slane %v2323, 4
      %v2326 = vshll.u32 %v1789, 16
      %v2328 = vrot.slane %v2326, 5
      %v2329 = vsel %vm333, %v2324, %v2328
      %v2330 = vshrl.u32 %v1789, 16
      %v2332 = vrot.slane %v2330, 4
      %v2333 = vor.u32 %v2332, %v2328
      %v2334 = vrot.slane %v2333, 4
      %v2336 = vshll.u32 %v1790, 16
      %v2338 = vrot.slane %v2336, 5
      %v2339 = vsel %vm333, %v2334, %v2338
      %v2341 = vshrl.u32 %v1791, 16
      %v2343 = vrot.slane %v2341, 4
      %v2344 = vshll.u32 %v1791, 16
      %v2346 = vrot.slane %v2344, 5
      %v2347 = vor.u32 %v2343, %v2346
      %v2348 = vrot.slane %v2347, 4
      %v2350 = vshll.u32 %v1792, 16
      %v2352 = vrot.slane %v2350, 5
      %v2353 = vsel %vm333, %v2348, %v2352
      %v2354 = vshrl.u32 %v1792, 16
      %v2356 = vrot.slane %v2354, 4
      %v2357 = vor.u32 %v2356, %v2352
      %v2358 = vrot.slane %v2357, 4
      %v2360 = vshll.u32 %v1793, 16
      %v2362 = vrot.slane %v2360, 5
      %v2363 = vsel %vm333, %v2358, %v2362
      %v2365 = vshrl.u32 %v1794, 16
      %v2367 = vrot.slane %v2365, 4
      %v2368 = vshll.u32 %v1794, 16
      %v2370 = vrot.slane %v2368, 5
      %v2371 = vor.u32 %v2367, %v2370
      %v2372 = vrot.slane %v2371, 4
      %v2374 = vshll.u32 %v1795, 16
      %v2376 = vrot.slane %v2374, 5
      %v2377 = vsel %vm333, %v2372, %v2376
      %v2378 = vshrl.u32 %v1795, 16
      %v2380 = vrot.slane %v2378, 4
      %v2381 = vor.u32 %v2380, %v2376
      %v2382 = vrot.slane %v2381, 4
      %v2384 = vshll.u32 %v1796, 16
      %v2386 = vrot.slane %v2384, 5
      %v2387 = vsel %vm333, %v2382, %v2386
      %v2389 = vshrl.u32 %v1797, 16
      %v2391 = vrot.slane %v2389, 4
      %v2392 = vshll.u32 %v1797, 16
      %v2394 = vrot.slane %v2392, 5
      %v2395 = vor.u32 %v2391, %v2394
      %v2396 = vrot.slane %v2395, 4
      %v2398 = vshll.u32 %v1798, 16
      %v2400 = vrot.slane %v2398, 5
      %v2401 = vsel %vm333, %v2396, %v2400
      %v2402 = vshrl.u32 %v1798, 16
      %v2404 = vrot.slane %v2402, 4
      %v2405 = vor.u32 %v2404, %v2400
      %v2406 = vrot.slane %v2405, 4
      %v2408 = vshll.u32 %v1799, 16
      %v2410 = vrot.slane %v2408, 5
      %v2411 = vsel %vm333, %v2406, %v2410
      %v2413 = vshrl.u32 %v1800, 16
      %v2415 = vrot.slane %v2413, 4
      %v2416 = vshll.u32 %v1800, 16
      %v2418 = vrot.slane %v2416, 5
      %v2419 = vor.u32 %v2415, %v2418
      %v2420 = vrot.slane %v2419, 4
      %v2422 = vshll.u32 %v1801, 16
      %v2424 = vrot.slane %v2422, 5
      %v2425 = vsel %vm333, %v2420, %v2424
      %v2426 = vshrl.u32 %v1801, 16
      %v2428 = vrot.slane %v2426, 4
      %v2429 = vor.u32 %v2428, %v2424
      %v2430 = vrot.slane %v2429, 4
      %v2432 = vshll.u32 %v1802, 16
      %v2434 = vrot.slane %v2432, 5
      %v2435 = vsel %vm333, %v2430, %v2434
      %v2437 = vshrl.u32 %v1803, 16
      %v2439 = vrot.slane %v2437, 4
      %v2440 = vshll.u32 %v1803, 16
      %v2442 = vrot.slane %v2440, 5
      %v2443 = vor.u32 %v2439, %v2442
      %v2444 = vrot.slane %v2443, 4
      %v2446 = vshll.u32 %v1804, 16
      %v2448 = vrot.slane %v2446, 5
      %v2449 = vsel %vm333, %v2444, %v2448
      %v2450 = vshrl.u32 %v1804, 16
      %v2452 = vrot.slane %v2450, 4
      %v2453 = vor.u32 %v2452, %v2448
      %v2454 = vrot.slane %v2453, 4
      %v2456 = vshll.u32 %v1805, 16
      %v2458 = vrot.slane %v2456, 5
      %v2459 = vsel %vm333, %v2454, %v2458
      %v2461 = vshrl.u32 %v1806, 16
      %v2463 = vrot.slane %v2461, 4
      %v2464 = vshll.u32 %v1806, 16
      %v2466 = vrot.slane %v2464, 5
      %v2467 = vor.u32 %v2463, %v2466
      %v2468 = vrot.slane %v2467, 4
      %v2470 = vshll.u32 %v1807, 16
      %v2472 = vrot.slane %v2470, 5
      %v2473 = vsel %vm333, %v2468, %v2472
      %v2474 = vshrl.u32 %v1807, 16
      %v2476 = vrot.slane %v2474, 4
      %v2477 = vor.u32 %v2476, %v2472
      %v2478 = vrot.slane %v2477, 4
      %v2480 = vshll.u32 %v1808, 16
      %v2482 = vrot.slane %v2480, 5
      %v2483 = vsel %vm333, %v2478, %v2482
      %v2485 = vshrl.u32 %v1809, 16
      %v2487 = vrot.slane %v2485, 4
      %v2488 = vshll.u32 %v1809, 16
      %v2490 = vrot.slane %v2488, 5
      %v2491 = vor.u32 %v2487, %v2490
      %v2492 = vrot.slane %v2491, 4
      %v2494 = vshll.u32 %v1810, 16
      %v2496 = vrot.slane %v2494, 5
      %v2497 = vsel %vm333, %v2492, %v2496
      %v2498 = vshrl.u32 %v1810, 16
      %v2500 = vrot.slane %v2498, 4
      %v2501 = vor.u32 %v2500, %v2496
      %v2502 = vrot.slane %v2501, 4
      %v2504 = vshll.u32 %v1811, 16
      %v2506 = vrot.slane %v2504, 5
      %v2507 = vsel %vm333, %v2502, %v2506
      %v2509 = vshrl.u32 %v1812, 16
      %v2511 = vrot.slane %v2509, 4
      %v2512 = vshll.u32 %v1812, 16
      %v2514 = vrot.slane %v2512, 5
      %v2515 = vor.u32 %v2511, %v2514
      %v2516 = vrot.slane %v2515, 4
      %v2518 = vshll.u32 %v1813, 16
      %v2520 = vrot.slane %v2518, 5
      %v2521 = vsel %vm333, %v2516, %v2520
      %v2522 = vshrl.u32 %v1813, 16
      %v2524 = vrot.slane %v2522, 4
      %v2525 = vor.u32 %v2524, %v2520
      %v2526 = vrot.slane %v2525, 4
      %v2528 = vshll.u32 %v1814, 16
      %v2530 = vrot.slane %v2528, 5
      %v2531 = vsel %vm333, %v2526, %v2530
      %v2533 = vshrl.u32 %v1815, 16
      %v2535 = vrot.slane %v2533, 4
      %v2536 = vshll.u32 %v1815, 16
      %v2538 = vrot.slane %v2536, 5
      %v2539 = vor.u32 %v2535, %v2538
      %v2540 = vrot.slane %v2539, 4
      %v2542 = vshll.u32 %v1816, 16
      %v2544 = vrot.slane %v2542, 5
      %v2545 = vsel %vm333, %v2540, %v2544
      %v2546 = vshrl.u32 %v1816, 16
      %v2548 = vrot.slane %v2546, 4
      %v2549 = vor.u32 %v2548, %v2544
      %v2550 = vrot.slane %v2549, 4
      %v2552 = vshll.u32 %v1817, 16
      %v2554 = vrot.slane %v2552, 5
      %v2555 = vsel %vm333, %v2550, %v2554
      %s2556 = scalar_lea.vmem %s1, 256
      %v2557 = vld [vmem:[%s2556] sm:$0xf]
      %v2558 = vld [vmem:[%s2556 + $0x4] sm:$0xf]
      %v2559 = vld [vmem:[%s2556 + $0x8] sm:$0xf]
      %v2560 = vld [vmem:[%s2556 + $0xc] sm:$0xf]
      %v2561 = vld [vmem:[%s2556 + $0x10] sm:$0xf]
      %v2562 = vld [vmem:[%s2556 + $0x14] sm:$0xf]
      %v2563 = vld [vmem:[%s2556 + $0x18] sm:$0xf]
      %v2564 = vld [vmem:[%s2556 + $0x1c] sm:$0xf]
      %v2565 = vld [vmem:[%s2556 + $0x20] sm:$0xf]
      %v2566 = vld [vmem:[%s2556 + $0x24] sm:$0xf]
      %v2567 = vld [vmem:[%s2556 + $0x28] sm:$0xf]
      %v2568 = vld [vmem:[%s2556 + $0x2c] sm:$0xf]
      %v2569 = vld [vmem:[%s2556 + $0x30] sm:$0xf]
      %v2570 = vld [vmem:[%s2556 + $0x34] sm:$0xf]
      %v2571 = vld [vmem:[%s2556 + $0x38] sm:$0xf]
      %v2572 = vld [vmem:[%s2556 + $0x3c] sm:$0xf]
      %v2573 = vunpack.c.l.b16 %v2185
      %v2574 = vunpack.c.l.b16 %v2195
      %v2575 = vunpack.c.l.b16 %v2209
      %v2576 = vunpack.c.l.b16 %v2219
      %v2577 = vunpack.c.l.b16 %v2233
      %v2578 = vunpack.c.l.b16 %v2243
      %v2579 = vunpack.c.l.b16 %v2257
      %v2580 = vunpack.c.l.b16 %v2267
      %v2581 = vunpack.c.l.b16 %v2281
      %v2582 = vunpack.c.l.b16 %v2291
      %v2583 = vunpack.c.l.b16 %v2305
      %v2584 = vunpack.c.l.b16 %v2315
      %v2585 = vunpack.c.l.b16 %v2329
      %v2586 = vunpack.c.l.b16 %v2339
      %v2587 = vunpack.c.l.b16 %v2353
      %v2588 = vunpack.c.l.b16 %v2363
      %v2589 = vunpack.c.l.b16 %v2377
      %v2590 = vunpack.c.l.b16 %v2387
      %v2591 = vunpack.c.l.b16 %v2401
      %v2592 = vunpack.c.l.b16 %v2411
      %v2593 = vunpack.c.l.b16 %v2425
      %v2594 = vunpack.c.l.b16 %v2435
      %v2595 = vunpack.c.l.b16 %v2449
      %v2596 = vunpack.c.l.b16 %v2459
      %v2597 = vunpack.c.l.b16 %v2473
      %v2598 = vunpack.c.l.b16 %v2483
      %v2599 = vunpack.c.l.b16 %v2497
      %v2600 = vunpack.c.l.b16 %v2507
      %v2601 = vunpack.c.l.b16 %v2521
      %v2602 = vunpack.c.l.b16 %v2531
      %v2603 = vunpack.c.l.b16 %v2545
      %v2604 = vunpack.c.l.b16 %v2555
      %v2605 = vpack.c.b16 %v2574, %v2573
      %v2606 = vpack.c.b16 %v2576, %v2575
      %v2607 = vpack.c.b16 %v2578, %v2577
      %v2608 = vpack.c.b16 %v2580, %v2579
      %v2609 = vpack.c.b16 %v2582, %v2581
      %v2610 = vpack.c.b16 %v2584, %v2583
      %v2611 = vpack.c.b16 %v2586, %v2585
      %v2612 = vpack.c.b16 %v2588, %v2587
      %v2613 = vpack.c.b16 %v2590, %v2589
      %v2614 = vpack.c.b16 %v2592, %v2591
      %v2615 = vpack.c.b16 %v2594, %v2593
      %v2616 = vpack.c.b16 %v2596, %v2595
      %v2617 = vpack.c.b16 %v2598, %v2597
      %v2618 = vpack.c.b16 %v2600, %v2599
      %v2619 = vpack.c.b16 %v2602, %v2601
      %v2620 = vpack.c.b16 %v2604, %v2603
      %v2653 = vunpack.c.l.b16 %v2557
      %v2654 = vunpack.c.l.b16 %v2558
      %v2655 = vunpack.c.l.b16 %v2559
      %v2656 = vunpack.c.l.b16 %v2560
      %v2657 = vunpack.c.l.b16 %v2561
      %v2658 = vunpack.c.l.b16 %v2562
      %v2659 = vunpack.c.l.b16 %v2563
      %v2660 = vunpack.c.l.b16 %v2564
      %v2661 = vunpack.c.l.b16 %v2565
      %v2662 = vunpack.c.l.b16 %v2566
      %v2663 = vunpack.c.l.b16 %v2567
      %v2664 = vunpack.c.l.b16 %v2568
      %v2665 = vunpack.c.l.b16 %v2569
      %v2666 = vunpack.c.l.b16 %v2570
      %v2667 = vunpack.c.l.b16 %v2571
      %v2668 = vunpack.c.l.b16 %v2572
      %v2669 = vpack.c.b16 %v2654, %v2653
      %v2670 = vpack.c.b16 %v2656, %v2655
      %v2671 = vpack.c.b16 %v2658, %v2657
      %v2672 = vpack.c.b16 %v2660, %v2659
      %v2673 = vpack.c.b16 %v2662, %v2661
      %v2674 = vpack.c.b16 %v2664, %v2663
      %v2675 = vpack.c.b16 %v2666, %v2665
      %v2676 = vpack.c.b16 %v2668, %v2667
      %2685 = vmatprep.subr.bf16.mxu0 0
      %2686 = vmatpush1.bf16.msra.mxu0 %v2669
      %2687 = vmatprep.subr.bf16.mxu0 0
      %2688 = vmatpush1.bf16.msra.mxu0 %v2670
      %2689 = vmatprep.subr.bf16.mxu0 0
      %2690 = vmatpush1.bf16.msra.mxu0 %v2671
      %2691 = vmatprep.subr.bf16.mxu0 0
      %2692 = vmatpush1.bf16.msra.mxu0 %v2672
      %2693 = vmatprep.subr.bf16.mxu0 0
      %2694 = vmatpush1.bf16.msra.mxu0 %v2673
      %2695 = vmatprep.subr.bf16.mxu0 0
      %2696 = vmatpush1.bf16.msra.mxu0 %v2674
      %2697 = vmatprep.subr.bf16.mxu0 0
      %2698 = vmatpush1.bf16.msra.mxu0 %v2675
      %2699 = vmatprep.subr.bf16.mxu0 0
      %2700 = vmatpush1.bf16.msra.mxu0 %v2676
      %2701 = vmatprep.subr.bf16.mxu0 0
      %2702 = vmatpush1.bf16.msra.mxu0 0
      %2703 = vmatprep.subr.bf16.mxu0 0
      %2704 = vmatpush1.bf16.msra.mxu0 0
      %2705 = vmatprep.subr.bf16.mxu0 0
      %2706 = vmatpush1.bf16.msra.mxu0 0
      %2707 = vmatprep.subr.bf16.mxu0 0
      %2708 = vmatpush1.bf16.msra.mxu0 0
      %2709 = vmatprep.subr.bf16.mxu0 0
      %2710 = vmatpush1.bf16.msra.mxu0 0
      %2711 = vmatprep.subr.bf16.mxu0 0
      %2712 = vmatpush1.bf16.msra.mxu0 0
      %2713 = vmatprep.subr.bf16.mxu0 0
      %2714 = vmatpush1.bf16.msra.mxu0 0
      %2715 = vmatprep.subr.bf16.mxu0 0
      %2716 = vmatpush1.bf16.msra.mxu0 0
      %2717 = vmatprep.mubr.bf16.mxu0 0
      %2718 = vmatmul.mubr.bf16.gmra.mrb[0].mxu0 %v2605
      %v2719 = vpop.f32.mrb[0].mxu0
      %v2720 = vadd.f32 0.0, %v2719
      %v2721 = vpop.f32.mrb[0].mxu0
      %v2722 = vpop.f32.mrb[0].mxu0
      %v2723 = vadd.f32 0.0, %v2722
      %v2724 = vpop.f32.mrb[0].mxu0
      %2725 = vmatprep.mubr.bf16.mxu0 0
      %2726 = vmatmul.mubr.bf16.gmra.mrb[0].mxu0 %v2606
      %v2727 = vpop.f32.mrb[0].mxu0
      %v2728 = vadd.f32 0.0, %v2727
      %v2729 = vpop.f32.mrb[0].mxu0
      %v2730 = vpop.f32.mrb[0].mxu0
      %v2731 = vadd.f32 0.0, %v2730
      %v2732 = vpop.f32.mrb[0].mxu0
      %2733 = vmatprep.mubr.bf16.mxu0 0
      %2734 = vmatmul.mubr.bf16.gmra.mrb[0].mxu0 %v2607
      %v2735 = vpop.f32.mrb[0].mxu0
      %v2736 = vadd.f32 0.0, %v2735
      %v2737 = vpop.f32.mrb[0].mxu0
      %v2738 = vpop.f32.mrb[0].mxu0
      %v2739 = vadd.f32 0.0, %v2738
      %v2740 = vpop.f32.mrb[0].mxu0
      %2741 = vmatprep.mubr.bf16.mxu0 0
      %2742 = vmatmul.mubr.bf16.gmra.mrb[0].mxu0 %v2608
      %v2743 = vpop.f32.mrb[0].mxu0
      %v2744 = vadd.f32 0.0, %v2743
      %v2745 = vpop.f32.mrb[0].mxu0
      %v2746 = vpop.f32.mrb[0].mxu0
      %v2747 = vadd.f32 0.0, %v2746
      %v2748 = vpop.f32.mrb[0].mxu0
      %2749 = vmatprep.mubr.bf16.mxu0 0
      %2750 = vmatmul.mubr.bf16.gmra.mrb[0].mxu0 %v2609
      %v2751 = vpop.f32.mrb[0].mxu0
      %v2752 = vadd.f32 0.0, %v2751
      %v2753 = vpop.f32.mrb[0].mxu0
      %v2754 = vpop.f32.mrb[0].mxu0
      %v2755 = vadd.f32 0.0, %v2754
      %v2756 = vpop.f32.mrb[0].mxu0
      %2757 = vmatprep.mubr.bf16.mxu0 0
      %2758 = vmatmul.mubr.bf16.gmra.mrb[0].mxu0 %v2610
      %v2759 = vpop.f32.mrb[0].mxu0
      %v2760 = vadd.f32 0.0, %v2759
      %v2761 = vpop.f32.mrb[0].mxu0
      %v2762 = vpop.f32.mrb[0].mxu0
      %v2763 = vadd.f32 0.0, %v2762
      %v2764 = vpop.f32.mrb[0].mxu0
      %2765 = vmatprep.mubr.bf16.mxu0 0
      %2766 = vmatmul.mubr.bf16.gmra.mrb[0].mxu0 %v2611
      %v2767 = vpop.f32.mrb[0].mxu0
      %v2768 = vadd.f32 0.0, %v2767
      %v2769 = vpop.f32.mrb[0].mxu0
      %v2770 = vpop.f32.mrb[0].mxu0
      %v2771 = vadd.f32 0.0, %v2770
      %v2772 = vpop.f32.mrb[0].mxu0
      %2773 = vmatprep.mubr.bf16.mxu0 0
      %2774 = vmatmul.mubr.bf16.gmra.mrb[0].mxu0 %v2612
      %v2775 = vpop.f32.mrb[0].mxu0
      %v2776 = vadd.f32 0.0, %v2775
      %v2777 = vpop.f32.mrb[0].mxu0
      %v2778 = vpop.f32.mrb[0].mxu0
      %v2779 = vadd.f32 0.0, %v2778
      %v2780 = vpop.f32.mrb[0].mxu0
      %2781 = vmatprep.mubr.bf16.mxu0 0
      %2782 = vmatmul.mubr.bf16.gmra.mrb[0].mxu0 %v2613
      %v2783 = vpop.f32.mrb[0].mxu0
      %v2784 = vadd.f32 0.0, %v2783
      %v2785 = vpop.f32.mrb[0].mxu0
      %v2786 = vpop.f32.mrb[0].mxu0
      %v2787 = vadd.f32 0.0, %v2786
      %v2788 = vpop.f32.mrb[0].mxu0
      %2789 = vmatprep.mubr.bf16.mxu0 0
      %2790 = vmatmul.mubr.bf16.gmra.mrb[0].mxu0 %v2614
      %v2791 = vpop.f32.mrb[0].mxu0
      %v2792 = vadd.f32 0.0, %v2791
      %v2793 = vpop.f32.mrb[0].mxu0
      %v2794 = vpop.f32.mrb[0].mxu0
      %v2795 = vadd.f32 0.0, %v2794
      %v2796 = vpop.f32.mrb[0].mxu0
      %2797 = vmatprep.mubr.bf16.mxu0 0
      %2798 = vmatmul.mubr.bf16.gmra.mrb[0].mxu0 %v2615
      %v2799 = vpop.f32.mrb[0].mxu0
      %v2800 = vadd.f32 0.0, %v2799
      %v2801 = vpop.f32.mrb[0].mxu0
      %v2802 = vpop.f32.mrb[0].mxu0
      %v2803 = vadd.f32 0.0, %v2802
      %v2804 = vpop.f32.mrb[0].mxu0
      %2805 = vmatprep.mubr.bf16.mxu0 0
      %2806 = vmatmul.mubr.bf16.gmra.mrb[0].mxu0 %v2616
      %v2807 = vpop.f32.mrb[0].mxu0
      %v2808 = vadd.f32 0.0, %v2807
      %v2809 = vpop.f32.mrb[0].mxu0
      %v2810 = vpop.f32.mrb[0].mxu0
      %v2811 = vadd.f32 0.0, %v2810
      %v2812 = vpop.f32.mrb[0].mxu0
      %2813 = vmatprep.mubr.bf16.mxu0 0
      %2814 = vmatmul.mubr.bf16.gmra.mrb[0].mxu0 %v2617
      %v2815 = vpop.f32.mrb[0].mxu0
      %v2816 = vadd.f32 0.0, %v2815
      %v2817 = vpop.f32.mrb[0].mxu0
      %v2818 = vpop.f32.mrb[0].mxu0
      %v2819 = vadd.f32 0.0, %v2818
      %v2820 = vpop.f32.mrb[0].mxu0
      %2821 = vmatprep.mubr.bf16.mxu0 0
      %2822 = vmatmul.mubr.bf16.gmra.mrb[0].mxu0 %v2618
      %v2823 = vpop.f32.mrb[0].mxu0
      %v2824 = vadd.f32 0.0, %v2823
      %v2825 = vpop.f32.mrb[0].mxu0
      %v2826 = vpop.f32.mrb[0].mxu0
      %v2827 = vadd.f32 0.0, %v2826
      %v2828 = vpop.f32.mrb[0].mxu0
      %2829 = vmatprep.mubr.bf16.mxu0 0
      %2830 = vmatmul.mubr.bf16.gmra.mrb[0].mxu0 %v2619
      %v2831 = vpop.f32.mrb[0].mxu0
      %v2832 = vadd.f32 0.0, %v2831
      %v2833 = vpop.f32.mrb[0].mxu0
      %v2834 = vpop.f32.mrb[0].mxu0
      %v2835 = vadd.f32 0.0, %v2834
      %v2836 = vpop.f32.mrb[0].mxu0
      %2837 = vmatprep.mubr.bf16.mxu0 0
      %2838 = vmatmul.mubr.bf16.gmra.mrb[0].mxu0 %v2620
      %v2839 = vpop.f32.mrb[0].mxu0
      %v2840 = vadd.f32 0.0, %v2839
      %v2841 = vpop.f32.mrb[0].mxu0
      %v2842 = vpop.f32.mrb[0].mxu0
      %v2843 = vadd.f32 0.0, %v2842
      %v2844 = vpop.f32.mrb[0].mxu0
      %2845 = vdwg.mxu0
      %v2846 = vadd.f32 %v2140, %v2720
      %v2847 = vadd.f32 %v2141, %v2723
      %v2848 = vadd.f32 %v2142, %v2728
      %v2849 = vadd.f32 %v2143, %v2731
      %v2850 = vadd.f32 %v2144, %v2736
      %v2851 = vadd.f32 %v2145, %v2739
      %v2852 = vadd.f32 %v2146, %v2744
      %v2853 = vadd.f32 %v2147, %v2747
      %v2854 = vadd.f32 %v2148, %v2752
      %v2855 = vadd.f32 %v2149, %v2755
      %v2856 = vadd.f32 %v2150, %v2760
      %v2857 = vadd.f32 %v2151, %v2763
      %v2858 = vadd.f32 %v2152, %v2768
      %v2859 = vadd.f32 %v2153, %v2771
      %v2860 = vadd.f32 %v2154, %v2776
      %v2861 = vadd.f32 %v2155, %v2779
      %v2862 = vadd.f32 %v2156, %v2784
      %v2863 = vadd.f32 %v2157, %v2787
      %v2864 = vadd.f32 %v2158, %v2792
      %v2865 = vadd.f32 %v2159, %v2795
      %v2866 = vadd.f32 %v2160, %v2800
      %v2867 = vadd.f32 %v2161, %v2803
      %v2868 = vadd.f32 %v2162, %v2808
      %v2869 = vadd.f32 %v2163, %v2811
      %v2870 = vadd.f32 %v2164, %v2816
      %v2871 = vadd.f32 %v2165, %v2819
      %v2872 = vadd.f32 %v2166, %v2824
      %v2873 = vadd.f32 %v2167, %v2827
      %v2874 = vadd.f32 %v2168, %v2832
      %v2875 = vadd.f32 %v2169, %v2835
      %v2876 = vadd.f32 %v2170, %v2840
      %v2877 = vadd.f32 %v2171, %v2843
      %v2894 = vrot.slane %v1770, 5
      %v2895 = vrot.slane %v2894, 4
      %v2896 = vrot.slane %v1771, 5
      %v2897 = vsel %vm1331, %v2895, %v2896
      %v2898 = vrot.slane %v2896, 4
      %v2899 = vrot.slane %v1772, 5
      %v2900 = vsel %vm1331, %v2898, %v2899
      %v2901 = vrot.slane %v1773, 5
      %v2902 = vrot.slane %v2901, 4
      %v2903 = vrot.slane %v1774, 5
      %v2904 = vsel %vm1331, %v2902, %v2903
      %v2905 = vrot.slane %v2903, 4
      %v2906 = vrot.slane %v1775, 5
      %v2907 = vsel %vm1331, %v2905, %v2906
      %v2908 = vrot.slane %v1776, 5
      %v2909 = vrot.slane %v2908, 4
      %v2910 = vrot.slane %v1777, 5
      %v2911 = vsel %vm1331, %v2909, %v2910
      %v2912 = vrot.slane %v2910, 4
      %v2913 = vrot.slane %v1778, 5
      %v2914 = vsel %vm1331, %v2912, %v2913
      %v2915 = vrot.slane %v1779, 5
      %v2916 = vrot.slane %v2915, 4
      %v2917 = vrot.slane %v1780, 5
      %v2918 = vsel %vm1331, %v2916, %v2917
      %v2919 = vrot.slane %v2917, 4
      %v2920 = vrot.slane %v1781, 5
      %v2921 = vsel %vm1331, %v2919, %v2920
      %v2922 = vrot.slane %v1782, 5
      %v2923 = vrot.slane %v2922, 4
      %v2924 = vrot.slane %v1783, 5
      %v2925 = vsel %vm1331, %v2923, %v2924
      %v2926 = vrot.slane %v2924, 4
      %v2927 = vrot.slane %v1784, 5
      %v2928 = vsel %vm1331, %v2926, %v2927
      %v2929 = vrot.slane %v1785, 5
      %v2930 = vrot.slane %v2929, 4
      %v2931 = vrot.slane %v1786, 5
      %v2932 = vsel %vm1331, %v2930, %v2931
      %v2933 = vrot.slane %v2931, 4
      %v2934 = vrot.slane %v1787, 5
      %v2935 = vsel %vm1331, %v2933, %v2934
      %v2936 = vrot.slane %v1788, 5
      %v2937 = vrot.slane %v2936, 4
      %v2938 = vrot.slane %v1789, 5
      %v2939 = vsel %vm1331, %v2937, %v2938
      %v2940 = vrot.slane %v2938, 4
      %v2941 = vrot.slane %v1790, 5
      %v2942 = vsel %vm1331, %v2940, %v2941
      %v2943 = vrot.slane %v1791, 5
      %v2944 = vrot.slane %v2943, 4
      %v2945 = vrot.slane %v1792, 5
      %v2946 = vsel %vm1331, %v2944, %v2945
      %v2947 = vrot.slane %v2945, 4
      %v2948 = vrot.slane %v1793, 5
      %v2949 = vsel %vm1331, %v2947, %v2948
      %v2950 = vrot.slane %v1794, 5
      %v2951 = vrot.slane %v2950, 4
      %v2952 = vrot.slane %v1795, 5
      %v2953 = vsel %vm1331, %v2951, %v2952
      %v2954 = vrot.slane %v2952, 4
      %v2955 = vrot.slane %v1796, 5
      %v2956 = vsel %vm1331, %v2954, %v2955
      %v2957 = vrot.slane %v1797, 5
      %v2958 = vrot.slane %v2957, 4
      %v2959 = vrot.slane %v1798, 5
      %v2960 = vsel %vm1331, %v2958, %v2959
      %v2961 = vrot.slane %v2959, 4
      %v2962 = vrot.slane %v1799, 5
      %v2963 = vsel %vm1331, %v2961, %v2962
      %v2964 = vrot.slane %v1800, 5
      %v2965 = vrot.slane %v2964, 4
      %v2966 = vrot.slane %v1801, 5
      %v2967 = vsel %vm1331, %v2965, %v2966
      %v2968 = vrot.slane %v2966, 4
      %v2969 = vrot.slane %v1802, 5
      %v2970 = vsel %vm1331, %v2968, %v2969
      %v2971 = vrot.slane %v1803, 5
      %v2972 = vrot.slane %v2971, 4
      %v2973 = vrot.slane %v1804, 5
      %v2974 = vsel %vm1331, %v2972, %v2973
      %v2975 = vrot.slane %v2973, 4
      %v2976 = vrot.slane %v1805, 5
      %v2977 = vsel %vm1331, %v2975, %v2976
      %v2978 = vrot.slane %v1806, 5
      %v2979 = vrot.slane %v2978, 4
      %v2980 = vrot.slane %v1807, 5
      %v2981 = vsel %vm1331, %v2979, %v2980
      %v2982 = vrot.slane %v2980, 4
      %v2983 = vrot.slane %v1808, 5
      %v2984 = vsel %vm1331, %v2982, %v2983
      %v2985 = vrot.slane %v1809, 5
      %v2986 = vrot.slane %v2985, 4
      %v2987 = vrot.slane %v1810, 5
      %v2988 = vsel %vm1331, %v2986, %v2987
      %v2989 = vrot.slane %v2987, 4
      %v2990 = vrot.slane %v1811, 5
      %v2991 = vsel %vm1331, %v2989, %v2990
      %v2992 = vrot.slane %v1812, 5
      %v2993 = vrot.slane %v2992, 4
      %v2994 = vrot.slane %v1813, 5
      %v2995 = vsel %vm1331, %v2993, %v2994
      %v2996 = vrot.slane %v2994, 4
      %v2997 = vrot.slane %v1814, 5
      %v2998 = vsel %vm1331, %v2996, %v2997
      %v2999 = vrot.slane %v1815, 5
      %v3000 = vrot.slane %v2999, 4
      %v3001 = vrot.slane %v1816, 5
      %v3002 = vsel %vm1331, %v3000, %v3001
      %v3003 = vrot.slane %v3001, 4
      %v3004 = vrot.slane %v1817, 5
      %v3005 = vsel %vm1331, %v3003, %v3004
      %s3006 = scalar_lea.vmem %s1, 320
      %v3007 = vld [vmem:[%s3006] sm:$0xf]
      %v3008 = vld [vmem:[%s3006 + $0x4] sm:$0xf]
      %v3009 = vld [vmem:[%s3006 + $0x8] sm:$0xf]
      %v3010 = vld [vmem:[%s3006 + $0xc] sm:$0xf]
      %v3011 = vld [vmem:[%s3006 + $0x10] sm:$0xf]
      %v3012 = vld [vmem:[%s3006 + $0x14] sm:$0xf]
      %v3013 = vld [vmem:[%s3006 + $0x18] sm:$0xf]
      %v3014 = vld [vmem:[%s3006 + $0x1c] sm:$0xf]
      %v3015 = vld [vmem:[%s3006 + $0x20] sm:$0xf]
      %v3016 = vld [vmem:[%s3006 + $0x24] sm:$0xf]
      %v3017 = vld [vmem:[%s3006 + $0x28] sm:$0xf]
      %v3018 = vld [vmem:[%s3006 + $0x2c] sm:$0xf]
      %v3019 = vld [vmem:[%s3006 + $0x30] sm:$0xf]
      %v3020 = vld [vmem:[%s3006 + $0x34] sm:$0xf]
      %v3021 = vld [vmem:[%s3006 + $0x38] sm:$0xf]
      %v3022 = vld [vmem:[%s3006 + $0x3c] sm:$0xf]
      %v3023 = vunpack.c.l.b16 %v2897
      %v3024 = vunpack.c.l.b16 %v2900
      %v3025 = vunpack.c.l.b16 %v2904
      %v3026 = vunpack.c.l.b16 %v2907
      %v3027 = vunpack.c.l.b16 %v2911
      %v3028 = vunpack.c.l.b16 %v2914
      %v3029 = vunpack.c.l.b16 %v2918
      %v3030 = vunpack.c.l.b16 %v2921
      %v3031 = vunpack.c.l.b16 %v2925
      %v3032 = vunpack.c.l.b16 %v2928
      %v3033 = vunpack.c.l.b16 %v2932
      %v3034 = vunpack.c.l.b16 %v2935
      %v3035 = vunpack.c.l.b16 %v2939
      %v3036 = vunpack.c.l.b16 %v2942
      %v3037 = vunpack.c.l.b16 %v2946
      %v3038 = vunpack.c.l.b16 %v2949
      %v3039 = vunpack.c.l.b16 %v2953
      %v3040 = vunpack.c.l.b16 %v2956
      %v3041 = vunpack.c.l.b16 %v2960
      %v3042 = vunpack.c.l.b16 %v2963
      %v3043 = vunpack.c.l.b16 %v2967
      %v3044 = vunpack.c.l.b16 %v2970
      %v3045 = vunpack.c.l.b16 %v2974
      %v3046 = vunpack.c.l.b16 %v2977
      %v3047 = vunpack.c.l.b16 %v2981
      %v3048 = vunpack.c.l.b16 %v2984
      %v3049 = vunpack.c.l.b16 %v2988
      %v3050 = vunpack.c.l.b16 %v2991
      %v3051 = vunpack.c.l.b16 %v2995
      %v3052 = vunpack.c.l.b16 %v2998
      %v3053 = vunpack.c.l.b16 %v3002
      %v3054 = vunpack.c.l.b16 %v3005
      %v3055 = vpack.c.b16 %v3024, %v3023
      %v3056 = vpack.c.b16 %v3026, %v3025
      %v3057 = vpack.c.b16 %v3028, %v3027
      %v3058 = vpack.c.b16 %v3030, %v3029
      %v3059 = vpack.c.b16 %v3032, %v3031
      %v3060 = vpack.c.b16 %v3034, %v3033
      %v3061 = vpack.c.b16 %v3036, %v3035
      %v3062 = vpack.c.b16 %v3038, %v3037
      %v3063 = vpack.c.b16 %v3040, %v3039
      %v3064 = vpack.c.b16 %v3042, %v3041
      %v3065 = vpack.c.b16 %v3044, %v3043
      %v3066 = vpack.c.b16 %v3046, %v3045
      %v3067 = vpack.c.b16 %v3048, %v3047
      %v3068 = vpack.c.b16 %v3050, %v3049
      %v3069 = vpack.c.b16 %v3052, %v3051
      %v3070 = vpack.c.b16 %v3054, %v3053
      %v3103 = vunpack.c.l.b16 %v3007
      %v3104 = vunpack.c.l.b16 %v3008
      %v3105 = vunpack.c.l.b16 %v3009
      %v3106 = vunpack.c.l.b16 %v3010
      %v3107 = vunpack.c.l.b16 %v3011
      %v3108 = vunpack.c.l.b16 %v3012
      %v3109 = vunpack.c.l.b16 %v3013
      %v3110 = vunpack.c.l.b16 %v3014
      %v3111 = vunpack.c.l.b16 %v3015
      %v3112 = vunpack.c.l.b16 %v3016
      %v3113 = vunpack.c.l.b16 %v3017
      %v3114 = vunpack.c.l.b16 %v3018
      %v3115 = vunpack.c.l.b16 %v3019
      %v3116 = vunpack.c.l.b16 %v3020
      %v3117 = vunpack.c.l.b16 %v3021
      %v3118 = vunpack.c.l.b16 %v3022
      %v3119 = vpack.c.b16 %v3104, %v3103
      %v3120 = vpack.c.b16 %v3106, %v3105
      %v3121 = vpack.c.b16 %v3108, %v3107
      %v3122 = vpack.c.b16 %v3110, %v3109
      %v3123 = vpack.c.b16 %v3112, %v3111
      %v3124 = vpack.c.b16 %v3114, %v3113
      %v3125 = vpack.c.b16 %v3116, %v3115
      %v3126 = vpack.c.b16 %v3118, %v3117
      %3135 = vmatprep.subr.bf16.mxu0 0
      %3136 = vmatpush1.bf16.msra.mxu0 %v3119
      %3137 = vmatprep.subr.bf16.mxu0 0
      %3138 = vmatpush1.bf16.msra.mxu0 %v3120
      %3139 = vmatprep.subr.bf16.mxu0 0
      %3140 = vmatpush1.bf16.msra.mxu0 %v3121
      %3141 = vmatprep.subr.bf16.mxu0 0
      %3142 = vmatpush1.bf16.msra.mxu0 %v3122
      %3143 = vmatprep.subr.bf16.mxu0 0
      %3144 = vmatpush1.bf16.msra.mxu0 %v3123
      %3145 = vmatprep.subr.bf16.mxu0 0
      %3146 = vmatpush1.bf16.msra.mxu0 %v3124
      %3147 = vmatprep.subr.bf16.mxu0 0
      %3148 = vmatpush1.bf16.msra.mxu0 %v3125
      %3149 = vmatprep.subr.bf16.mxu0 0
      %3150 = vmatpush1.bf16.msra.mxu0 %v3126
      %3151 = vmatprep.subr.bf16.mxu0 0
      %3152 = vmatpush1.bf16.msra.mxu0 0
      %3153 = vmatprep.subr.bf16.mxu0 0
      %3154 = vmatpush1.bf16.msra.mxu0 0
      %3155 = vmatprep.subr.bf16.mxu0 0
      %3156 = vmatpush1.bf16.msra.mxu0 0
      %3157 = vmatprep.subr.bf16.mxu0 0
      %3158 = vmatpush1.bf16.msra.mxu0 0
      %3159 = vmatprep.subr.bf16.mxu0 0
      %3160 = vmatpush1.bf16.msra.mxu0 0
      %3161 = vmatprep.subr.bf16.mxu0 0
      %3162 = vmatpush1.bf16.msra.mxu0 0
      %3163 = vmatprep.subr.bf16.mxu0 0
      %3164 = vmatpush1.bf16.msra.mxu0 0
      %3165 = vmatprep.subr.bf16.mxu0 0
      %3166 = vmatpush1.bf16.msra.mxu0 0
      %3167 = vmatprep.mubr.bf16.mxu0 0
      %3168 = vmatmul.mubr.bf16.gmra.mrb[0].mxu0 %v3055
      %v3169 = vpop.f32.mrb[0].mxu0
      %v3170 = vadd.f32 0.0, %v3169
      %v3171 = vpop.f32.mrb[0].mxu0
      %v3172 = vpop.f32.mrb[0].mxu0
      %v3173 = vadd.f32 0.0, %v3172
      %v3174 = vpop.f32.mrb[0].mxu0
      %3175 = vmatprep.mubr.bf16.mxu0 0
      %3176 = vmatmul.mubr.bf16.gmra.mrb[0].mxu0 %v3056
      %v3177 = vpop.f32.mrb[0].mxu0
      %v3178 = vadd.f32 0.0, %v3177
      %v3179 = vpop.f32.mrb[0].mxu0
      %v3180 = vpop.f32.mrb[0].mxu0
      %v3181 = vadd.f32 0.0, %v3180
      %v3182 = vpop.f32.mrb[0].mxu0
      %3183 = vmatprep.mubr.bf16.mxu0 0
      %3184 = vmatmul.mubr.bf16.gmra.mrb[0].mxu0 %v3057
      %v3185 = vpop.f32.mrb[0].mxu0
      %v3186 = vadd.f32 0.0, %v3185
      %v3187 = vpop.f32.mrb[0].mxu0
      %v3188 = vpop.f32.mrb[0].mxu0
      %v3189 = vadd.f32 0.0, %v3188
      %v3190 = vpop.f32.mrb[0].mxu0
      %3191 = vmatprep.mubr.bf16.mxu0 0
      %3192 = vmatmul.mubr.bf16.gmra.mrb[0].mxu0 %v3058
      %v3193 = vpop.f32.mrb[0].mxu0
      %v3194 = vadd.f32 0.0, %v3193
      %v3195 = vpop.f32.mrb[0].mxu0
      %v3196 = vpop.f32.mrb[0].mxu0
      %v3197 = vadd.f32 0.0, %v3196
      %v3198 = vpop.f32.mrb[0].mxu0
      %3199 = vmatprep.mubr.bf16.mxu0 0
      %3200 = vmatmul.mubr.bf16.gmra.mrb[0].mxu0 %v3059
      %v3201 = vpop.f32.mrb[0].mxu0
      %v3202 = vadd.f32 0.0, %v3201
      %v3203 = vpop.f32.mrb[0].mxu0
      %v3204 = vpop.f32.mrb[0].mxu0
      %v3205 = vadd.f32 0.0, %v3204
      %v3206 = vpop.f32.mrb[0].mxu0
      %3207 = vmatprep.mubr.bf16.mxu0 0
      %3208 = vmatmul.mubr.bf16.gmra.mrb[0].mxu0 %v3060
      %v3209 = vpop.f32.mrb[0].mxu0
      %v3210 = vadd.f32 0.0, %v3209
      %v3211 = vpop.f32.mrb[0].mxu0
      %v3212 = vpop.f32.mrb[0].mxu0
      %v3213 = vadd.f32 0.0, %v3212
      %v3214 = vpop.f32.mrb[0].mxu0
      %3215 = vmatprep.mubr.bf16.mxu0 0
      %3216 = vmatmul.mubr.bf16.gmra.mrb[0].mxu0 %v3061
      %v3217 = vpop.f32.mrb[0].mxu0
      %v3218 = vadd.f32 0.0, %v3217
      %v3219 = vpop.f32.mrb[0].mxu0
      %v3220 = vpop.f32.mrb[0].mxu0
      %v3221 = vadd.f32 0.0, %v3220
      %v3222 = vpop.f32.mrb[0].mxu0
      %3223 = vmatprep.mubr.bf16.mxu0 0
      %3224 = vmatmul.mubr.bf16.gmra.mrb[0].mxu0 %v3062
      %v3225 = vpop.f32.mrb[0].mxu0
      %v3226 = vadd.f32 0.0, %v3225
      %v3227 = vpop.f32.mrb[0].mxu0
      %v3228 = vpop.f32.mrb[0].mxu0
      %v3229 = vadd.f32 0.0, %v3228
      %v3230 = vpop.f32.mrb[0].mxu0
      %3231 = vmatprep.mubr.bf16.mxu0 0
      %3232 = vmatmul.mubr.bf16.gmra.mrb[0].mxu0 %v3063
      %v3233 = vpop.f32.mrb[0].mxu0
      %v3234 = vadd.f32 0.0, %v3233
      %v3235 = vpop.f32.mrb[0].mxu0
      %v3236 = vpop.f32.mrb[0].mxu0
      %v3237 = vadd.f32 0.0, %v3236
      %v3238 = vpop.f32.mrb[0].mxu0
      %3239 = vmatprep.mubr.bf16.mxu0 0
      %3240 = vmatmul.mubr.bf16.gmra.mrb[0].mxu0 %v3064
      %v3241 = vpop.f32.mrb[0].mxu0
      %v3242 = vadd.f32 0.0, %v3241
      %v3243 = vpop.f32.mrb[0].mxu0
      %v3244 = vpop.f32.mrb[0].mxu0
      %v3245 = vadd.f32 0.0, %v3244
      %v3246 = vpop.f32.mrb[0].mxu0
      %3247 = vmatprep.mubr.bf16.mxu0 0
      %3248 = vmatmul.mubr.bf16.gmra.mrb[0].mxu0 %v3065
      %v3249 = vpop.f32.mrb[0].mxu0
      %v3250 = vadd.f32 0.0, %v3249
      %v3251 = vpop.f32.mrb[0].mxu0
      %v3252 = vpop.f32.mrb[0].mxu0
      %v3253 = vadd.f32 0.0, %v3252
      %v3254 = vpop.f32.mrb[0].mxu0
      %3255 = vmatprep.mubr.bf16.mxu0 0
      %3256 = vmatmul.mubr.bf16.gmra.mrb[0].mxu0 %v3066
      %v3257 = vpop.f32.mrb[0].mxu0
      %v3258 = vadd.f32 0.0, %v3257
      %v3259 = vpop.f32.mrb[0].mxu0
      %v3260 = vpop.f32.mrb[0].mxu0
      %v3261 = vadd.f32 0.0, %v3260
      %v3262 = vpop.f32.mrb[0].mxu0
      %3263 = vmatprep.mubr.bf16.mxu0 0
      %3264 = vmatmul.mubr.bf16.gmra.mrb[0].mxu0 %v3067
      %v3265 = vpop.f32.mrb[0].mxu0
      %v3266 = vadd.f32 0.0, %v3265
      %v3267 = vpop.f32.mrb[0].mxu0
      %v3268 = vpop.f32.mrb[0].mxu0
      %v3269 = vadd.f32 0.0, %v3268
      %v3270 = vpop.f32.mrb[0].mxu0
      %3271 = vmatprep.mubr.bf16.mxu0 0
      %3272 = vmatmul.mubr.bf16.gmra.mrb[0].mxu0 %v3068
      %v3273 = vpop.f32.mrb[0].mxu0
      %v3274 = vadd.f32 0.0, %v3273
      %v3275 = vpop.f32.mrb[0].mxu0
      %v3276 = vpop.f32.mrb[0].mxu0
      %v3277 = vadd.f32 0.0, %v3276
      %v3278 = vpop.f32.mrb[0].mxu0
      %3279 = vmatprep.mubr.bf16.mxu0 0
      %3280 = vmatmul.mubr.bf16.gmra.mrb[0].mxu0 %v3069
      %v3281 = vpop.f32.mrb[0].mxu0
      %v3282 = vadd.f32 0.0, %v3281
      %v3283 = vpop.f32.mrb[0].mxu0
      %v3284 = vpop.f32.mrb[0].mxu0
      %v3285 = vadd.f32 0.0, %v3284
      %v3286 = vpop.f32.mrb[0].mxu0
      %3287 = vmatprep.mubr.bf16.mxu0 0
      %3288 = vmatmul.mubr.bf16.gmra.mrb[0].mxu0 %v3070
      %v3289 = vpop.f32.mrb[0].mxu0
      %v3290 = vadd.f32 0.0, %v3289
      %v3291 = vpop.f32.mrb[0].mxu0
      %v3292 = vpop.f32.mrb[0].mxu0
      %v3293 = vadd.f32 0.0, %v3292
      %v3294 = vpop.f32.mrb[0].mxu0
      %3295 = vdwg.mxu0
      %v3296 = vadd.f32 %v2846, %v3170
      %v3297 = vadd.f32 %v2847, %v3173
      %v3298 = vadd.f32 %v2848, %v3178
      %v3299 = vadd.f32 %v2849, %v3181
      %v3300 = vadd.f32 %v2850, %v3186
      %v3301 = vadd.f32 %v2851, %v3189
      %v3302 = vadd.f32 %v2852, %v3194
      %v3303 = vadd.f32 %v2853, %v3197
      %v3304 = vadd.f32 %v2854, %v3202
      %v3305 = vadd.f32 %v2855, %v3205
      %v3306 = vadd.f32 %v2856, %v3210
      %v3307 = vadd.f32 %v2857, %v3213
      %v3308 = vadd.f32 %v2858, %v3218
      %v3309 = vadd.f32 %v2859, %v3221
      %v3310 = vadd.f32 %v2860, %v3226
      %v3311 = vadd.f32 %v2861, %v3229
      %v3312 = vadd.f32 %v2862, %v3234
      %v3313 = vadd.f32 %v2863, %v3237
      %v3314 = vadd.f32 %v2864, %v3242
      %v3315 = vadd.f32 %v2865, %v3245
      %v3316 = vadd.f32 %v2866, %v3250
      %v3317 = vadd.f32 %v2867, %v3253
      %v3318 = vadd.f32 %v2868, %v3258
      %v3319 = vadd.f32 %v2869, %v3261
      %v3320 = vadd.f32 %v2870, %v3266
      %v3321 = vadd.f32 %v2871, %v3269
      %v3322 = vadd.f32 %v2872, %v3274
      %v3323 = vadd.f32 %v2873, %v3277
      %v3324 = vadd.f32 %v2874, %v3282
      %v3325 = vadd.f32 %v2875, %v3285
      %v3326 = vadd.f32 %v2876, %v3290
      %v3327 = vadd.f32 %v2877, %v3293
      %s3328 = sadd.s32 %s263, 2
      %s3329 = smul.u32 %s3328, 3
      %s3330 = smul.addr %s3329, 4
      %s3331 = scalar_lea.vmem %s239, %s3330
      %v3332 = vld [vmem:[%s3331] sm:$0xf]
      %v3333 = vld [vmem:[%s3331 + $0x4] sm:$0xf]
      %v3334 = vld [vmem:[%s3331 + $0x8] sm:$0x1]
      %v3335 = vld [vmem:[%s3331 + $0xc] sm:$0xf]
      %v3336 = vld [vmem:[%s3331 + $0x10] sm:$0xf]
      %v3337 = vld [vmem:[%s3331 + $0x14] sm:$0x1]
      %v3338 = vld [vmem:[%s3331 + $0x18] sm:$0xf]
      %v3339 = vld [vmem:[%s3331 + $0x1c] sm:$0xf]
      %v3340 = vld [vmem:[%s3331 + $0x20] sm:$0x1]
      %v3341 = vld [vmem:[%s3331 + $0x24] sm:$0xf]
      %v3342 = vld [vmem:[%s3331 + $0x28] sm:$0xf]
      %v3343 = vld [vmem:[%s3331 + $0x2c] sm:$0x1]
      %v3344 = vld [vmem:[%s3331 + $0x30] sm:$0xf]
      %v3345 = vld [vmem:[%s3331 + $0x34] sm:$0xf]
      %v3346 = vld [vmem:[%s3331 + $0x38] sm:$0x1]
      %v3347 = vld [vmem:[%s3331 + $0x3c] sm:$0xf]
      %v3348 = vld [vmem:[%s3331 + $0x40] sm:$0xf]
      %v3349 = vld [vmem:[%s3331 + $0x44] sm:$0x1]
      %v3350 = vld [vmem:[%s3331 + $0x48] sm:$0xf]
      %v3351 = vld [vmem:[%s3331 + $0x4c] sm:$0xf]
      %v3352 = vld [vmem:[%s3331 + $0x50] sm:$0x1]
      %v3353 = vld [vmem:[%s3331 + $0x54] sm:$0xf]
      %v3354 = vld [vmem:[%s3331 + $0x58] sm:$0xf]
      %v3355 = vld [vmem:[%s3331 + $0x5c] sm:$0x1]
      %v3356 = vld [vmem:[%s3331 + $0x60] sm:$0xf]
      %v3357 = vld [vmem:[%s3331 + $0x64] sm:$0xf]
      %v3358 = vld [vmem:[%s3331 + $0x68] sm:$0x1]
      %v3359 = vld [vmem:[%s3331 + $0x6c] sm:$0xf]
      %v3360 = vld [vmem:[%s3331 + $0x70] sm:$0xf]
      %v3361 = vld [vmem:[%s3331 + $0x74] sm:$0x1]
      %v3362 = vld [vmem:[%s3331 + $0x78] sm:$0xf]
      %v3363 = vld [vmem:[%s3331 + $0x7c] sm:$0xf]
      %v3364 = vld [vmem:[%s3331 + $0x80] sm:$0x1]
      %v3365 = vld [vmem:[%s3331 + $0x84] sm:$0xf]
      %v3366 = vld [vmem:[%s3331 + $0x88] sm:$0xf]
      %v3367 = vld [vmem:[%s3331 + $0x8c] sm:$0x1]
      %v3368 = vld [vmem:[%s3331 + $0x90] sm:$0xf]
      %v3369 = vld [vmem:[%s3331 + $0x94] sm:$0xf]
      %v3370 = vld [vmem:[%s3331 + $0x98] sm:$0x1]
      %v3371 = vld [vmem:[%s3331 + $0x9c] sm:$0xf]
      %v3372 = vld [vmem:[%s3331 + $0xa0] sm:$0xf]
      %v3373 = vld [vmem:[%s3331 + $0xa4] sm:$0x1]
      %v3374 = vld [vmem:[%s3331 + $0xa8] sm:$0xf]
      %v3375 = vld [vmem:[%s3331 + $0xac] sm:$0xf]
      %v3376 = vld [vmem:[%s3331 + $0xb0] sm:$0x1]
      %v3377 = vld [vmem:[%s3331 + $0xb4] sm:$0xf]
      %v3378 = vld [vmem:[%s3331 + $0xb8] sm:$0xf]
      %v3379 = vld [vmem:[%s3331 + $0xbc] sm:$0x1]
      %s3380 = scalar_lea.vmem %s1, 384
      %v3381 = vld [vmem:[%s3380] sm:$0xf]
      %v3382 = vld [vmem:[%s3380 + $0x4] sm:$0xf]
      %v3383 = vld [vmem:[%s3380 + $0x8] sm:$0xf]
      %v3384 = vld [vmem:[%s3380 + $0xc] sm:$0xf]
      %v3385 = vld [vmem:[%s3380 + $0x10] sm:$0xf]
      %v3386 = vld [vmem:[%s3380 + $0x14] sm:$0xf]
      %v3387 = vld [vmem:[%s3380 + $0x18] sm:$0xf]
      %v3388 = vld [vmem:[%s3380 + $0x1c] sm:$0xf]
      %v3389 = vld [vmem:[%s3380 + $0x20] sm:$0xf]
      %v3390 = vld [vmem:[%s3380 + $0x24] sm:$0xf]
      %v3391 = vld [vmem:[%s3380 + $0x28] sm:$0xf]
      %v3392 = vld [vmem:[%s3380 + $0x2c] sm:$0xf]
      %v3393 = vld [vmem:[%s3380 + $0x30] sm:$0xf]
      %v3394 = vld [vmem:[%s3380 + $0x34] sm:$0xf]
      %v3395 = vld [vmem:[%s3380 + $0x38] sm:$0xf]
      %v3396 = vld [vmem:[%s3380 + $0x3c] sm:$0xf]
      %v3429 = vunpack.c.l.b16 %v3332
      %v3430 = vunpack.c.l.b16 %v3333
      %v3431 = vunpack.c.l.b16 %v3335
      %v3432 = vunpack.c.l.b16 %v3336
      %v3433 = vunpack.c.l.b16 %v3338
      %v3434 = vunpack.c.l.b16 %v3339
      %v3435 = vunpack.c.l.b16 %v3341
      %v3436 = vunpack.c.l.b16 %v3342
      %v3437 = vunpack.c.l.b16 %v3344
      %v3438 = vunpack.c.l.b16 %v3345
      %v3439 = vunpack.c.l.b16 %v3347
      %v3440 = vunpack.c.l.b16 %v3348
      %v3441 = vunpack.c.l.b16 %v3350
      %v3442 = vunpack.c.l.b16 %v3351
      %v3443 = vunpack.c.l.b16 %v3353
      %v3444 = vunpack.c.l.b16 %v3354
      %v3445 = vunpack.c.l.b16 %v3356
      %v3446 = vunpack.c.l.b16 %v3357
      %v3447 = vunpack.c.l.b16 %v3359
      %v3448 = vunpack.c.l.b16 %v3360
      %v3449 = vunpack.c.l.b16 %v3362
      %v3450 = vunpack.c.l.b16 %v3363
      %v3451 = vunpack.c.l.b16 %v3365
      %v3452 = vunpack.c.l.b16 %v3366
      %v3453 = vunpack.c.l.b16 %v3368
      %v3454 = vunpack.c.l.b16 %v3369
      %v3455 = vunpack.c.l.b16 %v3371
      %v3456 = vunpack.c.l.b16 %v3372
      %v3457 = vunpack.c.l.b16 %v3374
      %v3458 = vunpack.c.l.b16 %v3375
      %v3459 = vunpack.c.l.b16 %v3377
      %v3460 = vunpack.c.l.b16 %v3378
      %v3461 = vpack.c.b16 %v3430, %v3429
      %v3462 = vpack.c.b16 %v3432, %v3431
      %v3463 = vpack.c.b16 %v3434, %v3433
      %v3464 = vpack.c.b16 %v3436, %v3435
      %v3465 = vpack.c.b16 %v3438, %v3437
      %v3466 = vpack.c.b16 %v3440, %v3439
      %v3467 = vpack.c.b16 %v3442, %v3441
      %v3468 = vpack.c.b16 %v3444, %v3443
      %v3469 = vpack.c.b16 %v3446, %v3445
      %v3470 = vpack.c.b16 %v3448, %v3447
      %v3471 = vpack.c.b16 %v3450, %v3449
      %v3472 = vpack.c.b16 %v3452, %v3451
      %v3473 = vpack.c.b16 %v3454, %v3453
      %v3474 = vpack.c.b16 %v3456, %v3455
      %v3475 = vpack.c.b16 %v3458, %v3457
      %v3476 = vpack.c.b16 %v3460, %v3459
      %v3509 = vunpack.c.l.b16 %v3381
      %v3510 = vunpack.c.l.b16 %v3382
      %v3511 = vunpack.c.l.b16 %v3383
      %v3512 = vunpack.c.l.b16 %v3384
      %v3513 = vunpack.c.l.b16 %v3385
      %v3514 = vunpack.c.l.b16 %v3386
      %v3515 = vunpack.c.l.b16 %v3387
      %v3516 = vunpack.c.l.b16 %v3388
      %v3517 = vunpack.c.l.b16 %v3389
      %v3518 = vunpack.c.l.b16 %v3390
      %v3519 = vunpack.c.l.b16 %v3391
      %v3520 = vunpack.c.l.b16 %v3392
      %v3521 = vunpack.c.l.b16 %v3393
      %v3522 = vunpack.c.l.b16 %v3394
      %v3523 = vunpack.c.l.b16 %v3395
      %v3524 = vunpack.c.l.b16 %v3396
      %v3525 = vpack.c.b16 %v3510, %v3509
      %v3526 = vpack.c.b16 %v3512, %v3511
      %v3527 = vpack.c.b16 %v3514, %v3513
      %v3528 = vpack.c.b16 %v3516, %v3515
      %v3529 = vpack.c.b16 %v3518, %v3517
      %v3530 = vpack.c.b16 %v3520, %v3519
      %v3531 = vpack.c.b16 %v3522, %v3521
      %v3532 = vpack.c.b16 %v3524, %v3523
      %3541 = vmatprep.subr.bf16.mxu0 0
      %3542 = vmatpush1.bf16.msra.mxu0 %v3525
      %3543 = vmatprep.subr.bf16.mxu0 0
      %3544 = vmatpush1.bf16.msra.mxu0 %v3526
      %3545 = vmatprep.subr.bf16.mxu0 0
      %3546 = vmatpush1.bf16.msra.mxu0 %v3527
      %3547 = vmatprep.subr.bf16.mxu0 0
      %3548 = vmatpush1.bf16.msra.mxu0 %v3528
      %3549 = vmatprep.subr.bf16.mxu0 0
      %3550 = vmatpush1.bf16.msra.mxu0 %v3529
      %3551 = vmatprep.subr.bf16.mxu0 0
      %3552 = vmatpush1.bf16.msra.mxu0 %v3530
      %3553 = vmatprep.subr.bf16.mxu0 0
      %3554 = vmatpush1.bf16.msra.mxu0 %v3531
      %3555 = vmatprep.subr.bf16.mxu0 0
      %3556 = vmatpush1.bf16.msra.mxu0 %v3532
      %3557 = vmatprep.subr.bf16.mxu0 0
      %3558 = vmatpush1.bf16.msra.mxu0 0
      %3559 = vmatprep.subr.bf16.mxu0 0
      %3560 = vmatpush1.bf16.msra.mxu0 0
      %3561 = vmatprep.subr.bf16.mxu0 0
      %3562 = vmatpush1.bf16.msra.mxu0 0
      %3563 = vmatprep.subr.bf16.mxu0 0
      %3564 = vmatpush1.bf16.msra.mxu0 0
      %3565 = vmatprep.subr.bf16.mxu0 0
      %3566 = vmatpush1.bf16.msra.mxu0 0
      %3567 = vmatprep.subr.bf16.mxu0 0
      %3568 = vmatpush1.bf16.msra.mxu0 0
      %3569 = vmatprep.subr.bf16.mxu0 0
      %3570 = vmatpush1.bf16.msra.mxu0 0
      %3571 = vmatprep.subr.bf16.mxu0 0
      %3572 = vmatpush1.bf16.msra.mxu0 0
      %3573 = vmatprep.mubr.bf16.mxu0 0
      %3574 = vmatmul.mubr.bf16.gmra.mrb[0].mxu0 %v3461
      %v3575 = vpop.f32.mrb[0].mxu0
      %v3576 = vadd.f32 0.0, %v3575
      %v3577 = vpop.f32.mrb[0].mxu0
      %v3578 = vpop.f32.mrb[0].mxu0
      %v3579 = vadd.f32 0.0, %v3578
      %v3580 = vpop.f32.mrb[0].mxu0
      %3581 = vmatprep.mubr.bf16.mxu0 0
      %3582 = vmatmul.mubr.bf16.gmra.mrb[0].mxu0 %v3462
      %v3583 = vpop.f32.mrb[0].mxu0
      %v3584 = vadd.f32 0.0, %v3583
      %v3585 = vpop.f32.mrb[0].mxu0
      %v3586 = vpop.f32.mrb[0].mxu0
      %v3587 = vadd.f32 0.0, %v3586
      %v3588 = vpop.f32.mrb[0].mxu0
      %3589 = vmatprep.mubr.bf16.mxu0 0
      %3590 = vmatmul.mubr.bf16.gmra.mrb[0].mxu0 %v3463
      %v3591 = vpop.f32.mrb[0].mxu0
      %v3592 = vadd.f32 0.0, %v3591
      %v3593 = vpop.f32.mrb[0].mxu0
      %v3594 = vpop.f32.mrb[0].mxu0
      %v3595 = vadd.f32 0.0, %v3594
      %v3596 = vpop.f32.mrb[0].mxu0
      %3597 = vmatprep.mubr.bf16.mxu0 0
      %3598 = vmatmul.mubr.bf16.gmra.mrb[0].mxu0 %v3464
      %v3599 = vpop.f32.mrb[0].mxu0
      %v3600 = vadd.f32 0.0, %v3599
      %v3601 = vpop.f32.mrb[0].mxu0
      %v3602 = vpop.f32.mrb[0].mxu0
      %v3603 = vadd.f32 0.0, %v3602
      %v3604 = vpop.f32.mrb[0].mxu0
      %3605 = vmatprep.mubr.bf16.mxu0 0
      %3606 = vmatmul.mubr.bf16.gmra.mrb[0].mxu0 %v3465
      %v3607 = vpop.f32.mrb[0].mxu0
      %v3608 = vadd.f32 0.0, %v3607
      %v3609 = vpop.f32.mrb[0].mxu0
      %v3610 = vpop.f32.mrb[0].mxu0
      %v3611 = vadd.f32 0.0, %v3610
      %v3612 = vpop.f32.mrb[0].mxu0
      %3613 = vmatprep.mubr.bf16.mxu0 0
      %3614 = vmatmul.mubr.bf16.gmra.mrb[0].mxu0 %v3466
      %v3615 = vpop.f32.mrb[0].mxu0
      %v3616 = vadd.f32 0.0, %v3615
      %v3617 = vpop.f32.mrb[0].mxu0
      %v3618 = vpop.f32.mrb[0].mxu0
      %v3619 = vadd.f32 0.0, %v3618
      %v3620 = vpop.f32.mrb[0].mxu0
      %3621 = vmatprep.mubr.bf16.mxu0 0
      %3622 = vmatmul.mubr.bf16.gmra.mrb[0].mxu0 %v3467
      %v3623 = vpop.f32.mrb[0].mxu0
      %v3624 = vadd.f32 0.0, %v3623
      %v3625 = vpop.f32.mrb[0].mxu0
      %v3626 = vpop.f32.mrb[0].mxu0
      %v3627 = vadd.f32 0.0, %v3626
      %v3628 = vpop.f32.mrb[0].mxu0
      %3629 = vmatprep.mubr.bf16.mxu0 0
      %3630 = vmatmul.mubr.bf16.gmra.mrb[0].mxu0 %v3468
      %v3631 = vpop.f32.mrb[0].mxu0
      %v3632 = vadd.f32 0.0, %v3631
      %v3633 = vpop.f32.mrb[0].mxu0
      %v3634 = vpop.f32.mrb[0].mxu0
      %v3635 = vadd.f32 0.0, %v3634
      %v3636 = vpop.f32.mrb[0].mxu0
      %3637 = vmatprep.mubr.bf16.mxu0 0
      %3638 = vmatmul.mubr.bf16.gmra.mrb[0].mxu0 %v3469
      %v3639 = vpop.f32.mrb[0].mxu0
      %v3640 = vadd.f32 0.0, %v3639
      %v3641 = vpop.f32.mrb[0].mxu0
      %v3642 = vpop.f32.mrb[0].mxu0
      %v3643 = vadd.f32 0.0, %v3642
      %v3644 = vpop.f32.mrb[0].mxu0
      %3645 = vmatprep.mubr.bf16.mxu0 0
      %3646 = vmatmul.mubr.bf16.gmra.mrb[0].mxu0 %v3470
      %v3647 = vpop.f32.mrb[0].mxu0
      %v3648 = vadd.f32 0.0, %v3647
      %v3649 = vpop.f32.mrb[0].mxu0
      %v3650 = vpop.f32.mrb[0].mxu0
      %v3651 = vadd.f32 0.0, %v3650
      %v3652 = vpop.f32.mrb[0].mxu0
      %3653 = vmatprep.mubr.bf16.mxu0 0
      %3654 = vmatmul.mubr.bf16.gmra.mrb[0].mxu0 %v3471
      %v3655 = vpop.f32.mrb[0].mxu0
      %v3656 = vadd.f32 0.0, %v3655
      %v3657 = vpop.f32.mrb[0].mxu0
      %v3658 = vpop.f32.mrb[0].mxu0
      %v3659 = vadd.f32 0.0, %v3658
      %v3660 = vpop.f32.mrb[0].mxu0
      %3661 = vmatprep.mubr.bf16.mxu0 0
      %3662 = vmatmul.mubr.bf16.gmra.mrb[0].mxu0 %v3472
      %v3663 = vpop.f32.mrb[0].mxu0
      %v3664 = vadd.f32 0.0, %v3663
      %v3665 = vpop.f32.mrb[0].mxu0
      %v3666 = vpop.f32.mrb[0].mxu0
      %v3667 = vadd.f32 0.0, %v3666
      %v3668 = vpop.f32.mrb[0].mxu0
      %3669 = vmatprep.mubr.bf16.mxu0 0
      %3670 = vmatmul.mubr.bf16.gmra.mrb[0].mxu0 %v3473
      %v3671 = vpop.f32.mrb[0].mxu0
      %v3672 = vadd.f32 0.0, %v3671
      %v3673 = vpop.f32.mrb[0].mxu0
      %v3674 = vpop.f32.mrb[0].mxu0
      %v3675 = vadd.f32 0.0, %v3674
      %v3676 = vpop.f32.mrb[0].mxu0
      %3677 = vmatprep.mubr.bf16.mxu0 0
      %3678 = vmatmul.mubr.bf16.gmra.mrb[0].mxu0 %v3474
      %v3679 = vpop.f32.mrb[0].mxu0
      %v3680 = vadd.f32 0.0, %v3679
      %v3681 = vpop.f32.mrb[0].mxu0
      %v3682 = vpop.f32.mrb[0].mxu0
      %v3683 = vadd.f32 0.0, %v3682
      %v3684 = vpop.f32.mrb[0].mxu0
      %3685 = vmatprep.mubr.bf16.mxu0 0
      %3686 = vmatmul.mubr.bf16.gmra.mrb[0].mxu0 %v3475
      %v3687 = vpop.f32.mrb[0].mxu0
      %v3688 = vadd.f32 0.0, %v3687
      %v3689 = vpop.f32.mrb[0].mxu0
      %v3690 = vpop.f32.mrb[0].mxu0
      %v3691 = vadd.f32 0.0, %v3690
      %v3692 = vpop.f32.mrb[0].mxu0
      %3693 = vmatprep.mubr.bf16.mxu0 0
      %3694 = vmatmul.mubr.bf16.gmra.mrb[0].mxu0 %v3476
      %v3695 = vpop.f32.mrb[0].mxu0
      %v3696 = vadd.f32 0.0, %v3695
      %v3697 = vpop.f32.mrb[0].mxu0
      %v3698 = vpop.f32.mrb[0].mxu0
      %v3699 = vadd.f32 0.0, %v3698
      %v3700 = vpop.f32.mrb[0].mxu0
      %3701 = vdwg.mxu0
      %v3702 = vadd.f32 %v3296, %v3576
      %v3703 = vadd.f32 %v3297, %v3579
      %v3704 = vadd.f32 %v3298, %v3584
      %v3705 = vadd.f32 %v3299, %v3587
      %v3706 = vadd.f32 %v3300, %v3592
      %v3707 = vadd.f32 %v3301, %v3595
      %v3708 = vadd.f32 %v3302, %v3600
      %v3709 = vadd.f32 %v3303, %v3603
      %v3710 = vadd.f32 %v3304, %v3608
      %v3711 = vadd.f32 %v3305, %v3611
      %v3712 = vadd.f32 %v3306, %v3616
      %v3713 = vadd.f32 %v3307, %v3619
      %v3714 = vadd.f32 %v3308, %v3624
      %v3715 = vadd.f32 %v3309, %v3627
      %v3716 = vadd.f32 %v3310, %v3632
      %v3717 = vadd.f32 %v3311, %v3635
      %v3718 = vadd.f32 %v3312, %v3640
      %v3719 = vadd.f32 %v3313, %v3643
      %v3720 = vadd.f32 %v3314, %v3648
      %v3721 = vadd.f32 %v3315, %v3651
      %v3722 = vadd.f32 %v3316, %v3656
      %v3723 = vadd.f32 %v3317, %v3659
      %v3724 = vadd.f32 %v3318, %v3664
      %v3725 = vadd.f32 %v3319, %v3667
      %v3726 = vadd.f32 %v3320, %v3672
      %v3727 = vadd.f32 %v3321, %v3675
      %v3728 = vadd.f32 %v3322, %v3680
      %v3729 = vadd.f32 %v3323, %v3683
      %v3730 = vadd.f32 %v3324, %v3688
      %v3731 = vadd.f32 %v3325, %v3691
      %v3732 = vadd.f32 %v3326, %v3696
      %v3733 = vadd.f32 %v3327, %v3699
      %v3735 = vshrl.u32 %v3332, 16
      %v3737 = vrot.slane %v3735, 4
      %v3738 = vshll.u32 %v3332, 16
      %v3740 = vrot.slane %v3738, 5
      %v3741 = vor.u32 %v3737, %v3740
      %v3742 = vrot.slane %v3741, 4
      %v3744 = vshll.u32 %v3333, 16
      %v3746 = vrot.slane %v3744, 5
      %v3747 = vsel %vm333, %v3742, %v3746
      %v3748 = vshrl.u32 %v3333, 16
      %v3750 = vrot.slane %v3748, 4
      %v3751 = vor.u32 %v3750, %v3746
      %v3752 = vrot.slane %v3751, 4
      %v3754 = vshll.u32 %v3334, 16
      %v3756 = vrot.slane %v3754, 5
      %v3757 = vsel %vm333, %v3752, %v3756
      %v3759 = vshrl.u32 %v3335, 16
      %v3761 = vrot.slane %v3759, 4
      %v3762 = vshll.u32 %v3335, 16
      %v3764 = vrot.slane %v3762, 5
      %v3765 = vor.u32 %v3761, %v3764
      %v3766 = vrot.slane %v3765, 4
      %v3768 = vshll.u32 %v3336, 16
      %v3770 = vrot.slane %v3768, 5
      %v3771 = vsel %vm333, %v3766, %v3770
      %v3772 = vshrl.u32 %v3336, 16
      %v3774 = vrot.slane %v3772, 4
      %v3775 = vor.u32 %v3774, %v3770
      %v3776 = vrot.slane %v3775, 4
      %v3778 = vshll.u32 %v3337, 16
      %v3780 = vrot.slane %v3778, 5
      %v3781 = vsel %vm333, %v3776, %v3780
      %v3783 = vshrl.u32 %v3338, 16
      %v3785 = vrot.slane %v3783, 4
      %v3786 = vshll.u32 %v3338, 16
      %v3788 = vrot.slane %v3786, 5
      %v3789 = vor.u32 %v3785, %v3788
      %v3790 = vrot.slane %v3789, 4
      %v3792 = vshll.u32 %v3339, 16
      %v3794 = vrot.slane %v3792, 5
      %v3795 = vsel %vm333, %v3790, %v3794
      %v3796 = vshrl.u32 %v3339, 16
      %v3798 = vrot.slane %v3796, 4
      %v3799 = vor.u32 %v3798, %v3794
      %v3800 = vrot.slane %v3799, 4
      %v3802 = vshll.u32 %v3340, 16
      %v3804 = vrot.slane %v3802, 5
      %v3805 = vsel %vm333, %v3800, %v3804
      %v3807 = vshrl.u32 %v3341, 16
      %v3809 = vrot.slane %v3807, 4
      %v3810 = vshll.u32 %v3341, 16
      %v3812 = vrot.slane %v3810, 5
      %v3813 = vor.u32 %v3809, %v3812
      %v3814 = vrot.slane %v3813, 4
      %v3816 = vshll.u32 %v3342, 16
      %v3818 = vrot.slane %v3816, 5
      %v3819 = vsel %vm333, %v3814, %v3818
      %v3820 = vshrl.u32 %v3342, 16
      %v3822 = vrot.slane %v3820, 4
      %v3823 = vor.u32 %v3822, %v3818
      %v3824 = vrot.slane %v3823, 4
      %v3826 = vshll.u32 %v3343, 16
      %v3828 = vrot.slane %v3826, 5
      %v3829 = vsel %vm333, %v3824, %v3828
      %v3831 = vshrl.u32 %v3344, 16
      %v3833 = vrot.slane %v3831, 4
      %v3834 = vshll.u32 %v3344, 16
      %v3836 = vrot.slane %v3834, 5
      %v3837 = vor.u32 %v3833, %v3836
      %v3838 = vrot.slane %v3837, 4
      %v3840 = vshll.u32 %v3345, 16
      %v3842 = vrot.slane %v3840, 5
      %v3843 = vsel %vm333, %v3838, %v3842
      %v3844 = vshrl.u32 %v3345, 16
      %v3846 = vrot.slane %v3844, 4
      %v3847 = vor.u32 %v3846, %v3842
      %v3848 = vrot.slane %v3847, 4
      %v3850 = vshll.u32 %v3346, 16
      %v3852 = vrot.slane %v3850, 5
      %v3853 = vsel %vm333, %v3848, %v3852
      %v3855 = vshrl.u32 %v3347, 16
      %v3857 = vrot.slane %v3855, 4
      %v3858 = vshll.u32 %v3347, 16
      %v3860 = vrot.slane %v3858, 5
      %v3861 = vor.u32 %v3857, %v3860
      %v3862 = vrot.slane %v3861, 4
      %v3864 = vshll.u32 %v3348, 16
      %v3866 = vrot.slane %v3864, 5
      %v3867 = vsel %vm333, %v3862, %v3866
      %v3868 = vshrl.u32 %v3348, 16
      %v3870 = vrot.slane %v3868, 4
      %v3871 = vor.u32 %v3870, %v3866
      %v3872 = vrot.slane %v3871, 4
      %v3874 = vshll.u32 %v3349, 16
      %v3876 = vrot.slane %v3874, 5
      %v3877 = vsel %vm333, %v3872, %v3876
      %v3879 = vshrl.u32 %v3350, 16
      %v3881 = vrot.slane %v3879, 4
      %v3882 = vshll.u32 %v3350, 16
      %v3884 = vrot.slane %v3882, 5
      %v3885 = vor.u32 %v3881, %v3884
      %v3886 = vrot.slane %v3885, 4
      %v3888 = vshll.u32 %v3351, 16
      %v3890 = vrot.slane %v3888, 5
      %v3891 = vsel %vm333, %v3886, %v3890
      %v3892 = vshrl.u32 %v3351, 16
      %v3894 = vrot.slane %v3892, 4
      %v3895 = vor.u32 %v3894, %v3890
      %v3896 = vrot.slane %v3895, 4
      %v3898 = vshll.u32 %v3352, 16
      %v3900 = vrot.slane %v3898, 5
      %v3901 = vsel %vm333, %v3896, %v3900
      %v3903 = vshrl.u32 %v3353, 16
      %v3905 = vrot.slane %v3903, 4
      %v3906 = vshll.u32 %v3353, 16
      %v3908 = vrot.slane %v3906, 5
      %v3909 = vor.u32 %v3905, %v3908
      %v3910 = vrot.slane %v3909, 4
      %v3912 = vshll.u32 %v3354, 16
      %v3914 = vrot.slane %v3912, 5
      %v3915 = vsel %vm333, %v3910, %v3914
      %v3916 = vshrl.u32 %v3354, 16
      %v3918 = vrot.slane %v3916, 4
      %v3919 = vor.u32 %v3918, %v3914
      %v3920 = vrot.slane %v3919, 4
      %v3922 = vshll.u32 %v3355, 16
      %v3924 = vrot.slane %v3922, 5
      %v3925 = vsel %vm333, %v3920, %v3924
      %v3927 = vshrl.u32 %v3356, 16
      %v3929 = vrot.slane %v3927, 4
      %v3930 = vshll.u32 %v3356, 16
      %v3932 = vrot.slane %v3930, 5
      %v3933 = vor.u32 %v3929, %v3932
      %v3934 = vrot.slane %v3933, 4
      %v3936 = vshll.u32 %v3357, 16
      %v3938 = vrot.slane %v3936, 5
      %v3939 = vsel %vm333, %v3934, %v3938
      %v3940 = vshrl.u32 %v3357, 16
      %v3942 = vrot.slane %v3940, 4
      %v3943 = vor.u32 %v3942, %v3938
      %v3944 = vrot.slane %v3943, 4
      %v3946 = vshll.u32 %v3358, 16
      %v3948 = vrot.slane %v3946, 5
      %v3949 = vsel %vm333, %v3944, %v3948
      %v3951 = vshrl.u32 %v3359, 16
      %v3953 = vrot.slane %v3951, 4
      %v3954 = vshll.u32 %v3359, 16
      %v3956 = vrot.slane %v3954, 5
      %v3957 = vor.u32 %v3953, %v3956
      %v3958 = vrot.slane %v3957, 4
      %v3960 = vshll.u32 %v3360, 16
      %v3962 = vrot.slane %v3960, 5
      %v3963 = vsel %vm333, %v3958, %v3962
      %v3964 = vshrl.u32 %v3360, 16
      %v3966 = vrot.slane %v3964, 4
      %v3967 = vor.u32 %v3966, %v3962
      %v3968 = vrot.slane %v3967, 4
      %v3970 = vshll.u32 %v3361, 16
      %v3972 = vrot.slane %v3970, 5
      %v3973 = vsel %vm333, %v3968, %v3972
      %v3975 = vshrl.u32 %v3362, 16
      %v3977 = vrot.slane %v3975, 4
      %v3978 = vshll.u32 %v3362, 16
      %v3980 = vrot.slane %v3978, 5
      %v3981 = vor.u32 %v3977, %v3980
      %v3982 = vrot.slane %v3981, 4
      %v3984 = vshll.u32 %v3363, 16
      %v3986 = vrot.slane %v3984, 5
      %v3987 = vsel %vm333, %v3982, %v3986
      %v3988 = vshrl.u32 %v3363, 16
      %v3990 = vrot.slane %v3988, 4
      %v3991 = vor.u32 %v3990, %v3986
      %v3992 = vrot.slane %v3991, 4
      %v3994 = vshll.u32 %v3364, 16
      %v3996 = vrot.slane %v3994, 5
      %v3997 = vsel %vm333, %v3992, %v3996
      %v3999 = vshrl.u32 %v3365, 16
      %v4001 = vrot.slane %v3999, 4
      %v4002 = vshll.u32 %v3365, 16
      %v4004 = vrot.slane %v4002, 5
      %v4005 = vor.u32 %v4001, %v4004
      %v4006 = vrot.slane %v4005, 4
      %v4008 = vshll.u32 %v3366, 16
      %v4010 = vrot.slane %v4008, 5
      %v4011 = vsel %vm333, %v4006, %v4010
      %v4012 = vshrl.u32 %v3366, 16
      %v4014 = vrot.slane %v4012, 4
      %v4015 = vor.u32 %v4014, %v4010
      %v4016 = vrot.slane %v4015, 4
      %v4018 = vshll.u32 %v3367, 16
      %v4020 = vrot.slane %v4018, 5
      %v4021 = vsel %vm333, %v4016, %v4020
      %v4023 = vshrl.u32 %v3368, 16
      %v4025 = vrot.slane %v4023, 4
      %v4026 = vshll.u32 %v3368, 16
      %v4028 = vrot.slane %v4026, 5
      %v4029 = vor.u32 %v4025, %v4028
      %v4030 = vrot.slane %v4029, 4
      %v4032 = vshll.u32 %v3369, 16
      %v4034 = vrot.slane %v4032, 5
      %v4035 = vsel %vm333, %v4030, %v4034
      %v4036 = vshrl.u32 %v3369, 16
      %v4038 = vrot.slane %v4036, 4
      %v4039 = vor.u32 %v4038, %v4034
      %v4040 = vrot.slane %v4039, 4
      %v4042 = vshll.u32 %v3370, 16
      %v4044 = vrot.slane %v4042, 5
      %v4045 = vsel %vm333, %v4040, %v4044
      %v4047 = vshrl.u32 %v3371, 16
      %v4049 = vrot.slane %v4047, 4
      %v4050 = vshll.u32 %v3371, 16
      %v4052 = vrot.slane %v4050, 5
      %v4053 = vor.u32 %v4049, %v4052
      %v4054 = vrot.slane %v4053, 4
      %v4056 = vshll.u32 %v3372, 16
      %v4058 = vrot.slane %v4056, 5
      %v4059 = vsel %vm333, %v4054, %v4058
      %v4060 = vshrl.u32 %v3372, 16
      %v4062 = vrot.slane %v4060, 4
      %v4063 = vor.u32 %v4062, %v4058
      %v4064 = vrot.slane %v4063, 4
      %v4066 = vshll.u32 %v3373, 16
      %v4068 = vrot.slane %v4066, 5
      %v4069 = vsel %vm333, %v4064, %v4068
      %v4071 = vshrl.u32 %v3374, 16
      %v4073 = vrot.slane %v4071, 4
      %v4074 = vshll.u32 %v3374, 16
      %v4076 = vrot.slane %v4074, 5
      %v4077 = vor.u32 %v4073, %v4076
      %v4078 = vrot.slane %v4077, 4
      %v4080 = vshll.u32 %v3375, 16
      %v4082 = vrot.slane %v4080, 5
      %v4083 = vsel %vm333, %v4078, %v4082
      %v4084 = vshrl.u32 %v3375, 16
      %v4086 = vrot.slane %v4084, 4
      %v4087 = vor.u32 %v4086, %v4082
      %v4088 = vrot.slane %v4087, 4
      %v4090 = vshll.u32 %v3376, 16
      %v4092 = vrot.slane %v4090, 5
      %v4093 = vsel %vm333, %v4088, %v4092
      %v4095 = vshrl.u32 %v3377, 16
      %v4097 = vrot.slane %v4095, 4
      %v4098 = vshll.u32 %v3377, 16
      %v4100 = vrot.slane %v4098, 5
      %v4101 = vor.u32 %v4097, %v4100
      %v4102 = vrot.slane %v4101, 4
      %v4104 = vshll.u32 %v3378, 16
      %v4106 = vrot.slane %v4104, 5
      %v4107 = vsel %vm333, %v4102, %v4106
      %v4108 = vshrl.u32 %v3378, 16
      %v4110 = vrot.slane %v4108, 4
      %v4111 = vor.u32 %v4110, %v4106
      %v4112 = vrot.slane %v4111, 4
      %v4114 = vshll.u32 %v3379, 16
      %v4116 = vrot.slane %v4114, 5
      %v4117 = vsel %vm333, %v4112, %v4116
      %s4118 = scalar_lea.vmem %s1, 448
      %v4119 = vld [vmem:[%s4118] sm:$0xf]
      %v4120 = vld [vmem:[%s4118 + $0x4] sm:$0xf]
      %v4121 = vld [vmem:[%s4118 + $0x8] sm:$0xf]
      %v4122 = vld [vmem:[%s4118 + $0xc] sm:$0xf]
      %v4123 = vld [vmem:[%s4118 + $0x10] sm:$0xf]
      %v4124 = vld [vmem:[%s4118 + $0x14] sm:$0xf]
      %v4125 = vld [vmem:[%s4118 + $0x18] sm:$0xf]
      %v4126 = vld [vmem:[%s4118 + $0x1c] sm:$0xf]
      %v4127 = vld [vmem:[%s4118 + $0x20] sm:$0xf]
      %v4128 = vld [vmem:[%s4118 + $0x24] sm:$0xf]
      %v4129 = vld [vmem:[%s4118 + $0x28] sm:$0xf]
      %v4130 = vld [vmem:[%s4118 + $0x2c] sm:$0xf]
      %v4131 = vld [vmem:[%s4118 + $0x30] sm:$0xf]
      %v4132 = vld [vmem:[%s4118 + $0x34] sm:$0xf]
      %v4133 = vld [vmem:[%s4118 + $0x38] sm:$0xf]
      %v4134 = vld [vmem:[%s4118 + $0x3c] sm:$0xf]
      %v4135 = vunpack.c.l.b16 %v3747
      %v4136 = vunpack.c.l.b16 %v3757
      %v4137 = vunpack.c.l.b16 %v3771
      %v4138 = vunpack.c.l.b16 %v3781
      %v4139 = vunpack.c.l.b16 %v3795
      %v4140 = vunpack.c.l.b16 %v3805
      %v4141 = vunpack.c.l.b16 %v3819
      %v4142 = vunpack.c.l.b16 %v3829
      %v4143 = vunpack.c.l.b16 %v3843
      %v4144 = vunpack.c.l.b16 %v3853
      %v4145 = vunpack.c.l.b16 %v3867
      %v4146 = vunpack.c.l.b16 %v3877
      %v4147 = vunpack.c.l.b16 %v3891
      %v4148 = vunpack.c.l.b16 %v3901
      %v4149 = vunpack.c.l.b16 %v3915
      %v4150 = vunpack.c.l.b16 %v3925
      %v4151 = vunpack.c.l.b16 %v3939
      %v4152 = vunpack.c.l.b16 %v3949
      %v4153 = vunpack.c.l.b16 %v3963
      %v4154 = vunpack.c.l.b16 %v3973
      %v4155 = vunpack.c.l.b16 %v3987
      %v4156 = vunpack.c.l.b16 %v3997
      %v4157 = vunpack.c.l.b16 %v4011
      %v4158 = vunpack.c.l.b16 %v4021
      %v4159 = vunpack.c.l.b16 %v4035
      %v4160 = vunpack.c.l.b16 %v4045
      %v4161 = vunpack.c.l.b16 %v4059
      %v4162 = vunpack.c.l.b16 %v4069
      %v4163 = vunpack.c.l.b16 %v4083
      %v4164 = vunpack.c.l.b16 %v4093
      %v4165 = vunpack.c.l.b16 %v4107
      %v4166 = vunpack.c.l.b16 %v4117
      %v4167 = vpack.c.b16 %v4136, %v4135
      %v4168 = vpack.c.b16 %v4138, %v4137
      %v4169 = vpack.c.b16 %v4140, %v4139
      %v4170 = vpack.c.b16 %v4142, %v4141
      %v4171 = vpack.c.b16 %v4144, %v4143
      %v4172 = vpack.c.b16 %v4146, %v4145
      %v4173 = vpack.c.b16 %v4148, %v4147
      %v4174 = vpack.c.b16 %v4150, %v4149
      %v4175 = vpack.c.b16 %v4152, %v4151
      %v4176 = vpack.c.b16 %v4154, %v4153
      %v4177 = vpack.c.b16 %v4156, %v4155
      %v4178 = vpack.c.b16 %v4158, %v4157
      %v4179 = vpack.c.b16 %v4160, %v4159
      %v4180 = vpack.c.b16 %v4162, %v4161
      %v4181 = vpack.c.b16 %v4164, %v4163
      %v4182 = vpack.c.b16 %v4166, %v4165
      %v4215 = vunpack.c.l.b16 %v4119
      %v4216 = vunpack.c.l.b16 %v4120
      %v4217 = vunpack.c.l.b16 %v4121
      %v4218 = vunpack.c.l.b16 %v4122
      %v4219 = vunpack.c.l.b16 %v4123
      %v4220 = vunpack.c.l.b16 %v4124
      %v4221 = vunpack.c.l.b16 %v4125
      %v4222 = vunpack.c.l.b16 %v4126
      %v4223 = vunpack.c.l.b16 %v4127
      %v4224 = vunpack.c.l.b16 %v4128
      %v4225 = vunpack.c.l.b16 %v4129
      %v4226 = vunpack.c.l.b16 %v4130
      %v4227 = vunpack.c.l.b16 %v4131
      %v4228 = vunpack.c.l.b16 %v4132
      %v4229 = vunpack.c.l.b16 %v4133
      %v4230 = vunpack.c.l.b16 %v4134
      %v4231 = vpack.c.b16 %v4216, %v4215
      %v4232 = vpack.c.b16 %v4218, %v4217
      %v4233 = vpack.c.b16 %v4220, %v4219
      %v4234 = vpack.c.b16 %v4222, %v4221
      %v4235 = vpack.c.b16 %v4224, %v4223
      %v4236 = vpack.c.b16 %v4226, %v4225
      %v4237 = vpack.c.b16 %v4228, %v4227
      %v4238 = vpack.c.b16 %v4230, %v4229
      %4247 = vmatprep.subr.bf16.mxu0 0
      %4248 = vmatpush1.bf16.msra.mxu0 %v4231
      %4249 = vmatprep.subr.bf16.mxu0 0
      %4250 = vmatpush1.bf16.msra.mxu0 %v4232
      %4251 = vmatprep.subr.bf16.mxu0 0
      %4252 = vmatpush1.bf16.msra.mxu0 %v4233
      %4253 = vmatprep.subr.bf16.mxu0 0
      %4254 = vmatpush1.bf16.msra.mxu0 %v4234
      %4255 = vmatprep.subr.bf16.mxu0 0
      %4256 = vmatpush1.bf16.msra.mxu0 %v4235
      %4257 = vmatprep.subr.bf16.mxu0 0
      %4258 = vmatpush1.bf16.msra.mxu0 %v4236
      %4259 = vmatprep.subr.bf16.mxu0 0
      %4260 = vmatpush1.bf16.msra.mxu0 %v4237
      %4261 = vmatprep.subr.bf16.mxu0 0
      %4262 = vmatpush1.bf16.msra.mxu0 %v4238
      %4263 = vmatprep.subr.bf16.mxu0 0
      %4264 = vmatpush1.bf16.msra.mxu0 0
      %4265 = vmatprep.subr.bf16.mxu0 0
      %4266 = vmatpush1.bf16.msra.mxu0 0
      %4267 = vmatprep.subr.bf16.mxu0 0
      %4268 = vmatpush1.bf16.msra.mxu0 0
      %4269 = vmatprep.subr.bf16.mxu0 0
      %4270 = vmatpush1.bf16.msra.mxu0 0
      %4271 = vmatprep.subr.bf16.mxu0 0
      %4272 = vmatpush1.bf16.msra.mxu0 0
      %4273 = vmatprep.subr.bf16.mxu0 0
      %4274 = vmatpush1.bf16.msra.mxu0 0
      %4275 = vmatprep.subr.bf16.mxu0 0
      %4276 = vmatpush1.bf16.msra.mxu0 0
      %4277 = vmatprep.subr.bf16.mxu0 0
      %4278 = vmatpush1.bf16.msra.mxu0 0
      %4279 = vmatprep.mubr.bf16.mxu0 0
      %4280 = vmatmul.mubr.bf16.gmra.mrb[0].mxu0 %v4167
      %v4281 = vpop.f32.mrb[0].mxu0
      %v4282 = vadd.f32 0.0, %v4281
      %v4283 = vpop.f32.mrb[0].mxu0
      %v4284 = vpop.f32.mrb[0].mxu0
      %v4285 = vadd.f32 0.0, %v4284
      %v4286 = vpop.f32.mrb[0].mxu0
      %4287 = vmatprep.mubr.bf16.mxu0 0
      %4288 = vmatmul.mubr.bf16.gmra.mrb[0].mxu0 %v4168
      %v4289 = vpop.f32.mrb[0].mxu0
      %v4290 = vadd.f32 0.0, %v4289
      %v4291 = vpop.f32.mrb[0].mxu0
      %v4292 = vpop.f32.mrb[0].mxu0
      %v4293 = vadd.f32 0.0, %v4292
      %v4294 = vpop.f32.mrb[0].mxu0
      %4295 = vmatprep.mubr.bf16.mxu0 0
      %4296 = vmatmul.mubr.bf16.gmra.mrb[0].mxu0 %v4169
      %v4297 = vpop.f32.mrb[0].mxu0
      %v4298 = vadd.f32 0.0, %v4297
      %v4299 = vpop.f32.mrb[0].mxu0
      %v4300 = vpop.f32.mrb[0].mxu0
      %v4301 = vadd.f32 0.0, %v4300
      %v4302 = vpop.f32.mrb[0].mxu0
      %4303 = vmatprep.mubr.bf16.mxu0 0
      %4304 = vmatmul.mubr.bf16.gmra.mrb[0].mxu0 %v4170
      %v4305 = vpop.f32.mrb[0].mxu0
      %v4306 = vadd.f32 0.0, %v4305
      %v4307 = vpop.f32.mrb[0].mxu0
      %v4308 = vpop.f32.mrb[0].mxu0
      %v4309 = vadd.f32 0.0, %v4308
      %v4310 = vpop.f32.mrb[0].mxu0
      %4311 = vmatprep.mubr.bf16.mxu0 0
      %4312 = vmatmul.mubr.bf16.gmra.mrb[0].mxu0 %v4171
      %v4313 = vpop.f32.mrb[0].mxu0
      %v4314 = vadd.f32 0.0, %v4313
      %v4315 = vpop.f32.mrb[0].mxu0
      %v4316 = vpop.f32.mrb[0].mxu0
      %v4317 = vadd.f32 0.0, %v4316
      %v4318 = vpop.f32.mrb[0].mxu0
      %4319 = vmatprep.mubr.bf16.mxu0 0
      %4320 = vmatmul.mubr.bf16.gmra.mrb[0].mxu0 %v4172
      %v4321 = vpop.f32.mrb[0].mxu0
      %v4322 = vadd.f32 0.0, %v4321
      %v4323 = vpop.f32.mrb[0].mxu0
      %v4324 = vpop.f32.mrb[0].mxu0
      %v4325 = vadd.f32 0.0, %v4324
      %v4326 = vpop.f32.mrb[0].mxu0
      %4327 = vmatprep.mubr.bf16.mxu0 0
      %4328 = vmatmul.mubr.bf16.gmra.mrb[0].mxu0 %v4173
      %v4329 = vpop.f32.mrb[0].mxu0
      %v4330 = vadd.f32 0.0, %v4329
      %v4331 = vpop.f32.mrb[0].mxu0
      %v4332 = vpop.f32.mrb[0].mxu0
      %v4333 = vadd.f32 0.0, %v4332
      %v4334 = vpop.f32.mrb[0].mxu0
      %4335 = vmatprep.mubr.bf16.mxu0 0
      %4336 = vmatmul.mubr.bf16.gmra.mrb[0].mxu0 %v4174
      %v4337 = vpop.f32.mrb[0].mxu0
      %v4338 = vadd.f32 0.0, %v4337
      %v4339 = vpop.f32.mrb[0].mxu0
      %v4340 = vpop.f32.mrb[0].mxu0
      %v4341 = vadd.f32 0.0, %v4340
      %v4342 = vpop.f32.mrb[0].mxu0
      %4343 = vmatprep.mubr.bf16.mxu0 0
      %4344 = vmatmul.mubr.bf16.gmra.mrb[0].mxu0 %v4175
      %v4345 = vpop.f32.mrb[0].mxu0
      %v4346 = vadd.f32 0.0, %v4345
      %v4347 = vpop.f32.mrb[0].mxu0
      %v4348 = vpop.f32.mrb[0].mxu0
      %v4349 = vadd.f32 0.0, %v4348
      %v4350 = vpop.f32.mrb[0].mxu0
      %4351 = vmatprep.mubr.bf16.mxu0 0
      %4352 = vmatmul.mubr.bf16.gmra.mrb[0].mxu0 %v4176
      %v4353 = vpop.f32.mrb[0].mxu0
      %v4354 = vadd.f32 0.0, %v4353
      %v4355 = vpop.f32.mrb[0].mxu0
      %v4356 = vpop.f32.mrb[0].mxu0
      %v4357 = vadd.f32 0.0, %v4356
      %v4358 = vpop.f32.mrb[0].mxu0
      %4359 = vmatprep.mubr.bf16.mxu0 0
      %4360 = vmatmul.mubr.bf16.gmra.mrb[0].mxu0 %v4177
      %v4361 = vpop.f32.mrb[0].mxu0
      %v4362 = vadd.f32 0.0, %v4361
      %v4363 = vpop.f32.mrb[0].mxu0
      %v4364 = vpop.f32.mrb[0].mxu0
      %v4365 = vadd.f32 0.0, %v4364
      %v4366 = vpop.f32.mrb[0].mxu0
      %4367 = vmatprep.mubr.bf16.mxu0 0
      %4368 = vmatmul.mubr.bf16.gmra.mrb[0].mxu0 %v4178
      %v4369 = vpop.f32.mrb[0].mxu0
      %v4370 = vadd.f32 0.0, %v4369
      %v4371 = vpop.f32.mrb[0].mxu0
      %v4372 = vpop.f32.mrb[0].mxu0
      %v4373 = vadd.f32 0.0, %v4372
      %v4374 = vpop.f32.mrb[0].mxu0
      %4375 = vmatprep.mubr.bf16.mxu0 0
      %4376 = vmatmul.mubr.bf16.gmra.mrb[0].mxu0 %v4179
      %v4377 = vpop.f32.mrb[0].mxu0
      %v4378 = vadd.f32 0.0, %v4377
      %v4379 = vpop.f32.mrb[0].mxu0
      %v4380 = vpop.f32.mrb[0].mxu0
      %v4381 = vadd.f32 0.0, %v4380
      %v4382 = vpop.f32.mrb[0].mxu0
      %4383 = vmatprep.mubr.bf16.mxu0 0
      %4384 = vmatmul.mubr.bf16.gmra.mrb[0].mxu0 %v4180
      %v4385 = vpop.f32.mrb[0].mxu0
      %v4386 = vadd.f32 0.0, %v4385
      %v4387 = vpop.f32.mrb[0].mxu0
      %v4388 = vpop.f32.mrb[0].mxu0
      %v4389 = vadd.f32 0.0, %v4388
      %v4390 = vpop.f32.mrb[0].mxu0
      %4391 = vmatprep.mubr.bf16.mxu0 0
      %4392 = vmatmul.mubr.bf16.gmra.mrb[0].mxu0 %v4181
      %v4393 = vpop.f32.mrb[0].mxu0
      %v4394 = vadd.f32 0.0, %v4393
      %v4395 = vpop.f32.mrb[0].mxu0
      %v4396 = vpop.f32.mrb[0].mxu0
      %v4397 = vadd.f32 0.0, %v4396
      %v4398 = vpop.f32.mrb[0].mxu0
      %4399 = vmatprep.mubr.bf16.mxu0 0
      %4400 = vmatmul.mubr.bf16.gmra.mrb[0].mxu0 %v4182
      %v4401 = vpop.f32.mrb[0].mxu0
      %v4402 = vadd.f32 0.0, %v4401
      %v4403 = vpop.f32.mrb[0].mxu0
      %v4404 = vpop.f32.mrb[0].mxu0
      %v4405 = vadd.f32 0.0, %v4404
      %v4406 = vpop.f32.mrb[0].mxu0
      %4407 = vdwg.mxu0
      %v4408 = vadd.f32 %v3702, %v4282
      %v4409 = vadd.f32 %v3703, %v4285
      %v4410 = vadd.f32 %v3704, %v4290
      %v4411 = vadd.f32 %v3705, %v4293
      %v4412 = vadd.f32 %v3706, %v4298
      %v4413 = vadd.f32 %v3707, %v4301
      %v4414 = vadd.f32 %v3708, %v4306
      %v4415 = vadd.f32 %v3709, %v4309
      %v4416 = vadd.f32 %v3710, %v4314
      %v4417 = vadd.f32 %v3711, %v4317
      %v4418 = vadd.f32 %v3712, %v4322
      %v4419 = vadd.f32 %v3713, %v4325
      %v4420 = vadd.f32 %v3714, %v4330
      %v4421 = vadd.f32 %v3715, %v4333
      %v4422 = vadd.f32 %v3716, %v4338
      %v4423 = vadd.f32 %v3717, %v4341
      %v4424 = vadd.f32 %v3718, %v4346
      %v4425 = vadd.f32 %v3719, %v4349
      %v4426 = vadd.f32 %v3720, %v4354
      %v4427 = vadd.f32 %v3721, %v4357
      %v4428 = vadd.f32 %v3722, %v4362
      %v4429 = vadd.f32 %v3723, %v4365
      %v4430 = vadd.f32 %v3724, %v4370
      %v4431 = vadd.f32 %v3725, %v4373
      %v4432 = vadd.f32 %v3726, %v4378
      %v4433 = vadd.f32 %v3727, %v4381
      %v4434 = vadd.f32 %v3728, %v4386
      %v4435 = vadd.f32 %v3729, %v4389
      %v4436 = vadd.f32 %v3730, %v4394
      %v4437 = vadd.f32 %v3731, %v4397
      %v4438 = vadd.f32 %v3732, %v4402
      %v4439 = vadd.f32 %v3733, %v4405
      %v4456 = vrot.slane %v3332, 5
      %v4457 = vrot.slane %v4456, 4
      %v4458 = vrot.slane %v3333, 5
      %v4459 = vsel %vm1331, %v4457, %v4458
      %v4460 = vrot.slane %v4458, 4
      %v4461 = vrot.slane %v3334, 5
      %v4462 = vsel %vm1331, %v4460, %v4461
      %v4463 = vrot.slane %v3335, 5
      %v4464 = vrot.slane %v4463, 4
      %v4465 = vrot.slane %v3336, 5
      %v4466 = vsel %vm1331, %v4464, %v4465
      %v4467 = vrot.slane %v4465, 4
      %v4468 = vrot.slane %v3337, 5
      %v4469 = vsel %vm1331, %v4467, %v4468
      %v4470 = vrot.slane %v3338, 5
      %v4471 = vrot.slane %v4470, 4
      %v4472 = vrot.slane %v3339, 5
      %v4473 = vsel %vm1331, %v4471, %v4472
      %v4474 = vrot.slane %v4472, 4
      %v4475 = vrot.slane %v3340, 5
      %v4476 = vsel %vm1331, %v4474, %v4475
      %v4477 = vrot.slane %v3341, 5
      %v4478 = vrot.slane %v4477, 4
      %v4479 = vrot.slane %v3342, 5
      %v4480 = vsel %vm1331, %v4478, %v4479
      %v4481 = vrot.slane %v4479, 4
      %v4482 = vrot.slane %v3343, 5
      %v4483 = vsel %vm1331, %v4481, %v4482
      %v4484 = vrot.slane %v3344, 5
      %v4485 = vrot.slane %v4484, 4
      %v4486 = vrot.slane %v3345, 5
      %v4487 = vsel %vm1331, %v4485, %v4486
      %v4488 = vrot.slane %v4486, 4
      %v4489 = vrot.slane %v3346, 5
      %v4490 = vsel %vm1331, %v4488, %v4489
      %v4491 = vrot.slane %v3347, 5
      %v4492 = vrot.slane %v4491, 4
      %v4493 = vrot.slane %v3348, 5
      %v4494 = vsel %vm1331, %v4492, %v4493
      %v4495 = vrot.slane %v4493, 4
      %v4496 = vrot.slane %v3349, 5
      %v4497 = vsel %vm1331, %v4495, %v4496
      %v4498 = vrot.slane %v3350, 5
      %v4499 = vrot.slane %v4498, 4
      %v4500 = vrot.slane %v3351, 5
      %v4501 = vsel %vm1331, %v4499, %v4500
      %v4502 = vrot.slane %v4500, 4
      %v4503 = vrot.slane %v3352, 5
      %v4504 = vsel %vm1331, %v4502, %v4503
      %v4505 = vrot.slane %v3353, 5
      %v4506 = vrot.slane %v4505, 4
      %v4507 = vrot.slane %v3354, 5
      %v4508 = vsel %vm1331, %v4506, %v4507
      %v4509 = vrot.slane %v4507, 4
      %v4510 = vrot.slane %v3355, 5
      %v4511 = vsel %vm1331, %v4509, %v4510
      %v4512 = vrot.slane %v3356, 5
      %v4513 = vrot.slane %v4512, 4
      %v4514 = vrot.slane %v3357, 5
      %v4515 = vsel %vm1331, %v4513, %v4514
      %v4516 = vrot.slane %v4514, 4
      %v4517 = vrot.slane %v3358, 5
      %v4518 = vsel %vm1331, %v4516, %v4517
      %v4519 = vrot.slane %v3359, 5
      %v4520 = vrot.slane %v4519, 4
      %v4521 = vrot.slane %v3360, 5
      %v4522 = vsel %vm1331, %v4520, %v4521
      %v4523 = vrot.slane %v4521, 4
      %v4524 = vrot.slane %v3361, 5
      %v4525 = vsel %vm1331, %v4523, %v4524
      %v4526 = vrot.slane %v3362, 5
      %v4527 = vrot.slane %v4526, 4
      %v4528 = vrot.slane %v3363, 5
      %v4529 = vsel %vm1331, %v4527, %v4528
      %v4530 = vrot.slane %v4528, 4
      %v4531 = vrot.slane %v3364, 5
      %v4532 = vsel %vm1331, %v4530, %v4531
      %v4533 = vrot.slane %v3365, 5
      %v4534 = vrot.slane %v4533, 4
      %v4535 = vrot.slane %v3366, 5
      %v4536 = vsel %vm1331, %v4534, %v4535
      %v4537 = vrot.slane %v4535, 4
      %v4538 = vrot.slane %v3367, 5
      %v4539 = vsel %vm1331, %v4537, %v4538
      %v4540 = vrot.slane %v3368, 5
      %v4541 = vrot.slane %v4540, 4
      %v4542 = vrot.slane %v3369, 5
      %v4543 = vsel %vm1331, %v4541, %v4542
      %v4544 = vrot.slane %v4542, 4
      %v4545 = vrot.slane %v3370, 5
      %v4546 = vsel %vm1331, %v4544, %v4545
      %v4547 = vrot.slane %v3371, 5
      %v4548 = vrot.slane %v4547, 4
      %v4549 = vrot.slane %v3372, 5
      %v4550 = vsel %vm1331, %v4548, %v4549
      %v4551 = vrot.slane %v4549, 4
      %v4552 = vrot.slane %v3373, 5
      %v4553 = vsel %vm1331, %v4551, %v4552
      %v4554 = vrot.slane %v3374, 5
      %v4555 = vrot.slane %v4554, 4
      %v4556 = vrot.slane %v3375, 5
      %v4557 = vsel %vm1331, %v4555, %v4556
      %v4558 = vrot.slane %v4556, 4
      %v4559 = vrot.slane %v3376, 5
      %v4560 = vsel %vm1331, %v4558, %v4559
      %v4561 = vrot.slane %v3377, 5
      %v4562 = vrot.slane %v4561, 4
      %v4563 = vrot.slane %v3378, 5
      %v4564 = vsel %vm1331, %v4562, %v4563
      %v4565 = vrot.slane %v4563, 4
      %v4566 = vrot.slane %v3379, 5
      %v4567 = vsel %vm1331, %v4565, %v4566
      %s4568 = scalar_lea.vmem %s1, 512
      %v4569 = vld [vmem:[%s4568] sm:$0xf]
      %v4570 = vld [vmem:[%s4568 + $0x4] sm:$0xf]
      %v4571 = vld [vmem:[%s4568 + $0x8] sm:$0xf]
      %v4572 = vld [vmem:[%s4568 + $0xc] sm:$0xf]
      %v4573 = vld [vmem:[%s4568 + $0x10] sm:$0xf]
      %v4574 = vld [vmem:[%s4568 + $0x14] sm:$0xf]
      %v4575 = vld [vmem:[%s4568 + $0x18] sm:$0xf]
      %v4576 = vld [vmem:[%s4568 + $0x1c] sm:$0xf]
      %v4577 = vld [vmem:[%s4568 + $0x20] sm:$0xf]
      %v4578 = vld [vmem:[%s4568 + $0x24] sm:$0xf]
      %v4579 = vld [vmem:[%s4568 + $0x28] sm:$0xf]
      %v4580 = vld [vmem:[%s4568 + $0x2c] sm:$0xf]
      %v4581 = vld [vmem:[%s4568 + $0x30] sm:$0xf]
      %v4582 = vld [vmem:[%s4568 + $0x34] sm:$0xf]
      %v4583 = vld [vmem:[%s4568 + $0x38] sm:$0xf]
      %v4584 = vld [vmem:[%s4568 + $0x3c] sm:$0xf]
      %v4585 = vunpack.c.l.b16 %v4459
      %v4586 = vunpack.c.l.b16 %v4462
      %v4587 = vunpack.c.l.b16 %v4466
      %v4588 = vunpack.c.l.b16 %v4469
      %v4589 = vunpack.c.l.b16 %v4473
      %v4590 = vunpack.c.l.b16 %v4476
      %v4591 = vunpack.c.l.b16 %v4480
      %v4592 = vunpack.c.l.b16 %v4483
      %v4593 = vunpack.c.l.b16 %v4487
      %v4594 = vunpack.c.l.b16 %v4490
      %v4595 = vunpack.c.l.b16 %v4494
      %v4596 = vunpack.c.l.b16 %v4497
      %v4597 = vunpack.c.l.b16 %v4501
      %v4598 = vunpack.c.l.b16 %v4504
      %v4599 = vunpack.c.l.b16 %v4508
      %v4600 = vunpack.c.l.b16 %v4511
      %v4601 = vunpack.c.l.b16 %v4515
      %v4602 = vunpack.c.l.b16 %v4518
      %v4603 = vunpack.c.l.b16 %v4522
      %v4604 = vunpack.c.l.b16 %v4525
      %v4605 = vunpack.c.l.b16 %v4529
      %v4606 = vunpack.c.l.b16 %v4532
      %v4607 = vunpack.c.l.b16 %v4536
      %v4608 = vunpack.c.l.b16 %v4539
      %v4609 = vunpack.c.l.b16 %v4543
      %v4610 = vunpack.c.l.b16 %v4546
      %v4611 = vunpack.c.l.b16 %v4550
      %v4612 = vunpack.c.l.b16 %v4553
      %v4613 = vunpack.c.l.b16 %v4557
      %v4614 = vunpack.c.l.b16 %v4560
      %v4615 = vunpack.c.l.b16 %v4564
      %v4616 = vunpack.c.l.b16 %v4567
      %v4617 = vpack.c.b16 %v4586, %v4585
      %v4618 = vpack.c.b16 %v4588, %v4587
      %v4619 = vpack.c.b16 %v4590, %v4589
      %v4620 = vpack.c.b16 %v4592, %v4591
      %v4621 = vpack.c.b16 %v4594, %v4593
      %v4622 = vpack.c.b16 %v4596, %v4595
      %v4623 = vpack.c.b16 %v4598, %v4597
      %v4624 = vpack.c.b16 %v4600, %v4599
      %v4625 = vpack.c.b16 %v4602, %v4601
      %v4626 = vpack.c.b16 %v4604, %v4603
      %v4627 = vpack.c.b16 %v4606, %v4605
      %v4628 = vpack.c.b16 %v4608, %v4607
      %v4629 = vpack.c.b16 %v4610, %v4609
      %v4630 = vpack.c.b16 %v4612, %v4611
      %v4631 = vpack.c.b16 %v4614, %v4613
      %v4632 = vpack.c.b16 %v4616, %v4615
      %v4665 = vunpack.c.l.b16 %v4569
      %v4666 = vunpack.c.l.b16 %v4570
      %v4667 = vunpack.c.l.b16 %v4571
      %v4668 = vunpack.c.l.b16 %v4572
      %v4669 = vunpack.c.l.b16 %v4573
      %v4670 = vunpack.c.l.b16 %v4574
      %v4671 = vunpack.c.l.b16 %v4575
      %v4672 = vunpack.c.l.b16 %v4576
      %v4673 = vunpack.c.l.b16 %v4577
      %v4674 = vunpack.c.l.b16 %v4578
      %v4675 = vunpack.c.l.b16 %v4579
      %v4676 = vunpack.c.l.b16 %v4580
      %v4677 = vunpack.c.l.b16 %v4581
      %v4678 = vunpack.c.l.b16 %v4582
      %v4679 = vunpack.c.l.b16 %v4583
      %v4680 = vunpack.c.l.b16 %v4584
      %v4681 = vpack.c.b16 %v4666, %v4665
      %v4682 = vpack.c.b16 %v4668, %v4667
      %v4683 = vpack.c.b16 %v4670, %v4669
      %v4684 = vpack.c.b16 %v4672, %v4671
      %v4685 = vpack.c.b16 %v4674, %v4673
      %v4686 = vpack.c.b16 %v4676, %v4675
      %v4687 = vpack.c.b16 %v4678, %v4677
      %v4688 = vpack.c.b16 %v4680, %v4679
      %4697 = vmatprep.subr.bf16.mxu0 0
      %4698 = vmatpush1.bf16.msra.mxu0 %v4681
      %4699 = vmatprep.subr.bf16.mxu0 0
      %4700 = vmatpush1.bf16.msra.mxu0 %v4682
      %4701 = vmatprep.subr.bf16.mxu0 0
      %4702 = vmatpush1.bf16.msra.mxu0 %v4683
      %4703 = vmatprep.subr.bf16.mxu0 0
      %4704 = vmatpush1.bf16.msra.mxu0 %v4684
      %4705 = vmatprep.subr.bf16.mxu0 0
      %4706 = vmatpush1.bf16.msra.mxu0 %v4685
      %4707 = vmatprep.subr.bf16.mxu0 0
      %4708 = vmatpush1.bf16.msra.mxu0 %v4686
      %4709 = vmatprep.subr.bf16.mxu0 0
      %4710 = vmatpush1.bf16.msra.mxu0 %v4687
      %4711 = vmatprep.subr.bf16.mxu0 0
      %4712 = vmatpush1.bf16.msra.mxu0 %v4688
      %4713 = vmatprep.subr.bf16.mxu0 0
      %4714 = vmatpush1.bf16.msra.mxu0 0
      %4715 = vmatprep.subr.bf16.mxu0 0
      %4716 = vmatpush1.bf16.msra.mxu0 0
      %4717 = vmatprep.subr.bf16.mxu0 0
      %4718 = vmatpush1.bf16.msra.mxu0 0
      %4719 = vmatprep.subr.bf16.mxu0 0
      %4720 = vmatpush1.bf16.msra.mxu0 0
      %4721 = vmatprep.subr.bf16.mxu0 0
      %4722 = vmatpush1.bf16.msra.mxu0 0
      %4723 = vmatprep.subr.bf16.mxu0 0
      %4724 = vmatpush1.bf16.msra.mxu0 0
      %4725 = vmatprep.subr.bf16.mxu0 0
      %4726 = vmatpush1.bf16.msra.mxu0 0
      %4727 = vmatprep.subr.bf16.mxu0 0
      %4728 = vmatpush1.bf16.msra.mxu0 0
      %4729 = vmatprep.mubr.bf16.mxu0 0
      %4730 = vmatmul.mubr.bf16.gmra.mrb[0].mxu0 %v4617
      %v4731 = vpop.f32.mrb[0].mxu0
      %v4732 = vadd.f32 0.0, %v4731
      %v4733 = vpop.f32.mrb[0].mxu0
      %v4734 = vpop.f32.mrb[0].mxu0
      %v4735 = vadd.f32 0.0, %v4734
      %v4736 = vpop.f32.mrb[0].mxu0
      %4737 = vmatprep.mubr.bf16.mxu0 0
      %4738 = vmatmul.mubr.bf16.gmra.mrb[0].mxu0 %v4618
      %v4739 = vpop.f32.mrb[0].mxu0
      %v4740 = vadd.f32 0.0, %v4739
      %v4741 = vpop.f32.mrb[0].mxu0
      %v4742 = vpop.f32.mrb[0].mxu0
      %v4743 = vadd.f32 0.0, %v4742
      %v4744 = vpop.f32.mrb[0].mxu0
      %4745 = vmatprep.mubr.bf16.mxu0 0
      %4746 = vmatmul.mubr.bf16.gmra.mrb[0].mxu0 %v4619
      %v4747 = vpop.f32.mrb[0].mxu0
      %v4748 = vadd.f32 0.0, %v4747
      %v4749 = vpop.f32.mrb[0].mxu0
      %v4750 = vpop.f32.mrb[0].mxu0
      %v4751 = vadd.f32 0.0, %v4750
      %v4752 = vpop.f32.mrb[0].mxu0
      %4753 = vmatprep.mubr.bf16.mxu0 0
      %4754 = vmatmul.mubr.bf16.gmra.mrb[0].mxu0 %v4620
      %v4755 = vpop.f32.mrb[0].mxu0
      %v4756 = vadd.f32 0.0, %v4755
      %v4757 = vpop.f32.mrb[0].mxu0
      %v4758 = vpop.f32.mrb[0].mxu0
      %v4759 = vadd.f32 0.0, %v4758
      %v4760 = vpop.f32.mrb[0].mxu0
      %4761 = vmatprep.mubr.bf16.mxu0 0
      %4762 = vmatmul.mubr.bf16.gmra.mrb[0].mxu0 %v4621
      %v4763 = vpop.f32.mrb[0].mxu0
      %v4764 = vadd.f32 0.0, %v4763
      %v4765 = vpop.f32.mrb[0].mxu0
      %v4766 = vpop.f32.mrb[0].mxu0
      %v4767 = vadd.f32 0.0, %v4766
      %v4768 = vpop.f32.mrb[0].mxu0
      %4769 = vmatprep.mubr.bf16.mxu0 0
      %4770 = vmatmul.mubr.bf16.gmra.mrb[0].mxu0 %v4622
      %v4771 = vpop.f32.mrb[0].mxu0
      %v4772 = vadd.f32 0.0, %v4771
      %v4773 = vpop.f32.mrb[0].mxu0
      %v4774 = vpop.f32.mrb[0].mxu0
      %v4775 = vadd.f32 0.0, %v4774
      %v4776 = vpop.f32.mrb[0].mxu0
      %4777 = vmatprep.mubr.bf16.mxu0 0
      %4778 = vmatmul.mubr.bf16.gmra.mrb[0].mxu0 %v4623
      %v4779 = vpop.f32.mrb[0].mxu0
      %v4780 = vadd.f32 0.0, %v4779
      %v4781 = vpop.f32.mrb[0].mxu0
      %v4782 = vpop.f32.mrb[0].mxu0
      %v4783 = vadd.f32 0.0, %v4782
      %v4784 = vpop.f32.mrb[0].mxu0
      %4785 = vmatprep.mubr.bf16.mxu0 0
      %4786 = vmatmul.mubr.bf16.gmra.mrb[0].mxu0 %v4624
      %v4787 = vpop.f32.mrb[0].mxu0
      %v4788 = vadd.f32 0.0, %v4787
      %v4789 = vpop.f32.mrb[0].mxu0
      %v4790 = vpop.f32.mrb[0].mxu0
      %v4791 = vadd.f32 0.0, %v4790
      %v4792 = vpop.f32.mrb[0].mxu0
      %4793 = vmatprep.mubr.bf16.mxu0 0
      %4794 = vmatmul.mubr.bf16.gmra.mrb[0].mxu0 %v4625
      %v4795 = vpop.f32.mrb[0].mxu0
      %v4796 = vadd.f32 0.0, %v4795
      %v4797 = vpop.f32.mrb[0].mxu0
      %v4798 = vpop.f32.mrb[0].mxu0
      %v4799 = vadd.f32 0.0, %v4798
      %v4800 = vpop.f32.mrb[0].mxu0
      %4801 = vmatprep.mubr.bf16.mxu0 0
      %4802 = vmatmul.mubr.bf16.gmra.mrb[0].mxu0 %v4626
      %v4803 = vpop.f32.mrb[0].mxu0
      %v4804 = vadd.f32 0.0, %v4803
      %v4805 = vpop.f32.mrb[0].mxu0
      %v4806 = vpop.f32.mrb[0].mxu0
      %v4807 = vadd.f32 0.0, %v4806
      %v4808 = vpop.f32.mrb[0].mxu0
      %4809 = vmatprep.mubr.bf16.mxu0 0
      %4810 = vmatmul.mubr.bf16.gmra.mrb[0].mxu0 %v4627
      %v4811 = vpop.f32.mrb[0].mxu0
      %v4812 = vadd.f32 0.0, %v4811
      %v4813 = vpop.f32.mrb[0].mxu0
      %v4814 = vpop.f32.mrb[0].mxu0
      %v4815 = vadd.f32 0.0, %v4814
      %v4816 = vpop.f32.mrb[0].mxu0
      %4817 = vmatprep.mubr.bf16.mxu0 0
      %4818 = vmatmul.mubr.bf16.gmra.mrb[0].mxu0 %v4628
      %v4819 = vpop.f32.mrb[0].mxu0
      %v4820 = vadd.f32 0.0, %v4819
      %v4821 = vpop.f32.mrb[0].mxu0
      %v4822 = vpop.f32.mrb[0].mxu0
      %v4823 = vadd.f32 0.0, %v4822
      %v4824 = vpop.f32.mrb[0].mxu0
      %4825 = vmatprep.mubr.bf16.mxu0 0
      %4826 = vmatmul.mubr.bf16.gmra.mrb[0].mxu0 %v4629
      %v4827 = vpop.f32.mrb[0].mxu0
      %v4828 = vadd.f32 0.0, %v4827
      %v4829 = vpop.f32.mrb[0].mxu0
      %v4830 = vpop.f32.mrb[0].mxu0
      %v4831 = vadd.f32 0.0, %v4830
      %v4832 = vpop.f32.mrb[0].mxu0
      %4833 = vmatprep.mubr.bf16.mxu0 0
      %4834 = vmatmul.mubr.bf16.gmra.mrb[0].mxu0 %v4630
      %v4835 = vpop.f32.mrb[0].mxu0
      %v4836 = vadd.f32 0.0, %v4835
      %v4837 = vpop.f32.mrb[0].mxu0
      %v4838 = vpop.f32.mrb[0].mxu0
      %v4839 = vadd.f32 0.0, %v4838
      %v4840 = vpop.f32.mrb[0].mxu0
      %4841 = vmatprep.mubr.bf16.mxu0 0
      %4842 = vmatmul.mubr.bf16.gmra.mrb[0].mxu0 %v4631
      %v4843 = vpop.f32.mrb[0].mxu0
      %v4844 = vadd.f32 0.0, %v4843
      %v4845 = vpop.f32.mrb[0].mxu0
      %v4846 = vpop.f32.mrb[0].mxu0
      %v4847 = vadd.f32 0.0, %v4846
      %v4848 = vpop.f32.mrb[0].mxu0
      %4849 = vmatprep.mubr.bf16.mxu0 0
      %4850 = vmatmul.mubr.bf16.gmra.mrb[0].mxu0 %v4632
      %v4851 = vpop.f32.mrb[0].mxu0
      %v4852 = vadd.f32 0.0, %v4851
      %v4853 = vpop.f32.mrb[0].mxu0
      %v4854 = vpop.f32.mrb[0].mxu0
      %v4855 = vadd.f32 0.0, %v4854
      %v4856 = vpop.f32.mrb[0].mxu0
      %4857 = vdwg.mxu0
      %v4858 = vadd.f32 %v4408, %v4732
      %v4859 = vadd.f32 %v4409, %v4735
      %v4860 = vadd.f32 %v4410, %v4740
      %v4861 = vadd.f32 %v4411, %v4743
      %v4862 = vadd.f32 %v4412, %v4748
      %v4863 = vadd.f32 %v4413, %v4751
      %v4864 = vadd.f32 %v4414, %v4756
      %v4865 = vadd.f32 %v4415, %v4759
      %v4866 = vadd.f32 %v4416, %v4764
      %v4867 = vadd.f32 %v4417, %v4767
      %v4868 = vadd.f32 %v4418, %v4772
      %v4869 = vadd.f32 %v4419, %v4775
      %v4870 = vadd.f32 %v4420, %v4780
      %v4871 = vadd.f32 %v4421, %v4783
      %v4872 = vadd.f32 %v4422, %v4788
      %v4873 = vadd.f32 %v4423, %v4791
      %v4874 = vadd.f32 %v4424, %v4796
      %v4875 = vadd.f32 %v4425, %v4799
      %v4876 = vadd.f32 %v4426, %v4804
      %v4877 = vadd.f32 %v4427, %v4807
      %v4878 = vadd.f32 %v4428, %v4812
      %v4879 = vadd.f32 %v4429, %v4815
      %v4880 = vadd.f32 %v4430, %v4820
      %v4881 = vadd.f32 %v4431, %v4823
      %v4882 = vadd.f32 %v4432, %v4828
      %v4883 = vadd.f32 %v4433, %v4831
      %v4884 = vadd.f32 %v4434, %v4836
      %v4885 = vadd.f32 %v4435, %v4839
      %v4886 = vadd.f32 %v4436, %v4844
      %v4887 = vadd.f32 %v4437, %v4847
      %v4888 = vadd.f32 %v4438, %v4852
      %v4889 = vadd.f32 %v4439, %v4855
      %v4890 = vld [vmem:[%s2] sm:$0x1]
      %v4892 = vlaneseq
      %v4893 = vshrl.u32 %v4892, 7
      %v4894 = vsub.s32 0, %v4893
      %v4895 = vrot.slane %v4890, %v4894
      %v4897 = vadd.f32 %v4858, %v4895
      %v4898 = vadd.f32 %v4859, %v4895
      %v4899 = vadd.f32 %v4860, %v4895
      %v4900 = vadd.f32 %v4861, %v4895
      %v4901 = vadd.f32 %v4862, %v4895
      %v4902 = vadd.f32 %v4863, %v4895
      %v4903 = vadd.f32 %v4864, %v4895
      %v4904 = vadd.f32 %v4865, %v4895
      %v4905 = vadd.f32 %v4866, %v4895
      %v4906 = vadd.f32 %v4867, %v4895
      %v4907 = vadd.f32 %v4868, %v4895
      %v4908 = vadd.f32 %v4869, %v4895
      %v4909 = vadd.f32 %v4870, %v4895
      %v4910 = vadd.f32 %v4871, %v4895
      %v4911 = vadd.f32 %v4872, %v4895
      %v4912 = vadd.f32 %v4873, %v4895
      %v4913 = vadd.f32 %v4874, %v4895
      %v4914 = vadd.f32 %v4875, %v4895
      %v4915 = vadd.f32 %v4876, %v4895
      %v4916 = vadd.f32 %v4877, %v4895
      %v4917 = vadd.f32 %v4878, %v4895
      %v4918 = vadd.f32 %v4879, %v4895
      %v4919 = vadd.f32 %v4880, %v4895
      %v4920 = vadd.f32 %v4881, %v4895
      %v4921 = vadd.f32 %v4882, %v4895
      %v4922 = vadd.f32 %v4883, %v4895
      %v4923 = vadd.f32 %v4884, %v4895
      %v4924 = vadd.f32 %v4885, %v4895
      %v4925 = vadd.f32 %v4886, %v4895
      %v4926 = vadd.f32 %v4887, %v4895
      %v4927 = vadd.f32 %v4888, %v4895
      %v4928 = vadd.f32 %v4889, %v4895
      %v4929 = vxor.u32 %v4897, 2147483648
      %v4930 = vxor.u32 %v4898, 2147483648
      %v4931 = vxor.u32 %v4899, 2147483648
      %v4932 = vxor.u32 %v4900, 2147483648
      %v4933 = vxor.u32 %v4901, 2147483648
      %v4934 = vxor.u32 %v4902, 2147483648
      %v4935 = vxor.u32 %v4903, 2147483648
      %v4936 = vxor.u32 %v4904, 2147483648
      %v4937 = vxor.u32 %v4905, 2147483648
      %v4938 = vxor.u32 %v4906, 2147483648
      %v4939 = vxor.u32 %v4907, 2147483648
      %v4940 = vxor.u32 %v4908, 2147483648
      %v4941 = vxor.u32 %v4909, 2147483648
      %v4942 = vxor.u32 %v4910, 2147483648
      %v4943 = vxor.u32 %v4911, 2147483648
      %v4944 = vxor.u32 %v4912, 2147483648
      %v4945 = vxor.u32 %v4913, 2147483648
      %v4946 = vxor.u32 %v4914, 2147483648
      %v4947 = vxor.u32 %v4915, 2147483648
      %v4948 = vxor.u32 %v4916, 2147483648
      %v4949 = vxor.u32 %v4917, 2147483648
      %v4950 = vxor.u32 %v4918, 2147483648
      %v4951 = vxor.u32 %v4919, 2147483648
      %v4952 = vxor.u32 %v4920, 2147483648
      %v4953 = vxor.u32 %v4921, 2147483648
      %v4954 = vxor.u32 %v4922, 2147483648
      %v4955 = vxor.u32 %v4923, 2147483648
      %v4956 = vxor.u32 %v4924, 2147483648
      %v4957 = vxor.u32 %v4925, 2147483648
      %v4958 = vxor.u32 %v4926, 2147483648
      %v4959 = vxor.u32 %v4927, 2147483648
      %v4960 = vxor.u32 %v4928, 2147483648
      %v4961 = vmul.f32 %v4929, 1.442695
      %v4962 = vpow.pop %v4961
      %v4963 = vmul.f32 %v4930, 1.442695
      %v4964 = vpow.pop %v4963
      %v4965 = vmul.f32 %v4931, 1.442695
      %v4966 = vpow.pop %v4965
      %v4967 = vmul.f32 %v4932, 1.442695
      %v4968 = vpow.pop %v4967
      %v4969 = vmul.f32 %v4933, 1.442695
      %v4970 = vpow.pop %v4969
      %v4971 = vmul.f32 %v4934, 1.442695
      %v4972 = vpow.pop %v4971
      %v4973 = vmul.f32 %v4935, 1.442695
      %v4974 = vpow.pop %v4973
      %v4975 = vmul.f32 %v4936, 1.442695
      %v4976 = vpow.pop %v4975
      %v4977 = vmul.f32 %v4937, 1.442695
      %v4978 = vpow.pop %v4977
      %v4979 = vmul.f32 %v4938, 1.442695
      %v4980 = vpow.pop %v4979
      %v4981 = vmul.f32 %v4939, 1.442695
      %v4982 = vpow.pop %v4981
      %v4983 = vmul.f32 %v4940, 1.442695
      %v4984 = vpow.pop %v4983
      %v4985 = vmul.f32 %v4941, 1.442695
      %v4986 = vpow.pop %v4985
      %v4987 = vmul.f32 %v4942, 1.442695
      %v4988 = vpow.pop %v4987
      %v4989 = vmul.f32 %v4943, 1.442695
      %v4990 = vpow.pop %v4989
      %v4991 = vmul.f32 %v4944, 1.442695
      %v4992 = vpow.pop %v4991
      %v4993 = vmul.f32 %v4945, 1.442695
      %v4994 = vpow.pop %v4993
      %v4995 = vmul.f32 %v4946, 1.442695
      %v4996 = vpow.pop %v4995
      %v4997 = vmul.f32 %v4947, 1.442695
      %v4998 = vpow.pop %v4997
      %v4999 = vmul.f32 %v4948, 1.442695
      %v5000 = vpow.pop %v4999
      %v5001 = vmul.f32 %v4949, 1.442695
      %v5002 = vpow.pop %v5001
      %v5003 = vmul.f32 %v4950, 1.442695
      %v5004 = vpow.pop %v5003
      %v5005 = vmul.f32 %v4951, 1.442695
      %v5006 = vpow.pop %v5005
      %v5007 = vmul.f32 %v4952, 1.442695
      %v5008 = vpow.pop %v5007
      %v5009 = vmul.f32 %v4953, 1.442695
      %v5010 = vpow.pop %v5009
      %v5011 = vmul.f32 %v4954, 1.442695
      %v5012 = vpow.pop %v5011
      %v5013 = vmul.f32 %v4955, 1.442695
      %v5014 = vpow.pop %v5013
      %v5015 = vmul.f32 %v4956, 1.442695
      %v5016 = vpow.pop %v5015
      %v5017 = vmul.f32 %v4957, 1.442695
      %v5018 = vpow.pop %v5017
      %v5019 = vmul.f32 %v4958, 1.442695
      %v5020 = vpow.pop %v5019
      %v5021 = vmul.f32 %v4959, 1.442695
      %v5022 = vpow.pop %v5021
      %v5023 = vmul.f32 %v4960, 1.442695
      %v5024 = vpow.pop %v5023
      %v5025 = vadd.f32 %v4962, 1.0
      %v5026 = vadd.f32 %v4964, 1.0
      %v5027 = vadd.f32 %v4966, 1.0
      %v5028 = vadd.f32 %v4968, 1.0
      %v5029 = vadd.f32 %v4970, 1.0
      %v5030 = vadd.f32 %v4972, 1.0
      %v5031 = vadd.f32 %v4974, 1.0
      %v5032 = vadd.f32 %v4976, 1.0
      %v5033 = vadd.f32 %v4978, 1.0
      %v5034 = vadd.f32 %v4980, 1.0
      %v5035 = vadd.f32 %v4982, 1.0
      %v5036 = vadd.f32 %v4984, 1.0
      %v5037 = vadd.f32 %v4986, 1.0
      %v5038 = vadd.f32 %v4988, 1.0
      %v5039 = vadd.f32 %v4990, 1.0
      %v5040 = vadd.f32 %v4992, 1.0
      %v5041 = vadd.f32 %v4994, 1.0
      %v5042 = vadd.f32 %v4996, 1.0
      %v5043 = vadd.f32 %v4998, 1.0
      %v5044 = vadd.f32 %v5000, 1.0
      %v5045 = vadd.f32 %v5002, 1.0
      %v5046 = vadd.f32 %v5004, 1.0
      %v5047 = vadd.f32 %v5006, 1.0
      %v5048 = vadd.f32 %v5008, 1.0
      %v5049 = vadd.f32 %v5010, 1.0
      %v5050 = vadd.f32 %v5012, 1.0
      %v5051 = vadd.f32 %v5014, 1.0
      %v5052 = vadd.f32 %v5016, 1.0
      %v5053 = vadd.f32 %v5018, 1.0
      %v5054 = vadd.f32 %v5020, 1.0
      %v5055 = vadd.f32 %v5022, 1.0
      %v5056 = vadd.f32 %v5024, 1.0
      %v5057 = vrcp.pop %v5025
      %v5058 = vmul.f32 1.0, %v5057
      %v5059 = vrcp.pop %v5026
      %v5060 = vmul.f32 1.0, %v5059
      %v5061 = vrcp.pop %v5027
      %v5062 = vmul.f32 1.0, %v5061
      %v5063 = vrcp.pop %v5028
      %v5064 = vmul.f32 1.0, %v5063
      %v5065 = vrcp.pop %v5029
      %v5066 = vmul.f32 1.0, %v5065
      %v5067 = vrcp.pop %v5030
      %v5068 = vmul.f32 1.0, %v5067
      %v5069 = vrcp.pop %v5031
      %v5070 = vmul.f32 1.0, %v5069
      %v5071 = vrcp.pop %v5032
      %v5072 = vmul.f32 1.0, %v5071
      %v5073 = vrcp.pop %v5033
      %v5074 = vmul.f32 1.0, %v5073
      %v5075 = vrcp.pop %v5034
      %v5076 = vmul.f32 1.0, %v5075
      %v5077 = vrcp.pop %v5035
      %v5078 = vmul.f32 1.0, %v5077
      %v5079 = vrcp.pop %v5036
      %v5080 = vmul.f32 1.0, %v5079
      %v5081 = vrcp.pop %v5037
      %v5082 = vmul.f32 1.0, %v5081
      %v5083 = vrcp.pop %v5038
      %v5084 = vmul.f32 1.0, %v5083
      %v5085 = vrcp.pop %v5039
      %v5086 = vmul.f32 1.0, %v5085
      %v5087 = vrcp.pop %v5040
      %v5088 = vmul.f32 1.0, %v5087
      %v5089 = vrcp.pop %v5041
      %v5090 = vmul.f32 1.0, %v5089
      %v5091 = vrcp.pop %v5042
      %v5092 = vmul.f32 1.0, %v5091
      %v5093 = vrcp.pop %v5043
      %v5094 = vmul.f32 1.0, %v5093
      %v5095 = vrcp.pop %v5044
      %v5096 = vmul.f32 1.0, %v5095
      %v5097 = vrcp.pop %v5045
      %v5098 = vmul.f32 1.0, %v5097
      %v5099 = vrcp.pop %v5046
      %v5100 = vmul.f32 1.0, %v5099
      %v5101 = vrcp.pop %v5047
      %v5102 = vmul.f32 1.0, %v5101
      %v5103 = vrcp.pop %v5048
      %v5104 = vmul.f32 1.0, %v5103
      %v5105 = vrcp.pop %v5049
      %v5106 = vmul.f32 1.0, %v5105
      %v5107 = vrcp.pop %v5050
      %v5108 = vmul.f32 1.0, %v5107
      %v5109 = vrcp.pop %v5051
      %v5110 = vmul.f32 1.0, %v5109
      %v5111 = vrcp.pop %v5052
      %v5112 = vmul.f32 1.0, %v5111
      %v5113 = vrcp.pop %v5053
      %v5114 = vmul.f32 1.0, %v5113
      %v5115 = vrcp.pop %v5054
      %v5116 = vmul.f32 1.0, %v5115
      %v5117 = vrcp.pop %v5055
      %v5118 = vmul.f32 1.0, %v5117
      %v5119 = vrcp.pop %v5056
      %v5120 = vmul.f32 1.0, %v5119
      %v5121 = vmul.f32 %v4897, %v5058
      %v5122 = vmul.f32 %v4898, %v5060
      %v5123 = vmul.f32 %v4899, %v5062
      %v5124 = vmul.f32 %v4900, %v5064
      %v5125 = vmul.f32 %v4901, %v5066
      %v5126 = vmul.f32 %v4902, %v5068
      %v5127 = vmul.f32 %v4903, %v5070
      %v5128 = vmul.f32 %v4904, %v5072
      %v5129 = vmul.f32 %v4905, %v5074
      %v5130 = vmul.f32 %v4906, %v5076
      %v5131 = vmul.f32 %v4907, %v5078
      %v5132 = vmul.f32 %v4908, %v5080
      %v5133 = vmul.f32 %v4909, %v5082
      %v5134 = vmul.f32 %v4910, %v5084
      %v5135 = vmul.f32 %v4911, %v5086
      %v5136 = vmul.f32 %v4912, %v5088
      %v5137 = vmul.f32 %v4913, %v5090
      %v5138 = vmul.f32 %v4914, %v5092
      %v5139 = vmul.f32 %v4915, %v5094
      %v5140 = vmul.f32 %v4916, %v5096
      %v5141 = vmul.f32 %v4917, %v5098
      %v5142 = vmul.f32 %v4918, %v5100
      %v5143 = vmul.f32 %v4919, %v5102
      %v5144 = vmul.f32 %v4920, %v5104
      %v5145 = vmul.f32 %v4921, %v5106
      %v5146 = vmul.f32 %v4922, %v5108
      %v5147 = vmul.f32 %v4923, %v5110
      %v5148 = vmul.f32 %v4924, %v5112
      %v5149 = vmul.f32 %v4925, %v5114
      %v5150 = vmul.f32 %v4926, %v5116
      %v5151 = vmul.f32 %v4927, %v5118
      %v5152 = vmul.f32 %v4928, %v5120
      %v5153 = vld [vmem:[%s249] sm:$0xff]
      %v5154 = vld [vmem:[%s249 + $0x8] sm:$0xff]
      %v5155 = vld [vmem:[%s249 + $0x10] sm:$0xff]
      %v5156 = vld [vmem:[%s249 + $0x18] sm:$0xff]
      %v5157 = vld [vmem:[%s249 + $0x20] sm:$0xff]
      %v5158 = vld [vmem:[%s249 + $0x28] sm:$0xff]
      %v5159 = vld [vmem:[%s249 + $0x30] sm:$0xff]
      %v5160 = vld [vmem:[%s249 + $0x38] sm:$0xff]
      %v5161 = vld [vmem:[%s249 + $0x40] sm:$0xff]
      %v5162 = vld [vmem:[%s249 + $0x48] sm:$0xff]
      %v5163 = vld [vmem:[%s249 + $0x50] sm:$0xff]
      %v5164 = vld [vmem:[%s249 + $0x58] sm:$0xff]
      %v5165 = vld [vmem:[%s249 + $0x60] sm:$0xff]
      %v5166 = vld [vmem:[%s249 + $0x68] sm:$0xff]
      %v5167 = vld [vmem:[%s249 + $0x70] sm:$0xff]
      %v5168 = vld [vmem:[%s249 + $0x78] sm:$0xff]
      %v5169 = vld [vmem:[%s249 + $0x80] sm:$0xff]
      %v5170 = vld [vmem:[%s249 + $0x88] sm:$0xff]
      %v5171 = vld [vmem:[%s249 + $0x90] sm:$0xff]
      %v5172 = vld [vmem:[%s249 + $0x98] sm:$0xff]
      %v5173 = vld [vmem:[%s249 + $0xa0] sm:$0xff]
      %v5174 = vld [vmem:[%s249 + $0xa8] sm:$0xff]
      %v5175 = vld [vmem:[%s249 + $0xb0] sm:$0xff]
      %v5176 = vld [vmem:[%s249 + $0xb8] sm:$0xff]
      %v5177 = vld [vmem:[%s249 + $0xc0] sm:$0xff]
      %v5178 = vld [vmem:[%s249 + $0xc8] sm:$0xff]
      %v5179 = vld [vmem:[%s249 + $0xd0] sm:$0xff]
      %v5180 = vld [vmem:[%s249 + $0xd8] sm:$0xff]
      %v5181 = vld [vmem:[%s249 + $0xe0] sm:$0xff]
      %v5182 = vld [vmem:[%s249 + $0xe8] sm:$0xff]
      %v5183 = vld [vmem:[%s249 + $0xf0] sm:$0xff]
      %v5184 = vld [vmem:[%s249 + $0xf8] sm:$0xff]
      %v5185 = vadd.f32 %v5121, %v5153
      %v5186 = vadd.f32 %v5122, %v5154
      %v5187 = vadd.f32 %v5123, %v5155
      %v5188 = vadd.f32 %v5124, %v5156
      %v5189 = vadd.f32 %v5125, %v5157
      %v5190 = vadd.f32 %v5126, %v5158
      %v5191 = vadd.f32 %v5127, %v5159
      %v5192 = vadd.f32 %v5128, %v5160
      %v5193 = vadd.f32 %v5129, %v5161
      %v5194 = vadd.f32 %v5130, %v5162
      %v5195 = vadd.f32 %v5131, %v5163
      %v5196 = vadd.f32 %v5132, %v5164
      %v5197 = vadd.f32 %v5133, %v5165
      %v5198 = vadd.f32 %v5134, %v5166
      %v5199 = vadd.f32 %v5135, %v5167
      %v5200 = vadd.f32 %v5136, %v5168
      %v5201 = vadd.f32 %v5137, %v5169
      %v5202 = vadd.f32 %v5138, %v5170
      %v5203 = vadd.f32 %v5139, %v5171
      %v5204 = vadd.f32 %v5140, %v5172
      %v5205 = vadd.f32 %v5141, %v5173
      %v5206 = vadd.f32 %v5142, %v5174
      %v5207 = vadd.f32 %v5143, %v5175
      %v5208 = vadd.f32 %v5144, %v5176
      %v5209 = vadd.f32 %v5145, %v5177
      %v5210 = vadd.f32 %v5146, %v5178
      %v5211 = vadd.f32 %v5147, %v5179
      %v5212 = vadd.f32 %v5148, %v5180
      %v5213 = vadd.f32 %v5149, %v5181
      %v5214 = vadd.f32 %v5150, %v5182
      %v5215 = vadd.f32 %v5151, %v5183
      %v5216 = vadd.f32 %v5152, %v5184
      %5217 = vst [vmem:[%s260] sm:$0xff] %v5185
      %5218 = vst [vmem:[%s260 + $0x8] sm:$0xff] %v5186
      %5219 = vst [vmem:[%s260 + $0x10] sm:$0xff] %v5187
      %5220 = vst [vmem:[%s260 + $0x18] sm:$0xff] %v5188
      %5221 = vst [vmem:[%s260 + $0x20] sm:$0xff] %v5189
      %5222 = vst [vmem:[%s260 + $0x28] sm:$0xff] %v5190
      %5223 = vst [vmem:[%s260 + $0x30] sm:$0xff] %v5191
      %5224 = vst [vmem:[%s260 + $0x38] sm:$0xff] %v5192
      %5225 = vst [vmem:[%s260 + $0x40] sm:$0xff] %v5193
      %5226 = vst [vmem:[%s260 + $0x48] sm:$0xff] %v5194
      %5227 = vst [vmem:[%s260 + $0x50] sm:$0xff] %v5195
      %5228 = vst [vmem:[%s260 + $0x58] sm:$0xff] %v5196
      %5229 = vst [vmem:[%s260 + $0x60] sm:$0xff] %v5197
      %5230 = vst [vmem:[%s260 + $0x68] sm:$0xff] %v5198
      %5231 = vst [vmem:[%s260 + $0x70] sm:$0xff] %v5199
      %5232 = vst [vmem:[%s260 + $0x78] sm:$0xff] %v5200
      %5233 = vst [vmem:[%s260 + $0x80] sm:$0xff] %v5201
      %5234 = vst [vmem:[%s260 + $0x88] sm:$0xff] %v5202
      %5235 = vst [vmem:[%s260 + $0x90] sm:$0xff] %v5203
      %5236 = vst [vmem:[%s260 + $0x98] sm:$0xff] %v5204
      %5237 = vst [vmem:[%s260 + $0xa0] sm:$0xff] %v5205
      %5238 = vst [vmem:[%s260 + $0xa8] sm:$0xff] %v5206
      %5239 = vst [vmem:[%s260 + $0xb0] sm:$0xff] %v5207
      %5240 = vst [vmem:[%s260 + $0xb8] sm:$0xff] %v5208
      %5241 = vst [vmem:[%s260 + $0xc0] sm:$0xff] %v5209
      %5242 = vst [vmem:[%s260 + $0xc8] sm:$0xff] %v5210
      %5243 = vst [vmem:[%s260 + $0xd0] sm:$0xff] %v5211
      %5244 = vst [vmem:[%s260 + $0xd8] sm:$0xff] %v5212
      %5245 = vst [vmem:[%s260 + $0xe0] sm:$0xff] %v5213
      %5246 = vst [vmem:[%s260 + $0xe8] sm:$0xff] %v5214
      %5247 = vst [vmem:[%s260 + $0xf0] sm:$0xff] %v5215
      %5248 = vst [vmem:[%s260 + $0xf8] sm:$0xff] %v5216
      %s5249 = smul.u32 16, %s20
      %p5250 = scmp.lt.s32.totalorder %s19, 1
      %s5251 = scalar_select %p5250, %s19, 1
      %p5252 = scmp.lt.s32.totalorder %s5249, 15
      %s5253 = scalar_select %p5252, %s5249, 15
      %s5254 = smul.addr %s5253, 2
      %s5255 = smul.addr %s5251, 32
      %s5256 = sadd.s32 %s5254, %s5255
      %s5257 = smul.addr %s5256, 8
      %s5258 = scalar_lea.vmem %s4, %s5257
      // Predicated region
      $region37: #{bottleneck_forward.3} parent=35 // pred_check
        %p5259 = pneg %p143
      $region38: #{bottleneck_forward.3} parent=35 // pred_check_branch
        %5261 = sbr.rel (%p5259) target = $region40
      $region39: #{bottleneck_forward.3} parent=35 // pred_region
        %s5262 = smul.u32 16, %s20
      $region40: #{bottleneck_forward.3} parent=35 // pred_fallthru
        _
    $region36: #{bottleneck_forward.3} parent=5 // pred_fallthru
      _
    %p5263 = scmp.le.s32.totalorder 2, %s10
    // Predicated region
    $region41: #{bottleneck_forward.3} parent=5 // pred_check
      %p5264 = pneg %p5263
    $region42: #{bottleneck_forward.3} parent=5 // pred_check_branch
      %5266 = sbr.rel (%p5264) target = $region44
    $region43: #{bottleneck_forward.3} parent=5 // pred_region
      %s5267 = ssub.s32 %s10, 2
      // Predicated region
      $region45: #{bottleneck_forward.3} parent=43 // pred_check
        %p5268 = pneg %p149
      $region46: #{bottleneck_forward.3} parent=43 // pred_check_branch
        %5270 = sbr.rel (%p5268) target = $region48
      $region47: #{bottleneck_forward.3} parent=43 // pred_region
        %s5271 = smul.u32 16, %s22
        %p5272 = scmp.lt.s32.totalorder %s21, 1
        %s5273 = scalar_select %p5272, %s21, 1
        %p5274 = scmp.lt.s32.totalorder %s5271, 15
        %s5275 = scalar_select %p5274, %s5271, 15
        %s5276 = smul.addr %s5275, 2
        %s5277 = smul.addr %s5273, 32
        %s5278 = sadd.s32 %s5276, %s5277
        %s5279 = smul.addr %s5278, 8
        %s5280 = scalar_lea.vmem %s4, %s5279
      $region48: #{bottleneck_forward.3} parent=43 // pred_fallthru
        _
    $region44: #{bottleneck_forward.3} parent=5 // pred_fallthru
      _
  $region6: #{bottleneck_forward.3} parent=0 // loop_footer
    %s14 = sadd.s32 1, %s10
  $region7: #{bottleneck_forward.3} parent=0 // loop_footer_branch
    %9 = sbr.rel target = $region3
  $region8: #{bottleneck_forward.3} parent=0 // loop_exit
    _

</llo_original>
